<compile_context>
chip_gen: v5e
topology: v5e:2x2
jax: 0.10.0
libtpu: 0.0.40
codegen_flags: <defaults>
</compile_context>

<pallas_src>
import jax
import jax.numpy as jnp
from jax import lax
from jax.experimental import pallas as pl
from jax.experimental.pallas import tpu as pltpu


# --------------------------------------------------------------------------
# Fused Pallas kernel (all LSTM layers + attention)
# --------------------------------------------------------------------------

def _make_fused_kernel(n_layers, hidden_dim):
    """Builds the fused (stacked bi-LSTM + attention) kernel."""
    H = hidden_dim

    def kernel(*args):
        nw = 6 * n_layers
        emb_ref = args[0]                   # (T, B, E)
        lstm_refs = args[1:1 + nw]          # per layer/dir: wih, whh, b
        w_om_ref = args[1 + nw]             # (2H, 2H)
        u_om_ref = args[2 + nw]             # (1, 2H)
        ctx_ref = args[3 + nw]              # output (T, 2H)
        seq_sc = args[4 + nw:]              # two (T, B, 2H) VMEM scratches

        T, B, _ = emb_ref.shape

        def run_direction(x_seq, wih_ref, whh_ref, b_ref, out_sc, col):
            """One LSTM direction over the whole sequence.

            x_seq: (T, B, IN) value; writes h_t into out_sc[:, :, col:col+H].
            col == 0 -> forward (t = 0..T-1); col == H -> reverse (t = T-1..0).
            Gate order follows PyTorch: i, f, g, o.
            """
            IN = x_seq.shape[-1]
            wih = wih_ref[...]
            whh = whh_ref[...]
            # Hoisted input projection: one big MXU matmul for all timesteps.
            gates_in = jnp.dot(
                x_seq.reshape(T * B, IN), wih,
                preferred_element_type=jnp.float32).reshape(T, B, 4 * H)
            # Pre-broadcast the bias once (broadcast_in_dim is not CSE'd).
            b_full = jnp.broadcast_to(b_ref[...], (B, 4 * H))

            h = jnp.zeros((B, H), jnp.float32)
            c = jnp.zeros((B, H), jnp.float32)
            reverse = col != 0
            # Static unroll: T is a small compile-time constant here.
            for t in range(T):
                tt = (T - 1 - t) if reverse else t
                gates = (gates_in[tt]
                         + jnp.dot(h, whh, preferred_element_type=jnp.float32)
                         + b_full)                                  # (B, 4H)
                s = jax.nn.sigmoid(gates)       # full-width EUP op
                th = jnp.tanh(gates)            # full-width EUP op
                i_g = s[:, 0 * H:1 * H]
                f_g = s[:, 1 * H:2 * H]
                o_g = s[:, 3 * H:4 * H]
                g_g = th[:, 2 * H:3 * H]
                c = f_g * c + i_g * g_g
                h = o_g * jnp.tanh(c)
                out_sc[tt, :, col:col + H] = h

        # --- stacked bidirectional LSTM, activations stay in VMEM scratch ---
        x = emb_ref[...]                                            # (T, B, E)
        for layer in range(n_layers):
            out_sc = seq_sc[layer % 2]
            for d in range(2):                                      # fwd, bwd
                base = 6 * layer + 3 * d
                run_direction(x, lstm_refs[base], lstm_refs[base + 1],
                              lstm_refs[base + 2], out_sc, d * H)
            x = out_sc[...]                                         # (T, B, 2H)
            # inter-layer dropout: identity (eval mode)

        # --- attention_net: softmax over dim=1, weighted sum over dim=1 ---
        H2 = 2 * H
        out3 = x                                                    # (T, B, 2H)
        flat = out3.reshape(T * B, H2)
        u = jnp.tanh(jnp.dot(flat, w_om_ref[...],
                             preferred_element_type=jnp.float32))   # (T*B, 2H)
        # u @ u_omega has N=1: do it as a VPU multiply + lane reduction.
        att = jnp.sum(u * u_om_ref[...], axis=-1, keepdims=True)    # (T*B, 1)
        att3 = att.reshape(T, B, 1)
        m = jnp.max(att3, axis=1, keepdims=True)
        e = jnp.exp(att3 - m)
        score = e / jnp.sum(e, axis=1, keepdims=True)               # (T, B, 1)
        ctx_ref[...] = jnp.sum(out3 * score, axis=1)                # (T, 2H)

    return kernel


# --------------------------------------------------------------------------
# Wrapper (pallas_call plumbing)
# --------------------------------------------------------------------------

def bilstm_attention_forward(x_tokens, params):
    """x_tokens: (T, B) int32 token ids -> logits (T, 2)."""
    # Embedding lookup is glue (XLA gather); dropout is eval-mode identity.
    emb = jnp.take(params["emb"], x_tokens, axis=0)                 # (T, B, E)
    T, B, _ = emb.shape
    lstm = params["lstm"]
    n_layers = len(lstm)
    H = lstm[0][0][1].shape[0]
    H2 = 2 * H

    flat_weights = []
    for layer in lstm:
        for wih, whh, b in layer:
            flat_weights += [wih, whh, b]
    u_row = params["u_omega"].reshape(1, H2)                        # (1, 2H)

    ctx = pl.pallas_call(
        _make_fused_kernel(n_layers, H),
        out_shape=jax.ShapeDtypeStruct((T, H2), jnp.float32),
        scratch_shapes=[pltpu.VMEM((T, B, H2), jnp.float32),
                        pltpu.VMEM((T, B, H2), jnp.float32)],
    )(emb, *flat_weights, params["w_omega"], u_row)

    # Final fc: (T,2H)@(2H,2) is lane-sparse; keep it in plain XLA so the
    # kernel output stays lane-dense.
    return ctx @ params["fc_w"] + params["fc_b"]


# --------------------------------------------------------------------------
# Deterministic parameter init (shapes match the PyTorch module __init__)
# --------------------------------------------------------------------------

def init_params(key, vocab_size, embedding_dim, hidden_dim, n_layers):
    n_keys = 1 + n_layers * 2 * 4 + 4
    keys = iter(jax.random.split(key, n_keys))
    nk = lambda: next(keys)

    params = {}
    params["emb"] = jax.random.normal(nk(), (vocab_size, embedding_dim),
                                      jnp.float32)

    k_lstm = 1.0 / float(hidden_dim) ** 0.5
    layers = []
    for layer in range(n_layers):
        in_dim = embedding_dim if layer == 0 else 2 * hidden_dim
        dirs = []
        for _d in range(2):
            w_ih = jax.random.uniform(nk(), (4 * hidden_dim, in_dim),
                                      jnp.float32, -k_lstm, k_lstm)
            w_hh = jax.random.uniform(nk(), (4 * hidden_dim, hidden_dim),
                                      jnp.float32, -k_lstm, k_lstm)
            b_ih = jax.random.uniform(nk(), (4 * hidden_dim,),
                                      jnp.float32, -k_lstm, k_lstm)
            b_hh = jax.random.uniform(nk(), (4 * hidden_dim,),
                                      jnp.float32, -k_lstm, k_lstm)
            # Store pre-transposed for (x @ W) matmuls, biases combined.
            dirs.append((w_ih.T, w_hh.T,
                         (b_ih + b_hh).reshape(1, 4 * hidden_dim)))
        layers.append(dirs)
    params["lstm"] = layers

    k_fc = 1.0 / float(2 * hidden_dim) ** 0.5
    fc_w = jax.random.uniform(nk(), (2, 2 * hidden_dim), jnp.float32,
                              -k_fc, k_fc)
    fc_b = jax.random.uniform(nk(), (2,), jnp.float32, -k_fc, k_fc)
    params["fc_w"] = fc_w.T                     # (2H, 2)
    params["fc_b"] = fc_b.reshape(1, 2)
    params["w_omega"] = jax.random.uniform(nk(), (2 * hidden_dim, 2 * hidden_dim),
                                           jnp.float32, -0.1, 0.1)
    params["u_omega"] = jax.random.uniform(nk(), (2 * hidden_dim, 1),
                                           jnp.float32, -0.1, 0.1)
    return params


# --------------------------------------------------------------------------
# Pure-JAX reference (same math, no Pallas) for a correctness check
# --------------------------------------------------------------------------

def _ref_forward(x_tokens, params):
    emb = jnp.take(params["emb"], x_tokens, axis=0)
    h = emb
    for layer in params["lstm"]:
        outs = []
        for d, (wih, whh, b) in enumerate(layer):
            xseq = jnp.flip(h, 0) if d == 1 else h
            H = whh.shape[0]
            B = xseq.shape[1]

            def step(carry, x_t, wih=wih, whh=whh, b=b, H=H):
                hp, cp = carry
                gates = x_t @ wih + hp @ whh + b[0]
                i = jax.nn.sigmoid(gates[:, :H])
                f = jax.nn.sigmoid(gates[:, H:2 * H])
                g = jnp.tanh(gates[:, 2 * H:3 * H])
                o = jax.nn.sigmoid(gates[:, 3 * H:])
                c = f * cp + i * g
                hn = o * jnp.tanh(c)
                return (hn, c), hn

            init = (jnp.zeros((B, H), jnp.float32),
                    jnp.zeros((B, H), jnp.float32))
            _, ys = lax.scan(step, init, xseq)
            if d == 1:
                ys = jnp.flip(ys, 0)
            outs.append(ys)
        h = jnp.concatenate(outs, axis=-1)
    u = jnp.tanh(h @ params["w_omega"])
    att = u @ params["u_omega"]                  # (T, B, 1)
    score = jax.nn.softmax(att, axis=1)
    ctx = jnp.sum(h * score, axis=1)             # (T, 2H)
    return ctx @ params["fc_w"] + params["fc_b"]


# --------------------------------------------------------------------------

if __name__ == "__main__":
    VOCAB, EMB, HID, NLAYERS = 50, 32, 32, 2
    T, B = 8, 8

    key = jax.random.PRNGKey(0)
    kp, kx = jax.random.split(key)
    params = init_params(kp, VOCAB, EMB, HID, NLAYERS)
    x = jax.random.randint(kx, (T, B), 0, VOCAB, dtype=jnp.int32)

    fwd = jax.jit(bilstm_attention_forward)
    logits = jax.block_until_ready(fwd(x, params))
    assert logits.shape == (T, 2), logits.shape

    ref = jax.block_until_ready(jax.jit(_ref_forward)(x, params))
    max_err = float(jnp.max(jnp.abs(logits - ref)))
    assert max_err < 1e-2, f"mismatch vs reference, max abs err = {max_err}"

    print("KERNEL_OK")
</pallas_src>

<mosaic_0001>
module attributes {stable_mosaic.version = 11 : i64} {
  func.func @kernel(%arg0: memref<8x8x32xf32, #tpu.memory_space<vmem>>, %arg1: memref<32x128xf32, #tpu.memory_space<vmem>>, %arg2: memref<32x128xf32, #tpu.memory_space<vmem>>, %arg3: memref<1x128xf32, #tpu.memory_space<vmem>>, %arg4: memref<32x128xf32, #tpu.memory_space<vmem>>, %arg5: memref<32x128xf32, #tpu.memory_space<vmem>>, %arg6: memref<1x128xf32, #tpu.memory_space<vmem>>, %arg7: memref<64x128xf32, #tpu.memory_space<vmem>>, %arg8: memref<32x128xf32, #tpu.memory_space<vmem>>, %arg9: memref<1x128xf32, #tpu.memory_space<vmem>>, %arg10: memref<64x128xf32, #tpu.memory_space<vmem>>, %arg11: memref<32x128xf32, #tpu.memory_space<vmem>>, %arg12: memref<1x128xf32, #tpu.memory_space<vmem>>, %arg13: memref<64x64xf32, #tpu.memory_space<vmem>>, %arg14: memref<1x64xf32, #tpu.memory_space<vmem>>, %arg15: memref<8x64xf32, #tpu.memory_space<vmem>>, %arg16: memref<8x8x64xf32, #tpu.memory_space<vmem>>, %arg17: memref<8x8x64xf32, #tpu.memory_space<vmem>>) attributes {dimension_semantics = [], scalar_prefetch = 0 : i64, scratch_operands = 2 : i64, tpu.core_type = #tpu.core_type<tc>} {
    %c0 = arith.constant 0 : index
    %c0_0 = arith.constant 0 : index
    %c0_1 = arith.constant 0 : index
    %0 = vector.load %arg0[%c0, %c0_0, %c0_1] : memref<8x8x32xf32, #tpu.memory_space<vmem>>, vector<8x8x32xf32>
    %c0_2 = arith.constant 0 : index
    %c0_3 = arith.constant 0 : index
    %1 = vector.load %arg1[%c0_2, %c0_3] : memref<32x128xf32, #tpu.memory_space<vmem>>, vector<32x128xf32>
    %c0_4 = arith.constant 0 : index
    %c0_5 = arith.constant 0 : index
    %2 = vector.load %arg2[%c0_4, %c0_5] : memref<32x128xf32, #tpu.memory_space<vmem>>, vector<32x128xf32>
    %3 = vector.shape_cast %0 : vector<8x8x32xf32> to vector<64x32xf32>
    %cst = arith.constant dense<0.000000e+00> : vector<64x128xf32>
    %4 = tpu.matmul %3, %1, %cst {dimension_numbers = #tpu.dot_dimension_numbers<[1], [0], [0], [1], [0, 0, 1, 1], [], []>} : vector<64x32xf32>, vector<32x128xf32>, vector<64x128xf32> -> vector<64x128xf32>
    %5 = vector.shape_cast %4 : vector<64x128xf32> to vector<8x8x128xf32>
    %c0_6 = arith.constant 0 : index
    %c0_7 = arith.constant 0 : index
    %6 = vector.load %arg3[%c0_6, %c0_7] : memref<1x128xf32, #tpu.memory_space<vmem>>, vector<1x128xf32>
    %7 = vector.shape_cast %6 : vector<1x128xf32> to vector<1x128xf32>
    %8 = vector.broadcast %7 : vector<1x128xf32> to vector<8x128xf32>
    %cst_8 = arith.constant 0.000000e+00 : f32
    %9 = vector.broadcast %cst_8 : f32 to vector<8x32xf32>
    %cst_9 = arith.constant 0.000000e+00 : f32
    %10 = vector.broadcast %cst_9 : f32 to vector<8x32xf32>
    %11 = vector.extract_strided_slice %5 {offsets = [0, 0, 0], sizes = [1, 8, 128], strides = [1, 1, 1]} : vector<8x8x128xf32> to vector<1x8x128xf32>
    %12 = vector.shape_cast %11 : vector<1x8x128xf32> to vector<8x128xf32>
    %cst_10 = arith.constant dense<0.000000e+00> : vector<8x128xf32>
    %13 = tpu.matmul %9, %2, %cst_10 {dimension_numbers = #tpu.dot_dimension_numbers<[1], [0], [0], [1], [0, 0, 1, 1], [], []>} : vector<8x32xf32>, vector<32x128xf32>, vector<8x128xf32> -> vector<8x128xf32>
    %14 = arith.addf %12, %13 : vector<8x128xf32>
    %15 = arith.addf %14, %8 : vector<8x128xf32>
    %16 = arith.negf %15 : vector<8x128xf32>
    %17 = math.exp %16 : vector<8x128xf32>
    %cst_11 = arith.constant 1.000000e+00 : f32
    %18 = vector.broadcast %cst_11 : f32 to vector<8x128xf32>
    %19 = arith.addf %18, %17 : vector<8x128xf32>
    %20 = arith.divf %18, %19 : vector<8x128xf32>
    %21 = math.tanh %15 : vector<8x128xf32>
    %22 = vector.extract_strided_slice %20 {offsets = [0, 0], sizes = [8, 32], strides = [1, 1]} : vector<8x128xf32> to vector<8x32xf32>
    %23 = vector.extract_strided_slice %20 {offsets = [0, 32], sizes = [8, 32], strides = [1, 1]} : vector<8x128xf32> to vector<8x32xf32>
    %24 = vector.extract_strided_slice %20 {offsets = [0, 96], sizes = [8, 32], strides = [1, 1]} : vector<8x128xf32> to vector<8x32xf32>
    %25 = vector.extract_strided_slice %21 {offsets = [0, 64], sizes = [8, 32], strides = [1, 1]} : vector<8x128xf32> to vector<8x32xf32>
    %26 = arith.mulf %23, %10 : vector<8x32xf32>
    %27 = arith.mulf %22, %25 : vector<8x32xf32>
    %28 = arith.addf %26, %27 : vector<8x32xf32>
    %29 = math.tanh %28 : vector<8x32xf32>
    %30 = arith.mulf %24, %29 : vector<8x32xf32>
    %c0_12 = arith.constant 0 : index
    %c0_13 = arith.constant 0 : index
    %c0_14 = arith.constant 0 : index
    %31 = vector.load %arg16[%c0_12, %c0_13, %c0_14] : memref<8x8x64xf32, #tpu.memory_space<vmem>>, vector<1x8x32xf32>
    %32 = vector.shape_cast %31 : vector<1x8x32xf32> to vector<8x32xf32>
    %33 = vector.shape_cast %30 : vector<8x32xf32> to vector<1x8x32xf32>
    tpu.vector_store %arg16[%c0_12, %c0_13, %c0_14], %33 {strides = array<i32>} : memref<8x8x64xf32, #tpu.memory_space<vmem>>, vector<1x8x32xf32>,
    %34 = vector.extract_strided_slice %5 {offsets = [1, 0, 0], sizes = [1, 8, 128], strides = [1, 1, 1]} : vector<8x8x128xf32> to vector<1x8x128xf32>
    %35 = vector.shape_cast %34 : vector<1x8x128xf32> to vector<8x128xf32>
    %cst_15 = arith.constant dense<0.000000e+00> : vector<8x128xf32>
    %36 = tpu.matmul %30, %2, %cst_15 {dimension_numbers = #tpu.dot_dimension_numbers<[1], [0], [0], [1], [0, 0, 1, 1], [], []>} : vector<8x32xf32>, vector<32x128xf32>, vector<8x128xf32> -> vector<8x128xf32>
    %37 = arith.addf %35, %36 : vector<8x128xf32>
    %38 = arith.addf %37, %8 : vector<8x128xf32>
    %39 = arith.negf %38 : vector<8x128xf32>
    %40 = math.exp %39 : vector<8x128xf32>
    %cst_16 = arith.constant 1.000000e+00 : f32
    %41 = vector.broadcast %cst_16 : f32 to vector<8x128xf32>
    %42 = arith.addf %41, %40 : vector<8x128xf32>
    %43 = arith.divf %41, %42 : vector<8x128xf32>
    %44 = math.tanh %38 : vector<8x128xf32>
    %45 = vector.extract_strided_slice %43 {offsets = [0, 0], sizes = [8, 32], strides = [1, 1]} : vector<8x128xf32> to vector<8x32xf32>
    %46 = vector.extract_strided_slice %43 {offsets = [0, 32], sizes = [8, 32], strides = [1, 1]} : vector<8x128xf32> to vector<8x32xf32>
    %47 = vector.extract_strided_slice %43 {offsets = [0, 96], sizes = [8, 32], strides = [1, 1]} : vector<8x128xf32> to vector<8x32xf32>
    %48 = vector.extract_strided_slice %44 {offsets = [0, 64], sizes = [8, 32], strides = [1, 1]} : vector<8x128xf32> to vector<8x32xf32>
    %49 = arith.mulf %46, %28 : vector<8x32xf32>
    %50 = arith.mulf %45, %48 : vector<8x32xf32>
    %51 = arith.addf %49, %50 : vector<8x32xf32>
    %52 = math.tanh %51 : vector<8x32xf32>
    %53 = arith.mulf %47, %52 : vector<8x32xf32>
    %c1 = arith.constant 1 : index
    %c0_17 = arith.constant 0 : index
    %c0_18 = arith.constant 0 : index
    %54 = vector.load %arg16[%c1, %c0_17, %c0_18] : memref<8x8x64xf32, #tpu.memory_space<vmem>>, vector<1x8x32xf32>
    %55 = vector.shape_cast %54 : vector<1x8x32xf32> to vector<8x32xf32>
    %56 = vector.shape_cast %53 : vector<8x32xf32> to vector<1x8x32xf32>
    tpu.vector_store %arg16[%c1, %c0_17, %c0_18], %56 {strides = array<i32>} : memref<8x8x64xf32, #tpu.memory_space<vmem>>, vector<1x8x32xf32>,
    %57 = vector.extract_strided_slice %5 {offsets = [2, 0, 0], sizes = [1, 8, 128], strides = [1, 1, 1]} : vector<8x8x128xf32> to vector<1x8x128xf32>
    %58 = vector.shape_cast %57 : vector<1x8x128xf32> to vector<8x128xf32>
    %cst_19 = arith.constant dense<0.000000e+00> : vector<8x128xf32>
    %59 = tpu.matmul %53, %2, %cst_19 {dimension_numbers = #tpu.dot_dimension_numbers<[1], [0], [0], [1], [0, 0, 1, 1], [], []>} : vector<8x32xf32>, vector<32x128xf32>, vector<8x128xf32> -> vector<8x128xf32>
    %60 = arith.addf %58, %59 : vector<8x128xf32>
    %61 = arith.addf %60, %8 : vector<8x128xf32>
    %62 = arith.negf %61 : vector<8x128xf32>
    %63 = math.exp %62 : vector<8x128xf32>
    %cst_20 = arith.constant 1.000000e+00 : f32
    %64 = vector.broadcast %cst_20 : f32 to vector<8x128xf32>
    %65 = arith.addf %64, %63 : vector<8x128xf32>
    %66 = arith.divf %64, %65 : vector<8x128xf32>
    %67 = math.tanh %61 : vector<8x128xf32>
    %68 = vector.extract_strided_slice %66 {offsets = [0, 0], sizes = [8, 32], strides = [1, 1]} : vector<8x128xf32> to vector<8x32xf32>
    %69 = vector.extract_strided_slice %66 {offsets = [0, 32], sizes = [8, 32], strides = [1, 1]} : vector<8x128xf32> to vector<8x32xf32>
    %70 = vector.extract_strided_slice %66 {offsets = [0, 96], sizes = [8, 32], strides = [1, 1]} : vector<8x128xf32> to vector<8x32xf32>
    %71 = vector.extract_strided_slice %67 {offsets = [0, 64], sizes = [8, 32], strides = [1, 1]} : vector<8x128xf32> to vector<8x32xf32>
    %72 = arith.mulf %69, %51 : vector<8x32xf32>
    %73 = arith.mulf %68, %71 : vector<8x32xf32>
    %74 = arith.addf %72, %73 : vector<8x32xf32>
    %75 = math.tanh %74 : vector<8x32xf32>
    %76 = arith.mulf %70, %75 : vector<8x32xf32>
    %c2 = arith.constant 2 : index
    %c0_21 = arith.constant 0 : index
    %c0_22 = arith.constant 0 : index
    %77 = vector.load %arg16[%c2, %c0_21, %c0_22] : memref<8x8x64xf32, #tpu.memory_space<vmem>>, vector<1x8x32xf32>
    %78 = vector.shape_cast %77 : vector<1x8x32xf32> to vector<8x32xf32>
    %79 = vector.shape_cast %76 : vector<8x32xf32> to vector<1x8x32xf32>
    tpu.vector_store %arg16[%c2, %c0_21, %c0_22], %79 {strides = array<i32>} : memref<8x8x64xf32, #tpu.memory_space<vmem>>, vector<1x8x32xf32>,
    %80 = vector.extract_strided_slice %5 {offsets = [3, 0, 0], sizes = [1, 8, 128], strides = [1, 1, 1]} : vector<8x8x128xf32> to vector<1x8x128xf32>
    %81 = vector.shape_cast %80 : vector<1x8x128xf32> to vector<8x128xf32>
    %cst_23 = arith.constant dense<0.000000e+00> : vector<8x128xf32>
    %82 = tpu.matmul %76, %2, %cst_23 {dimension_numbers = #tpu.dot_dimension_numbers<[1], [0], [0], [1], [0, 0, 1, 1], [], []>} : vector<8x32xf32>, vector<32x128xf32>, vector<8x128xf32> -> vector<8x128xf32>
    %83 = arith.addf %81, %82 : vector<8x128xf32>
    %84 = arith.addf %83, %8 : vector<8x128xf32>
    %85 = arith.negf %84 : vector<8x128xf32>
    %86 = math.exp %85 : vector<8x128xf32>
    %cst_24 = arith.constant 1.000000e+00 : f32
    %87 = vector.broadcast %cst_24 : f32 to vector<8x128xf32>
    %88 = arith.addf %87, %86 : vector<8x128xf32>
    %89 = arith.divf %87, %88 : vector<8x128xf32>
    %90 = math.tanh %84 : vector<8x128xf32>
    %91 = vector.extract_strided_slice %89 {offsets = [0, 0], sizes = [8, 32], strides = [1, 1]} : vector<8x128xf32> to vector<8x32xf32>
    %92 = vector.extract_strided_slice %89 {offsets = [0, 32], sizes = [8, 32], strides = [1, 1]} : vector<8x128xf32> to vector<8x32xf32>
    %93 = vector.extract_strided_slice %89 {offsets = [0, 96], sizes = [8, 32], strides = [1, 1]} : vector<8x128xf32> to vector<8x32xf32>
    %94 = vector.extract_strided_slice %90 {offsets = [0, 64], sizes = [8, 32], strides = [1, 1]} : vector<8x128xf32> to vector<8x32xf32>
    %95 = arith.mulf %92, %74 : vector<8x32xf32>
    %96 = arith.mulf %91, %94 : vector<8x32xf32>
    %97 = arith.addf %95, %96 : vector<8x32xf32>
    %98 = math.tanh %97 : vector<8x32xf32>
    %99 = arith.mulf %93, %98 : vector<8x32xf32>
    %c3 = arith.constant 3 : index
    %c0_25 = arith.constant 0 : index
    %c0_26 = arith.constant 0 : index
    %100 = vector.load %arg16[%c3, %c0_25, %c0_26] : memref<8x8x64xf32, #tpu.memory_space<vmem>>, vector<1x8x32xf32>
    %101 = vector.shape_cast %100 : vector<1x8x32xf32> to vector<8x32xf32>
    %102 = vector.shape_cast %99 : vector<8x32xf32> to vector<1x8x32xf32>
    tpu.vector_store %arg16[%c3, %c0_25, %c0_26], %102 {strides = array<i32>} : memref<8x8x64xf32, #tpu.memory_space<vmem>>, vector<1x8x32xf32>,
    %103 = vector.extract_strided_slice %5 {offsets = [4, 0, 0], sizes = [1, 8, 128], strides = [1, 1, 1]} : vector<8x8x128xf32> to vector<1x8x128xf32>
    %104 = vector.shape_cast %103 : vector<1x8x128xf32> to vector<8x128xf32>
    %cst_27 = arith.constant dense<0.000000e+00> : vector<8x128xf32>
    %105 = tpu.matmul %99, %2, %cst_27 {dimension_numbers = #tpu.dot_dimension_numbers<[1], [0], [0], [1], [0, 0, 1, 1], [], []>} : vector<8x32xf32>, vector<32x128xf32>, vector<8x128xf32> -> vector<8x128xf32>
    %106 = arith.addf %104, %105 : vector<8x128xf32>
    %107 = arith.addf %106, %8 : vector<8x128xf32>
    %108 = arith.negf %107 : vector<8x128xf32>
    %109 = math.exp %108 : vector<8x128xf32>
    %cst_28 = arith.constant 1.000000e+00 : f32
    %110 = vector.broadcast %cst_28 : f32 to vector<8x128xf32>
    %111 = arith.addf %110, %109 : vector<8x128xf32>
    %112 = arith.divf %110, %111 : vector<8x128xf32>
    %113 = math.tanh %107 : vector<8x128xf32>
    %114 = vector.extract_strided_slice %112 {offsets = [0, 0], sizes = [8, 32], strides = [1, 1]} : vector<8x128xf32> to vector<8x32xf32>
    %115 = vector.extract_strided_slice %112 {offsets = [0, 32], sizes = [8, 32], strides = [1, 1]} : vector<8x128xf32> to vector<8x32xf32>
    %116 = vector.extract_strided_slice %112 {offsets = [0, 96], sizes = [8, 32], strides = [1, 1]} : vector<8x128xf32> to vector<8x32xf32>
    %117 = vector.extract_strided_slice %113 {offsets = [0, 64], sizes = [8, 32], strides = [1, 1]} : vector<8x128xf32> to vector<8x32xf32>
    %118 = arith.mulf %115, %97 : vector<8x32xf32>
    %119 = arith.mulf %114, %117 : vector<8x32xf32>
    %120 = arith.addf %118, %119 : vector<8x32xf32>
    %121 = math.tanh %120 : vector<8x32xf32>
    %122 = arith.mulf %116, %121 : vector<8x32xf32>
    %c4 = arith.constant 4 : index
    %c0_29 = arith.constant 0 : index
    %c0_30 = arith.constant 0 : index
    %123 = vector.load %arg16[%c4, %c0_29, %c0_30] : memref<8x8x64xf32, #tpu.memory_space<vmem>>, vector<1x8x32xf32>
    %124 = vector.shape_cast %123 : vector<1x8x32xf32> to vector<8x32xf32>
    %125 = vector.shape_cast %122 : vector<8x32xf32> to vector<1x8x32xf32>
    tpu.vector_store %arg16[%c4, %c0_29, %c0_30], %125 {strides = array<i32>} : memref<8x8x64xf32, #tpu.memory_space<vmem>>, vector<1x8x32xf32>,
    %126 = vector.extract_strided_slice %5 {offsets = [5, 0, 0], sizes = [1, 8, 128], strides = [1, 1, 1]} : vector<8x8x128xf32> to vector<1x8x128xf32>
    %127 = vector.shape_cast %126 : vector<1x8x128xf32> to vector<8x128xf32>
    %cst_31 = arith.constant dense<0.000000e+00> : vector<8x128xf32>
    %128 = tpu.matmul %122, %2, %cst_31 {dimension_numbers = #tpu.dot_dimension_numbers<[1], [0], [0], [1], [0, 0, 1, 1], [], []>} : vector<8x32xf32>, vector<32x128xf32>, vector<8x128xf32> -> vector<8x128xf32>
    %129 = arith.addf %127, %128 : vector<8x128xf32>
    %130 = arith.addf %129, %8 : vector<8x128xf32>
    %131 = arith.negf %130 : vector<8x128xf32>
    %132 = math.exp %131 : vector<8x128xf32>
    %cst_32 = arith.constant 1.000000e+00 : f32
    %133 = vector.broadcast %cst_32 : f32 to vector<8x128xf32>
    %134 = arith.addf %133, %132 : vector<8x128xf32>
    %135 = arith.divf %133, %134 : vector<8x128xf32>
    %136 = math.tanh %130 : vector<8x128xf32>
    %137 = vector.extract_strided_slice %135 {offsets = [0, 0], sizes = [8, 32], strides = [1, 1]} : vector<8x128xf32> to vector<8x32xf32>
    %138 = vector.extract_strided_slice %135 {offsets = [0, 32], sizes = [8, 32], strides = [1, 1]} : vector<8x128xf32> to vector<8x32xf32>
    %139 = vector.extract_strided_slice %135 {offsets = [0, 96], sizes = [8, 32], strides = [1, 1]} : vector<8x128xf32> to vector<8x32xf32>
    %140 = vector.extract_strided_slice %136 {offsets = [0, 64], sizes = [8, 32], strides = [1, 1]} : vector<8x128xf32> to vector<8x32xf32>
    %141 = arith.mulf %138, %120 : vector<8x32xf32>
    %142 = arith.mulf %137, %140 : vector<8x32xf32>
    %143 = arith.addf %141, %142 : vector<8x32xf32>
    %144 = math.tanh %143 : vector<8x32xf32>
    %145 = arith.mulf %139, %144 : vector<8x32xf32>
    %c5 = arith.constant 5 : index
    %c0_33 = arith.constant 0 : index
    %c0_34 = arith.constant 0 : index
    %146 = vector.load %arg16[%c5, %c0_33, %c0_34] : memref<8x8x64xf32, #tpu.memory_space<vmem>>, vector<1x8x32xf32>
    %147 = vector.shape_cast %146 : vector<1x8x32xf32> to vector<8x32xf32>
    %148 = vector.shape_cast %145 : vector<8x32xf32> to vector<1x8x32xf32>
    tpu.vector_store %arg16[%c5, %c0_33, %c0_34], %148 {strides = array<i32>} : memref<8x8x64xf32, #tpu.memory_space<vmem>>, vector<1x8x32xf32>,
    %149 = vector.extract_strided_slice %5 {offsets = [6, 0, 0], sizes = [1, 8, 128], strides = [1, 1, 1]} : vector<8x8x128xf32> to vector<1x8x128xf32>
    %150 = vector.shape_cast %149 : vector<1x8x128xf32> to vector<8x128xf32>
    %cst_35 = arith.constant dense<0.000000e+00> : vector<8x128xf32>
    %151 = tpu.matmul %145, %2, %cst_35 {dimension_numbers = #tpu.dot_dimension_numbers<[1], [0], [0], [1], [0, 0, 1, 1], [], []>} : vector<8x32xf32>, vector<32x128xf32>, vector<8x128xf32> -> vector<8x128xf32>
    %152 = arith.addf %150, %151 : vector<8x128xf32>
    %153 = arith.addf %152, %8 : vector<8x128xf32>
    %154 = arith.negf %153 : vector<8x128xf32>
    %155 = math.exp %154 : vector<8x128xf32>
    %cst_36 = arith.constant 1.000000e+00 : f32
    %156 = vector.broadcast %cst_36 : f32 to vector<8x128xf32>
    %157 = arith.addf %156, %155 : vector<8x128xf32>
    %158 = arith.divf %156, %157 : vector<8x128xf32>
    %159 = math.tanh %153 : vector<8x128xf32>
    %160 = vector.extract_strided_slice %158 {offsets = [0, 0], sizes = [8, 32], strides = [1, 1]} : vector<8x128xf32> to vector<8x32xf32>
    %161 = vector.extract_strided_slice %158 {offsets = [0, 32], sizes = [8, 32], strides = [1, 1]} : vector<8x128xf32> to vector<8x32xf32>
    %162 = vector.extract_strided_slice %158 {offsets = [0, 96], sizes = [8, 32], strides = [1, 1]} : vector<8x128xf32> to vector<8x32xf32>
    %163 = vector.extract_strided_slice %159 {offsets = [0, 64], sizes = [8, 32], strides = [1, 1]} : vector<8x128xf32> to vector<8x32xf32>
    %164 = arith.mulf %161, %143 : vector<8x32xf32>
    %165 = arith.mulf %160, %163 : vector<8x32xf32>
    %166 = arith.addf %164, %165 : vector<8x32xf32>
    %167 = math.tanh %166 : vector<8x32xf32>
    %168 = arith.mulf %162, %167 : vector<8x32xf32>
    %c6 = arith.constant 6 : index
    %c0_37 = arith.constant 0 : index
    %c0_38 = arith.constant 0 : index
    %169 = vector.load %arg16[%c6, %c0_37, %c0_38] : memref<8x8x64xf32, #tpu.memory_space<vmem>>, vector<1x8x32xf32>
    %170 = vector.shape_cast %169 : vector<1x8x32xf32> to vector<8x32xf32>
    %171 = vector.shape_cast %168 : vector<8x32xf32> to vector<1x8x32xf32>
    tpu.vector_store %arg16[%c6, %c0_37, %c0_38], %171 {strides = array<i32>} : memref<8x8x64xf32, #tpu.memory_space<vmem>>, vector<1x8x32xf32>,
    %172 = vector.extract_strided_slice %5 {offsets = [7, 0, 0], sizes = [1, 8, 128], strides = [1, 1, 1]} : vector<8x8x128xf32> to vector<1x8x128xf32>
    %173 = vector.shape_cast %172 : vector<1x8x128xf32> to vector<8x128xf32>
    %cst_39 = arith.constant dense<0.000000e+00> : vector<8x128xf32>
    %174 = tpu.matmul %168, %2, %cst_39 {dimension_numbers = #tpu.dot_dimension_numbers<[1], [0], [0], [1], [0, 0, 1, 1], [], []>} : vector<8x32xf32>, vector<32x128xf32>, vector<8x128xf32> -> vector<8x128xf32>
    %175 = arith.addf %173, %174 : vector<8x128xf32>
    %176 = arith.addf %175, %8 : vector<8x128xf32>
    %177 = arith.negf %176 : vector<8x128xf32>
    %178 = math.exp %177 : vector<8x128xf32>
    %cst_40 = arith.constant 1.000000e+00 : f32
    %179 = vector.broadcast %cst_40 : f32 to vector<8x128xf32>
    %180 = arith.addf %179, %178 : vector<8x128xf32>
    %181 = arith.divf %179, %180 : vector<8x128xf32>
    %182 = math.tanh %176 : vector<8x128xf32>
    %183 = vector.extract_strided_slice %181 {offsets = [0, 0], sizes = [8, 32], strides = [1, 1]} : vector<8x128xf32> to vector<8x32xf32>
    %184 = vector.extract_strided_slice %181 {offsets = [0, 32], sizes = [8, 32], strides = [1, 1]} : vector<8x128xf32> to vector<8x32xf32>
    %185 = vector.extract_strided_slice %181 {offsets = [0, 96], sizes = [8, 32], strides = [1, 1]} : vector<8x128xf32> to vector<8x32xf32>
    %186 = vector.extract_strided_slice %182 {offsets = [0, 64], sizes = [8, 32], strides = [1, 1]} : vector<8x128xf32> to vector<8x32xf32>
    %187 = arith.mulf %184, %166 : vector<8x32xf32>
    %188 = arith.mulf %183, %186 : vector<8x32xf32>
    %189 = arith.addf %187, %188 : vector<8x32xf32>
    %190 = math.tanh %189 : vector<8x32xf32>
    %191 = arith.mulf %185, %190 : vector<8x32xf32>
    %c7 = arith.constant 7 : index
    %c0_41 = arith.constant 0 : index
    %c0_42 = arith.constant 0 : index
    %192 = vector.load %arg16[%c7, %c0_41, %c0_42] : memref<8x8x64xf32, #tpu.memory_space<vmem>>, vector<1x8x32xf32>
    %193 = vector.shape_cast %192 : vector<1x8x32xf32> to vector<8x32xf32>
    %194 = vector.shape_cast %191 : vector<8x32xf32> to vector<1x8x32xf32>
    tpu.vector_store %arg16[%c7, %c0_41, %c0_42], %194 {strides = array<i32>} : memref<8x8x64xf32, #tpu.memory_space<vmem>>, vector<1x8x32xf32>,
    %c0_43 = arith.constant 0 : index
    %c0_44 = arith.constant 0 : index
    %195 = vector.load %arg4[%c0_43, %c0_44] : memref<32x128xf32, #tpu.memory_space<vmem>>, vector<32x128xf32>
    %c0_45 = arith.constant 0 : index
    %c0_46 = arith.constant 0 : index
    %196 = vector.load %arg5[%c0_45, %c0_46] : memref<32x128xf32, #tpu.memory_space<vmem>>, vector<32x128xf32>
    %197 = vector.shape_cast %0 : vector<8x8x32xf32> to vector<64x32xf32>
    %cst_47 = arith.constant dense<0.000000e+00> : vector<64x128xf32>
    %198 = tpu.matmul %197, %195, %cst_47 {dimension_numbers = #tpu.dot_dimension_numbers<[1], [0], [0], [1], [0, 0, 1, 1], [], []>} : vector<64x32xf32>, vector<32x128xf32>, vector<64x128xf32> -> vector<64x128xf32>
    %199 = vector.shape_cast %198 : vector<64x128xf32> to vector<8x8x128xf32>
    %c0_48 = arith.constant 0 : index
    %c0_49 = arith.constant 0 : index
    %200 = vector.load %arg6[%c0_48, %c0_49] : memref<1x128xf32, #tpu.memory_space<vmem>>, vector<1x128xf32>
    %201 = vector.shape_cast %200 : vector<1x128xf32> to vector<1x128xf32>
    %202 = vector.broadcast %201 : vector<1x128xf32> to vector<8x128xf32>
    %cst_50 = arith.constant 0.000000e+00 : f32
    %203 = vector.broadcast %cst_50 : f32 to vector<8x32xf32>
    %cst_51 = arith.constant 0.000000e+00 : f32
    %204 = vector.broadcast %cst_51 : f32 to vector<8x32xf32>
    %205 = vector.extract_strided_slice %199 {offsets = [7, 0, 0], sizes = [1, 8, 128], strides = [1, 1, 1]} : vector<8x8x128xf32> to vector<1x8x128xf32>
    %206 = vector.shape_cast %205 : vector<1x8x128xf32> to vector<8x128xf32>
    %cst_52 = arith.constant dense<0.000000e+00> : vector<8x128xf32>
    %207 = tpu.matmul %203, %196, %cst_52 {dimension_numbers = #tpu.dot_dimension_numbers<[1], [0], [0], [1], [0, 0, 1, 1], [], []>} : vector<8x32xf32>, vector<32x128xf32>, vector<8x128xf32> -> vector<8x128xf32>
    %208 = arith.addf %206, %207 : vector<8x128xf32>
    %209 = arith.addf %208, %202 : vector<8x128xf32>
    %210 = arith.negf %209 : vector<8x128xf32>
    %211 = math.exp %210 : vector<8x128xf32>
    %cst_53 = arith.constant 1.000000e+00 : f32
    %212 = vector.broadcast %cst_53 : f32 to vector<8x128xf32>
    %213 = arith.addf %212, %211 : vector<8x128xf32>
    %214 = arith.divf %212, %213 : vector<8x128xf32>
    %215 = math.tanh %209 : vector<8x128xf32>
    %216 = vector.extract_strided_slice %214 {offsets = [0, 0], sizes = [8, 32], strides = [1, 1]} : vector<8x128xf32> to vector<8x32xf32>
    %217 = vector.extract_strided_slice %214 {offsets = [0, 32], sizes = [8, 32], strides = [1, 1]} : vector<8x128xf32> to vector<8x32xf32>
    %218 = vector.extract_strided_slice %214 {offsets = [0, 96], sizes = [8, 32], strides = [1, 1]} : vector<8x128xf32> to vector<8x32xf32>
    %219 = vector.extract_strided_slice %215 {offsets = [0, 64], sizes = [8, 32], strides = [1, 1]} : vector<8x128xf32> to vector<8x32xf32>
    %220 = arith.mulf %217, %204 : vector<8x32xf32>
    %221 = arith.mulf %216, %219 : vector<8x32xf32>
    %222 = arith.addf %220, %221 : vector<8x32xf32>
    %223 = math.tanh %222 : vector<8x32xf32>
    %224 = arith.mulf %218, %223 : vector<8x32xf32>
    %c7_54 = arith.constant 7 : index
    %c0_55 = arith.constant 0 : index
    %c32 = arith.constant 32 : index
    %225 = vector.load %arg16[%c7_54, %c0_55, %c32] : memref<8x8x64xf32, #tpu.memory_space<vmem>>, vector<1x8x32xf32>
    %226 = vector.shape_cast %225 : vector<1x8x32xf32> to vector<8x32xf32>
    %227 = vector.shape_cast %224 : vector<8x32xf32> to vector<1x8x32xf32>
    tpu.vector_store %arg16[%c7_54, %c0_55, %c32], %227 {strides = array<i32>} : memref<8x8x64xf32, #tpu.memory_space<vmem>>, vector<1x8x32xf32>,
    %228 = vector.extract_strided_slice %199 {offsets = [6, 0, 0], sizes = [1, 8, 128], strides = [1, 1, 1]} : vector<8x8x128xf32> to vector<1x8x128xf32>
    %229 = vector.shape_cast %228 : vector<1x8x128xf32> to vector<8x128xf32>
    %cst_56 = arith.constant dense<0.000000e+00> : vector<8x128xf32>
    %230 = tpu.matmul %224, %196, %cst_56 {dimension_numbers = #tpu.dot_dimension_numbers<[1], [0], [0], [1], [0, 0, 1, 1], [], []>} : vector<8x32xf32>, vector<32x128xf32>, vector<8x128xf32> -> vector<8x128xf32>
    %231 = arith.addf %229, %230 : vector<8x128xf32>
    %232 = arith.addf %231, %202 : vector<8x128xf32>
    %233 = arith.negf %232 : vector<8x128xf32>
    %234 = math.exp %233 : vector<8x128xf32>
    %cst_57 = arith.constant 1.000000e+00 : f32
    %235 = vector.broadcast %cst_57 : f32 to vector<8x128xf32>
    %236 = arith.addf %235, %234 : vector<8x128xf32>
    %237 = arith.divf %235, %236 : vector<8x128xf32>
    %238 = math.tanh %232 : vector<8x128xf32>
    %239 = vector.extract_strided_slice %237 {offsets = [0, 0], sizes = [8, 32], strides = [1, 1]} : vector<8x128xf32> to vector<8x32xf32>
    %240 = vector.extract_strided_slice %237 {offsets = [0, 32], sizes = [8, 32], strides = [1, 1]} : vector<8x128xf32> to vector<8x32xf32>
    %241 = vector.extract_strided_slice %237 {offsets = [0, 96], sizes = [8, 32], strides = [1, 1]} : vector<8x128xf32> to vector<8x32xf32>
    %242 = vector.extract_strided_slice %238 {offsets = [0, 64], sizes = [8, 32], strides = [1, 1]} : vector<8x128xf32> to vector<8x32xf32>
    %243 = arith.mulf %240, %222 : vector<8x32xf32>
    %244 = arith.mulf %239, %242 : vector<8x32xf32>
    %245 = arith.addf %243, %244 : vector<8x32xf32>
    %246 = math.tanh %245 : vector<8x32xf32>
    %247 = arith.mulf %241, %246 : vector<8x32xf32>
    %c6_58 = arith.constant 6 : index
    %c0_59 = arith.constant 0 : index
    %c32_60 = arith.constant 32 : index
    %248 = vector.load %arg16[%c6_58, %c0_59, %c32_60] : memref<8x8x64xf32, #tpu.memory_space<vmem>>, vector<1x8x32xf32>
    %249 = vector.shape_cast %248 : vector<1x8x32xf32> to vector<8x32xf32>
    %250 = vector.shape_cast %247 : vector<8x32xf32> to vector<1x8x32xf32>
    tpu.vector_store %arg16[%c6_58, %c0_59, %c32_60], %250 {strides = array<i32>} : memref<8x8x64xf32, #tpu.memory_space<vmem>>, vector<1x8x32xf32>,
    %251 = vector.extract_strided_slice %199 {offsets = [5, 0, 0], sizes = [1, 8, 128], strides = [1, 1, 1]} : vector<8x8x128xf32> to vector<1x8x128xf32>
    %252 = vector.shape_cast %251 : vector<1x8x128xf32> to vector<8x128xf32>
    %cst_61 = arith.constant dense<0.000000e+00> : vector<8x128xf32>
    %253 = tpu.matmul %247, %196, %cst_61 {dimension_numbers = #tpu.dot_dimension_numbers<[1], [0], [0], [1], [0, 0, 1, 1], [], []>} : vector<8x32xf32>, vector<32x128xf32>, vector<8x128xf32> -> vector<8x128xf32>
    %254 = arith.addf %252, %253 : vector<8x128xf32>
    %255 = arith.addf %254, %202 : vector<8x128xf32>
    %256 = arith.negf %255 : vector<8x128xf32>
    %257 = math.exp %256 : vector<8x128xf32>
    %cst_62 = arith.constant 1.000000e+00 : f32
    %258 = vector.broadcast %cst_62 : f32 to vector<8x128xf32>
    %259 = arith.addf %258, %257 : vector<8x128xf32>
    %260 = arith.divf %258, %259 : vector<8x128xf32>
    %261 = math.tanh %255 : vector<8x128xf32>
    %262 = vector.extract_strided_slice %260 {offsets = [0, 0], sizes = [8, 32], strides = [1, 1]} : vector<8x128xf32> to vector<8x32xf32>
    %263 = vector.extract_strided_slice %260 {offsets = [0, 32], sizes = [8, 32], strides = [1, 1]} : vector<8x128xf32> to vector<8x32xf32>
    %264 = vector.extract_strided_slice %260 {offsets = [0, 96], sizes = [8, 32], strides = [1, 1]} : vector<8x128xf32> to vector<8x32xf32>
    %265 = vector.extract_strided_slice %261 {offsets = [0, 64], sizes = [8, 32], strides = [1, 1]} : vector<8x128xf32> to vector<8x32xf32>
    %266 = arith.mulf %263, %245 : vector<8x32xf32>
    %267 = arith.mulf %262, %265 : vector<8x32xf32>
    %268 = arith.addf %266, %267 : vector<8x32xf32>
    %269 = math.tanh %268 : vector<8x32xf32>
    %270 = arith.mulf %264, %269 : vector<8x32xf32>
    %c5_63 = arith.constant 5 : index
    %c0_64 = arith.constant 0 : index
    %c32_65 = arith.constant 32 : index
    %271 = vector.load %arg16[%c5_63, %c0_64, %c32_65] : memref<8x8x64xf32, #tpu.memory_space<vmem>>, vector<1x8x32xf32>
    %272 = vector.shape_cast %271 : vector<1x8x32xf32> to vector<8x32xf32>
    %273 = vector.shape_cast %270 : vector<8x32xf32> to vector<1x8x32xf32>
    tpu.vector_store %arg16[%c5_63, %c0_64, %c32_65], %273 {strides = array<i32>} : memref<8x8x64xf32, #tpu.memory_space<vmem>>, vector<1x8x32xf32>,
    %274 = vector.extract_strided_slice %199 {offsets = [4, 0, 0], sizes = [1, 8, 128], strides = [1, 1, 1]} : vector<8x8x128xf32> to vector<1x8x128xf32>
    %275 = vector.shape_cast %274 : vector<1x8x128xf32> to vector<8x128xf32>
    %cst_66 = arith.constant dense<0.000000e+00> : vector<8x128xf32>
    %276 = tpu.matmul %270, %196, %cst_66 {dimension_numbers = #tpu.dot_dimension_numbers<[1], [0], [0], [1], [0, 0, 1, 1], [], []>} : vector<8x32xf32>, vector<32x128xf32>, vector<8x128xf32> -> vector<8x128xf32>
    %277 = arith.addf %275, %276 : vector<8x128xf32>
    %278 = arith.addf %277, %202 : vector<8x128xf32>
    %279 = arith.negf %278 : vector<8x128xf32>
    %280 = math.exp %279 : vector<8x128xf32>
    %cst_67 = arith.constant 1.000000e+00 : f32
    %281 = vector.broadcast %cst_67 : f32 to vector<8x128xf32>
    %282 = arith.addf %281, %280 : vector<8x128xf32>
    %283 = arith.divf %281, %282 : vector<8x128xf32>
    %284 = math.tanh %278 : vector<8x128xf32>
    %285 = vector.extract_strided_slice %283 {offsets = [0, 0], sizes = [8, 32], strides = [1, 1]} : vector<8x128xf32> to vector<8x32xf32>
    %286 = vector.extract_strided_slice %283 {offsets = [0, 32], sizes = [8, 32], strides = [1, 1]} : vector<8x128xf32> to vector<8x32xf32>
    %287 = vector.extract_strided_slice %283 {offsets = [0, 96], sizes = [8, 32], strides = [1, 1]} : vector<8x128xf32> to vector<8x32xf32>
    %288 = vector.extract_strided_slice %284 {offsets = [0, 64], sizes = [8, 32], strides = [1, 1]} : vector<8x128xf32> to vector<8x32xf32>
    %289 = arith.mulf %286, %268 : vector<8x32xf32>
    %290 = arith.mulf %285, %288 : vector<8x32xf32>
    %291 = arith.addf %289, %290 : vector<8x32xf32>
    %292 = math.tanh %291 : vector<8x32xf32>
    %293 = arith.mulf %287, %292 : vector<8x32xf32>
    %c4_68 = arith.constant 4 : index
    %c0_69 = arith.constant 0 : index
    %c32_70 = arith.constant 32 : index
    %294 = vector.load %arg16[%c4_68, %c0_69, %c32_70] : memref<8x8x64xf32, #tpu.memory_space<vmem>>, vector<1x8x32xf32>
    %295 = vector.shape_cast %294 : vector<1x8x32xf32> to vector<8x32xf32>
    %296 = vector.shape_cast %293 : vector<8x32xf32> to vector<1x8x32xf32>
    tpu.vector_store %arg16[%c4_68, %c0_69, %c32_70], %296 {strides = array<i32>} : memref<8x8x64xf32, #tpu.memory_space<vmem>>, vector<1x8x32xf32>,
    %297 = vector.extract_strided_slice %199 {offsets = [3, 0, 0], sizes = [1, 8, 128], strides = [1, 1, 1]} : vector<8x8x128xf32> to vector<1x8x128xf32>
    %298 = vector.shape_cast %297 : vector<1x8x128xf32> to vector<8x128xf32>
    %cst_71 = arith.constant dense<0.000000e+00> : vector<8x128xf32>
    %299 = tpu.matmul %293, %196, %cst_71 {dimension_numbers = #tpu.dot_dimension_numbers<[1], [0], [0], [1], [0, 0, 1, 1], [], []>} : vector<8x32xf32>, vector<32x128xf32>, vector<8x128xf32> -> vector<8x128xf32>
    %300 = arith.addf %298, %299 : vector<8x128xf32>
    %301 = arith.addf %300, %202 : vector<8x128xf32>
    %302 = arith.negf %301 : vector<8x128xf32>
    %303 = math.exp %302 : vector<8x128xf32>
    %cst_72 = arith.constant 1.000000e+00 : f32
    %304 = vector.broadcast %cst_72 : f32 to vector<8x128xf32>
    %305 = arith.addf %304, %303 : vector<8x128xf32>
    %306 = arith.divf %304, %305 : vector<8x128xf32>
    %307 = math.tanh %301 : vector<8x128xf32>
    %308 = vector.extract_strided_slice %306 {offsets = [0, 0], sizes = [8, 32], strides = [1, 1]} : vector<8x128xf32> to vector<8x32xf32>
    %309 = vector.extract_strided_slice %306 {offsets = [0, 32], sizes = [8, 32], strides = [1, 1]} : vector<8x128xf32> to vector<8x32xf32>
    %310 = vector.extract_strided_slice %306 {offsets = [0, 96], sizes = [8, 32], strides = [1, 1]} : vector<8x128xf32> to vector<8x32xf32>
    %311 = vector.extract_strided_slice %307 {offsets = [0, 64], sizes = [8, 32], strides = [1, 1]} : vector<8x128xf32> to vector<8x32xf32>
    %312 = arith.mulf %309, %291 : vector<8x32xf32>
    %313 = arith.mulf %308, %311 : vector<8x32xf32>
    %314 = arith.addf %312, %313 : vector<8x32xf32>
    %315 = math.tanh %314 : vector<8x32xf32>
    %316 = arith.mulf %310, %315 : vector<8x32xf32>
    %c3_73 = arith.constant 3 : index
    %c0_74 = arith.constant 0 : index
    %c32_75 = arith.constant 32 : index
    %317 = vector.load %arg16[%c3_73, %c0_74, %c32_75] : memref<8x8x64xf32, #tpu.memory_space<vmem>>, vector<1x8x32xf32>
    %318 = vector.shape_cast %317 : vector<1x8x32xf32> to vector<8x32xf32>
    %319 = vector.shape_cast %316 : vector<8x32xf32> to vector<1x8x32xf32>
    tpu.vector_store %arg16[%c3_73, %c0_74, %c32_75], %319 {strides = array<i32>} : memref<8x8x64xf32, #tpu.memory_space<vmem>>, vector<1x8x32xf32>,
    %320 = vector.extract_strided_slice %199 {offsets = [2, 0, 0], sizes = [1, 8, 128], strides = [1, 1, 1]} : vector<8x8x128xf32> to vector<1x8x128xf32>
    %321 = vector.shape_cast %320 : vector<1x8x128xf32> to vector<8x128xf32>
    %cst_76 = arith.constant dense<0.000000e+00> : vector<8x128xf32>
    %322 = tpu.matmul %316, %196, %cst_76 {dimension_numbers = #tpu.dot_dimension_numbers<[1], [0], [0], [1], [0, 0, 1, 1], [], []>} : vector<8x32xf32>, vector<32x128xf32>, vector<8x128xf32> -> vector<8x128xf32>
    %323 = arith.addf %321, %322 : vector<8x128xf32>
    %324 = arith.addf %323, %202 : vector<8x128xf32>
    %325 = arith.negf %324 : vector<8x128xf32>
    %326 = math.exp %325 : vector<8x128xf32>
    %cst_77 = arith.constant 1.000000e+00 : f32
    %327 = vector.broadcast %cst_77 : f32 to vector<8x128xf32>
    %328 = arith.addf %327, %326 : vector<8x128xf32>
    %329 = arith.divf %327, %328 : vector<8x128xf32>
    %330 = math.tanh %324 : vector<8x128xf32>
    %331 = vector.extract_strided_slice %329 {offsets = [0, 0], sizes = [8, 32], strides = [1, 1]} : vector<8x128xf32> to vector<8x32xf32>
    %332 = vector.extract_strided_slice %329 {offsets = [0, 32], sizes = [8, 32], strides = [1, 1]} : vector<8x128xf32> to vector<8x32xf32>
    %333 = vector.extract_strided_slice %329 {offsets = [0, 96], sizes = [8, 32], strides = [1, 1]} : vector<8x128xf32> to vector<8x32xf32>
    %334 = vector.extract_strided_slice %330 {offsets = [0, 64], sizes = [8, 32], strides = [1, 1]} : vector<8x128xf32> to vector<8x32xf32>
    %335 = arith.mulf %332, %314 : vector<8x32xf32>
    %336 = arith.mulf %331, %334 : vector<8x32xf32>
    %337 = arith.addf %335, %336 : vector<8x32xf32>
    %338 = math.tanh %337 : vector<8x32xf32>
    %339 = arith.mulf %333, %338 : vector<8x32xf32>
    %c2_78 = arith.constant 2 : index
    %c0_79 = arith.constant 0 : index
    %c32_80 = arith.constant 32 : index
    %340 = vector.load %arg16[%c2_78, %c0_79, %c32_80] : memref<8x8x64xf32, #tpu.memory_space<vmem>>, vector<1x8x32xf32>
    %341 = vector.shape_cast %340 : vector<1x8x32xf32> to vector<8x32xf32>
    %342 = vector.shape_cast %339 : vector<8x32xf32> to vector<1x8x32xf32>
    tpu.vector_store %arg16[%c2_78, %c0_79, %c32_80], %342 {strides = array<i32>} : memref<8x8x64xf32, #tpu.memory_space<vmem>>, vector<1x8x32xf32>,
    %343 = vector.extract_strided_slice %199 {offsets = [1, 0, 0], sizes = [1, 8, 128], strides = [1, 1, 1]} : vector<8x8x128xf32> to vector<1x8x128xf32>
    %344 = vector.shape_cast %343 : vector<1x8x128xf32> to vector<8x128xf32>
    %cst_81 = arith.constant dense<0.000000e+00> : vector<8x128xf32>
    %345 = tpu.matmul %339, %196, %cst_81 {dimension_numbers = #tpu.dot_dimension_numbers<[1], [0], [0], [1], [0, 0, 1, 1], [], []>} : vector<8x32xf32>, vector<32x128xf32>, vector<8x128xf32> -> vector<8x128xf32>
    %346 = arith.addf %344, %345 : vector<8x128xf32>
    %347 = arith.addf %346, %202 : vector<8x128xf32>
    %348 = arith.negf %347 : vector<8x128xf32>
    %349 = math.exp %348 : vector<8x128xf32>
    %cst_82 = arith.constant 1.000000e+00 : f32
    %350 = vector.broadcast %cst_82 : f32 to vector<8x128xf32>
    %351 = arith.addf %350, %349 : vector<8x128xf32>
    %352 = arith.divf %350, %351 : vector<8x128xf32>
    %353 = math.tanh %347 : vector<8x128xf32>
    %354 = vector.extract_strided_slice %352 {offsets = [0, 0], sizes = [8, 32], strides = [1, 1]} : vector<8x128xf32> to vector<8x32xf32>
    %355 = vector.extract_strided_slice %352 {offsets = [0, 32], sizes = [8, 32], strides = [1, 1]} : vector<8x128xf32> to vector<8x32xf32>
    %356 = vector.extract_strided_slice %352 {offsets = [0, 96], sizes = [8, 32], strides = [1, 1]} : vector<8x128xf32> to vector<8x32xf32>
    %357 = vector.extract_strided_slice %353 {offsets = [0, 64], sizes = [8, 32], strides = [1, 1]} : vector<8x128xf32> to vector<8x32xf32>
    %358 = arith.mulf %355, %337 : vector<8x32xf32>
    %359 = arith.mulf %354, %357 : vector<8x32xf32>
    %360 = arith.addf %358, %359 : vector<8x32xf32>
    %361 = math.tanh %360 : vector<8x32xf32>
    %362 = arith.mulf %356, %361 : vector<8x32xf32>
    %c1_83 = arith.constant 1 : index
    %c0_84 = arith.constant 0 : index
    %c32_85 = arith.constant 32 : index
    %363 = vector.load %arg16[%c1_83, %c0_84, %c32_85] : memref<8x8x64xf32, #tpu.memory_space<vmem>>, vector<1x8x32xf32>
    %364 = vector.shape_cast %363 : vector<1x8x32xf32> to vector<8x32xf32>
    %365 = vector.shape_cast %362 : vector<8x32xf32> to vector<1x8x32xf32>
    tpu.vector_store %arg16[%c1_83, %c0_84, %c32_85], %365 {strides = array<i32>} : memref<8x8x64xf32, #tpu.memory_space<vmem>>, vector<1x8x32xf32>,
    %366 = vector.extract_strided_slice %199 {offsets = [0, 0, 0], sizes = [1, 8, 128], strides = [1, 1, 1]} : vector<8x8x128xf32> to vector<1x8x128xf32>
    %367 = vector.shape_cast %366 : vector<1x8x128xf32> to vector<8x128xf32>
    %cst_86 = arith.constant dense<0.000000e+00> : vector<8x128xf32>
    %368 = tpu.matmul %362, %196, %cst_86 {dimension_numbers = #tpu.dot_dimension_numbers<[1], [0], [0], [1], [0, 0, 1, 1], [], []>} : vector<8x32xf32>, vector<32x128xf32>, vector<8x128xf32> -> vector<8x128xf32>
    %369 = arith.addf %367, %368 : vector<8x128xf32>
    %370 = arith.addf %369, %202 : vector<8x128xf32>
    %371 = arith.negf %370 : vector<8x128xf32>
    %372 = math.exp %371 : vector<8x128xf32>
    %cst_87 = arith.constant 1.000000e+00 : f32
    %373 = vector.broadcast %cst_87 : f32 to vector<8x128xf32>
    %374 = arith.addf %373, %372 : vector<8x128xf32>
    %375 = arith.divf %373, %374 : vector<8x128xf32>
    %376 = math.tanh %370 : vector<8x128xf32>
    %377 = vector.extract_strided_slice %375 {offsets = [0, 0], sizes = [8, 32], strides = [1, 1]} : vector<8x128xf32> to vector<8x32xf32>
    %378 = vector.extract_strided_slice %375 {offsets = [0, 32], sizes = [8, 32], strides = [1, 1]} : vector<8x128xf32> to vector<8x32xf32>
    %379 = vector.extract_strided_slice %375 {offsets = [0, 96], sizes = [8, 32], strides = [1, 1]} : vector<8x128xf32> to vector<8x32xf32>
    %380 = vector.extract_strided_slice %376 {offsets = [0, 64], sizes = [8, 32], strides = [1, 1]} : vector<8x128xf32> to vector<8x32xf32>
    %381 = arith.mulf %378, %360 : vector<8x32xf32>
    %382 = arith.mulf %377, %380 : vector<8x32xf32>
    %383 = arith.addf %381, %382 : vector<8x32xf32>
    %384 = math.tanh %383 : vector<8x32xf32>
    %385 = arith.mulf %379, %384 : vector<8x32xf32>
    %c0_88 = arith.constant 0 : index
    %c0_89 = arith.constant 0 : index
    %c32_90 = arith.constant 32 : index
    %386 = vector.load %arg16[%c0_88, %c0_89, %c32_90] : memref<8x8x64xf32, #tpu.memory_space<vmem>>, vector<1x8x32xf32>
    %387 = vector.shape_cast %386 : vector<1x8x32xf32> to vector<8x32xf32>
    %388 = vector.shape_cast %385 : vector<8x32xf32> to vector<1x8x32xf32>
    tpu.vector_store %arg16[%c0_88, %c0_89, %c32_90], %388 {strides = array<i32>} : memref<8x8x64xf32, #tpu.memory_space<vmem>>, vector<1x8x32xf32>,
    %c0_91 = arith.constant 0 : index
    %c0_92 = arith.constant 0 : index
    %c0_93 = arith.constant 0 : index
    %389 = vector.load %arg16[%c0_91, %c0_92, %c0_93] : memref<8x8x64xf32, #tpu.memory_space<vmem>>, vector<8x8x64xf32>
    %c0_94 = arith.constant 0 : index
    %c0_95 = arith.constant 0 : index
    %390 = vector.load %arg7[%c0_94, %c0_95] : memref<64x128xf32, #tpu.memory_space<vmem>>, vector<64x128xf32>
    %c0_96 = arith.constant 0 : index
    %c0_97 = arith.constant 0 : index
    %391 = vector.load %arg8[%c0_96, %c0_97] : memref<32x128xf32, #tpu.memory_space<vmem>>, vector<32x128xf32>
    %392 = vector.shape_cast %389 : vector<8x8x64xf32> to vector<64x64xf32>
    %cst_98 = arith.constant dense<0.000000e+00> : vector<64x128xf32>
    %393 = tpu.matmul %392, %390, %cst_98 {dimension_numbers = #tpu.dot_dimension_numbers<[1], [0], [0], [1], [0, 0, 1, 1], [], []>} : vector<64x64xf32>, vector<64x128xf32>, vector<64x128xf32> -> vector<64x128xf32>
    %394 = vector.shape_cast %393 : vector<64x128xf32> to vector<8x8x128xf32>
    %c0_99 = arith.constant 0 : index
    %c0_100 = arith.constant 0 : index
    %395 = vector.load %arg9[%c0_99, %c0_100] : memref<1x128xf32, #tpu.memory_space<vmem>>, vector<1x128xf32>
    %396 = vector.shape_cast %395 : vector<1x128xf32> to vector<1x128xf32>
    %397 = vector.broadcast %396 : vector<1x128xf32> to vector<8x128xf32>
    %cst_101 = arith.constant 0.000000e+00 : f32
    %398 = vector.broadcast %cst_101 : f32 to vector<8x32xf32>
    %cst_102 = arith.constant 0.000000e+00 : f32
    %399 = vector.broadcast %cst_102 : f32 to vector<8x32xf32>
    %400 = vector.extract_strided_slice %394 {offsets = [0, 0, 0], sizes = [1, 8, 128], strides = [1, 1, 1]} : vector<8x8x128xf32> to vector<1x8x128xf32>
    %401 = vector.shape_cast %400 : vector<1x8x128xf32> to vector<8x128xf32>
    %cst_103 = arith.constant dense<0.000000e+00> : vector<8x128xf32>
    %402 = tpu.matmul %398, %391, %cst_103 {dimension_numbers = #tpu.dot_dimension_numbers<[1], [0], [0], [1], [0, 0, 1, 1], [], []>} : vector<8x32xf32>, vector<32x128xf32>, vector<8x128xf32> -> vector<8x128xf32>
    %403 = arith.addf %401, %402 : vector<8x128xf32>
    %404 = arith.addf %403, %397 : vector<8x128xf32>
    %405 = arith.negf %404 : vector<8x128xf32>
    %406 = math.exp %405 : vector<8x128xf32>
    %cst_104 = arith.constant 1.000000e+00 : f32
    %407 = vector.broadcast %cst_104 : f32 to vector<8x128xf32>
    %408 = arith.addf %407, %406 : vector<8x128xf32>
    %409 = arith.divf %407, %408 : vector<8x128xf32>
    %410 = math.tanh %404 : vector<8x128xf32>
    %411 = vector.extract_strided_slice %409 {offsets = [0, 0], sizes = [8, 32], strides = [1, 1]} : vector<8x128xf32> to vector<8x32xf32>
    %412 = vector.extract_strided_slice %409 {offsets = [0, 32], sizes = [8, 32], strides = [1, 1]} : vector<8x128xf32> to vector<8x32xf32>
    %413 = vector.extract_strided_slice %409 {offsets = [0, 96], sizes = [8, 32], strides = [1, 1]} : vector<8x128xf32> to vector<8x32xf32>
    %414 = vector.extract_strided_slice %410 {offsets = [0, 64], sizes = [8, 32], strides = [1, 1]} : vector<8x128xf32> to vector<8x32xf32>
    %415 = arith.mulf %412, %399 : vector<8x32xf32>
    %416 = arith.mulf %411, %414 : vector<8x32xf32>
    %417 = arith.addf %415, %416 : vector<8x32xf32>
    %418 = math.tanh %417 : vector<8x32xf32>
    %419 = arith.mulf %413, %418 : vector<8x32xf32>
    %c0_105 = arith.constant 0 : index
    %c0_106 = arith.constant 0 : index
    %c0_107 = arith.constant 0 : index
    %420 = vector.load %arg17[%c0_105, %c0_106, %c0_107] : memref<8x8x64xf32, #tpu.memory_space<vmem>>, vector<1x8x32xf32>
    %421 = vector.shape_cast %420 : vector<1x8x32xf32> to vector<8x32xf32>
    %422 = vector.shape_cast %419 : vector<8x32xf32> to vector<1x8x32xf32>
    tpu.vector_store %arg17[%c0_105, %c0_106, %c0_107], %422 {strides = array<i32>} : memref<8x8x64xf32, #tpu.memory_space<vmem>>, vector<1x8x32xf32>,
    %423 = vector.extract_strided_slice %394 {offsets = [1, 0, 0], sizes = [1, 8, 128], strides = [1, 1, 1]} : vector<8x8x128xf32> to vector<1x8x128xf32>
    %424 = vector.shape_cast %423 : vector<1x8x128xf32> to vector<8x128xf32>
    %cst_108 = arith.constant dense<0.000000e+00> : vector<8x128xf32>
    %425 = tpu.matmul %419, %391, %cst_108 {dimension_numbers = #tpu.dot_dimension_numbers<[1], [0], [0], [1], [0, 0, 1, 1], [], []>} : vector<8x32xf32>, vector<32x128xf32>, vector<8x128xf32> -> vector<8x128xf32>
    %426 = arith.addf %424, %425 : vector<8x128xf32>
    %427 = arith.addf %426, %397 : vector<8x128xf32>
    %428 = arith.negf %427 : vector<8x128xf32>
    %429 = math.exp %428 : vector<8x128xf32>
    %cst_109 = arith.constant 1.000000e+00 : f32
    %430 = vector.broadcast %cst_109 : f32 to vector<8x128xf32>
    %431 = arith.addf %430, %429 : vector<8x128xf32>
    %432 = arith.divf %430, %431 : vector<8x128xf32>
    %433 = math.tanh %427 : vector<8x128xf32>
    %434 = vector.extract_strided_slice %432 {offsets = [0, 0], sizes = [8, 32], strides = [1, 1]} : vector<8x128xf32> to vector<8x32xf32>
    %435 = vector.extract_strided_slice %432 {offsets = [0, 32], sizes = [8, 32], strides = [1, 1]} : vector<8x128xf32> to vector<8x32xf32>
    %436 = vector.extract_strided_slice %432 {offsets = [0, 96], sizes = [8, 32], strides = [1, 1]} : vector<8x128xf32> to vector<8x32xf32>
    %437 = vector.extract_strided_slice %433 {offsets = [0, 64], sizes = [8, 32], strides = [1, 1]} : vector<8x128xf32> to vector<8x32xf32>
    %438 = arith.mulf %435, %417 : vector<8x32xf32>
    %439 = arith.mulf %434, %437 : vector<8x32xf32>
    %440 = arith.addf %438, %439 : vector<8x32xf32>
    %441 = math.tanh %440 : vector<8x32xf32>
    %442 = arith.mulf %436, %441 : vector<8x32xf32>
    %c1_110 = arith.constant 1 : index
    %c0_111 = arith.constant 0 : index
    %c0_112 = arith.constant 0 : index
    %443 = vector.load %arg17[%c1_110, %c0_111, %c0_112] : memref<8x8x64xf32, #tpu.memory_space<vmem>>, vector<1x8x32xf32>
    %444 = vector.shape_cast %443 : vector<1x8x32xf32> to vector<8x32xf32>
    %445 = vector.shape_cast %442 : vector<8x32xf32> to vector<1x8x32xf32>
    tpu.vector_store %arg17[%c1_110, %c0_111, %c0_112], %445 {strides = array<i32>} : memref<8x8x64xf32, #tpu.memory_space<vmem>>, vector<1x8x32xf32>,
    %446 = vector.extract_strided_slice %394 {offsets = [2, 0, 0], sizes = [1, 8, 128], strides = [1, 1, 1]} : vector<8x8x128xf32> to vector<1x8x128xf32>
    %447 = vector.shape_cast %446 : vector<1x8x128xf32> to vector<8x128xf32>
    %cst_113 = arith.constant dense<0.000000e+00> : vector<8x128xf32>
    %448 = tpu.matmul %442, %391, %cst_113 {dimension_numbers = #tpu.dot_dimension_numbers<[1], [0], [0], [1], [0, 0, 1, 1], [], []>} : vector<8x32xf32>, vector<32x128xf32>, vector<8x128xf32> -> vector<8x128xf32>
    %449 = arith.addf %447, %448 : vector<8x128xf32>
    %450 = arith.addf %449, %397 : vector<8x128xf32>
    %451 = arith.negf %450 : vector<8x128xf32>
    %452 = math.exp %451 : vector<8x128xf32>
    %cst_114 = arith.constant 1.000000e+00 : f32
    %453 = vector.broadcast %cst_114 : f32 to vector<8x128xf32>
    %454 = arith.addf %453, %452 : vector<8x128xf32>
    %455 = arith.divf %453, %454 : vector<8x128xf32>
    %456 = math.tanh %450 : vector<8x128xf32>
    %457 = vector.extract_strided_slice %455 {offsets = [0, 0], sizes = [8, 32], strides = [1, 1]} : vector<8x128xf32> to vector<8x32xf32>
    %458 = vector.extract_strided_slice %455 {offsets = [0, 32], sizes = [8, 32], strides = [1, 1]} : vector<8x128xf32> to vector<8x32xf32>
    %459 = vector.extract_strided_slice %455 {offsets = [0, 96], sizes = [8, 32], strides = [1, 1]} : vector<8x128xf32> to vector<8x32xf32>
    %460 = vector.extract_strided_slice %456 {offsets = [0, 64], sizes = [8, 32], strides = [1, 1]} : vector<8x128xf32> to vector<8x32xf32>
    %461 = arith.mulf %458, %440 : vector<8x32xf32>
    %462 = arith.mulf %457, %460 : vector<8x32xf32>
    %463 = arith.addf %461, %462 : vector<8x32xf32>
    %464 = math.tanh %463 : vector<8x32xf32>
    %465 = arith.mulf %459, %464 : vector<8x32xf32>
    %c2_115 = arith.constant 2 : index
    %c0_116 = arith.constant 0 : index
    %c0_117 = arith.constant 0 : index
    %466 = vector.load %arg17[%c2_115, %c0_116, %c0_117] : memref<8x8x64xf32, #tpu.memory_space<vmem>>, vector<1x8x32xf32>
    %467 = vector.shape_cast %466 : vector<1x8x32xf32> to vector<8x32xf32>
    %468 = vector.shape_cast %465 : vector<8x32xf32> to vector<1x8x32xf32>
    tpu.vector_store %arg17[%c2_115, %c0_116, %c0_117], %468 {strides = array<i32>} : memref<8x8x64xf32, #tpu.memory_space<vmem>>, vector<1x8x32xf32>,
    %469 = vector.extract_strided_slice %394 {offsets = [3, 0, 0], sizes = [1, 8, 128], strides = [1, 1, 1]} : vector<8x8x128xf32> to vector<1x8x128xf32>
    %470 = vector.shape_cast %469 : vector<1x8x128xf32> to vector<8x128xf32>
    %cst_118 = arith.constant dense<0.000000e+00> : vector<8x128xf32>
    %471 = tpu.matmul %465, %391, %cst_118 {dimension_numbers = #tpu.dot_dimension_numbers<[1], [0], [0], [1], [0, 0, 1, 1], [], []>} : vector<8x32xf32>, vector<32x128xf32>, vector<8x128xf32> -> vector<8x128xf32>
    %472 = arith.addf %470, %471 : vector<8x128xf32>
    %473 = arith.addf %472, %397 : vector<8x128xf32>
    %474 = arith.negf %473 : vector<8x128xf32>
    %475 = math.exp %474 : vector<8x128xf32>
    %cst_119 = arith.constant 1.000000e+00 : f32
    %476 = vector.broadcast %cst_119 : f32 to vector<8x128xf32>
    %477 = arith.addf %476, %475 : vector<8x128xf32>
    %478 = arith.divf %476, %477 : vector<8x128xf32>
    %479 = math.tanh %473 : vector<8x128xf32>
    %480 = vector.extract_strided_slice %478 {offsets = [0, 0], sizes = [8, 32], strides = [1, 1]} : vector<8x128xf32> to vector<8x32xf32>
    %481 = vector.extract_strided_slice %478 {offsets = [0, 32], sizes = [8, 32], strides = [1, 1]} : vector<8x128xf32> to vector<8x32xf32>
    %482 = vector.extract_strided_slice %478 {offsets = [0, 96], sizes = [8, 32], strides = [1, 1]} : vector<8x128xf32> to vector<8x32xf32>
    %483 = vector.extract_strided_slice %479 {offsets = [0, 64], sizes = [8, 32], strides = [1, 1]} : vector<8x128xf32> to vector<8x32xf32>
    %484 = arith.mulf %481, %463 : vector<8x32xf32>
    %485 = arith.mulf %480, %483 : vector<8x32xf32>
    %486 = arith.addf %484, %485 : vector<8x32xf32>
    %487 = math.tanh %486 : vector<8x32xf32>
    %488 = arith.mulf %482, %487 : vector<8x32xf32>
    %c3_120 = arith.constant 3 : index
    %c0_121 = arith.constant 0 : index
    %c0_122 = arith.constant 0 : index
    %489 = vector.load %arg17[%c3_120, %c0_121, %c0_122] : memref<8x8x64xf32, #tpu.memory_space<vmem>>, vector<1x8x32xf32>
    %490 = vector.shape_cast %489 : vector<1x8x32xf32> to vector<8x32xf32>
    %491 = vector.shape_cast %488 : vector<8x32xf32> to vector<1x8x32xf32>
    tpu.vector_store %arg17[%c3_120, %c0_121, %c0_122], %491 {strides = array<i32>} : memref<8x8x64xf32, #tpu.memory_space<vmem>>, vector<1x8x32xf32>,
    %492 = vector.extract_strided_slice %394 {offsets = [4, 0, 0], sizes = [1, 8, 128], strides = [1, 1, 1]} : vector<8x8x128xf32> to vector<1x8x128xf32>
    %493 = vector.shape_cast %492 : vector<1x8x128xf32> to vector<8x128xf32>
    %cst_123 = arith.constant dense<0.000000e+00> : vector<8x128xf32>
    %494 = tpu.matmul %488, %391, %cst_123 {dimension_numbers = #tpu.dot_dimension_numbers<[1], [0], [0], [1], [0, 0, 1, 1], [], []>} : vector<8x32xf32>, vector<32x128xf32>, vector<8x128xf32> -> vector<8x128xf32>
    %495 = arith.addf %493, %494 : vector<8x128xf32>
    %496 = arith.addf %495, %397 : vector<8x128xf32>
    %497 = arith.negf %496 : vector<8x128xf32>
    %498 = math.exp %497 : vector<8x128xf32>
    %cst_124 = arith.constant 1.000000e+00 : f32
    %499 = vector.broadcast %cst_124 : f32 to vector<8x128xf32>
    %500 = arith.addf %499, %498 : vector<8x128xf32>
    %501 = arith.divf %499, %500 : vector<8x128xf32>
    %502 = math.tanh %496 : vector<8x128xf32>
    %503 = vector.extract_strided_slice %501 {offsets = [0, 0], sizes = [8, 32], strides = [1, 1]} : vector<8x128xf32> to vector<8x32xf32>
    %504 = vector.extract_strided_slice %501 {offsets = [0, 32], sizes = [8, 32], strides = [1, 1]} : vector<8x128xf32> to vector<8x32xf32>
    %505 = vector.extract_strided_slice %501 {offsets = [0, 96], sizes = [8, 32], strides = [1, 1]} : vector<8x128xf32> to vector<8x32xf32>
    %506 = vector.extract_strided_slice %502 {offsets = [0, 64], sizes = [8, 32], strides = [1, 1]} : vector<8x128xf32> to vector<8x32xf32>
    %507 = arith.mulf %504, %486 : vector<8x32xf32>
    %508 = arith.mulf %503, %506 : vector<8x32xf32>
    %509 = arith.addf %507, %508 : vector<8x32xf32>
    %510 = math.tanh %509 : vector<8x32xf32>
    %511 = arith.mulf %505, %510 : vector<8x32xf32>
    %c4_125 = arith.constant 4 : index
    %c0_126 = arith.constant 0 : index
    %c0_127 = arith.constant 0 : index
    %512 = vector.load %arg17[%c4_125, %c0_126, %c0_127] : memref<8x8x64xf32, #tpu.memory_space<vmem>>, vector<1x8x32xf32>
    %513 = vector.shape_cast %512 : vector<1x8x32xf32> to vector<8x32xf32>
    %514 = vector.shape_cast %511 : vector<8x32xf32> to vector<1x8x32xf32>
    tpu.vector_store %arg17[%c4_125, %c0_126, %c0_127], %514 {strides = array<i32>} : memref<8x8x64xf32, #tpu.memory_space<vmem>>, vector<1x8x32xf32>,
    %515 = vector.extract_strided_slice %394 {offsets = [5, 0, 0], sizes = [1, 8, 128], strides = [1, 1, 1]} : vector<8x8x128xf32> to vector<1x8x128xf32>
    %516 = vector.shape_cast %515 : vector<1x8x128xf32> to vector<8x128xf32>
    %cst_128 = arith.constant dense<0.000000e+00> : vector<8x128xf32>
    %517 = tpu.matmul %511, %391, %cst_128 {dimension_numbers = #tpu.dot_dimension_numbers<[1], [0], [0], [1], [0, 0, 1, 1], [], []>} : vector<8x32xf32>, vector<32x128xf32>, vector<8x128xf32> -> vector<8x128xf32>
    %518 = arith.addf %516, %517 : vector<8x128xf32>
    %519 = arith.addf %518, %397 : vector<8x128xf32>
    %520 = arith.negf %519 : vector<8x128xf32>
    %521 = math.exp %520 : vector<8x128xf32>
    %cst_129 = arith.constant 1.000000e+00 : f32
    %522 = vector.broadcast %cst_129 : f32 to vector<8x128xf32>
    %523 = arith.addf %522, %521 : vector<8x128xf32>
    %524 = arith.divf %522, %523 : vector<8x128xf32>
    %525 = math.tanh %519 : vector<8x128xf32>
    %526 = vector.extract_strided_slice %524 {offsets = [0, 0], sizes = [8, 32], strides = [1, 1]} : vector<8x128xf32> to vector<8x32xf32>
    %527 = vector.extract_strided_slice %524 {offsets = [0, 32], sizes = [8, 32], strides = [1, 1]} : vector<8x128xf32> to vector<8x32xf32>
    %528 = vector.extract_strided_slice %524 {offsets = [0, 96], sizes = [8, 32], strides = [1, 1]} : vector<8x128xf32> to vector<8x32xf32>
    %529 = vector.extract_strided_slice %525 {offsets = [0, 64], sizes = [8, 32], strides = [1, 1]} : vector<8x128xf32> to vector<8x32xf32>
    %530 = arith.mulf %527, %509 : vector<8x32xf32>
    %531 = arith.mulf %526, %529 : vector<8x32xf32>
    %532 = arith.addf %530, %531 : vector<8x32xf32>
    %533 = math.tanh %532 : vector<8x32xf32>
    %534 = arith.mulf %528, %533 : vector<8x32xf32>
    %c5_130 = arith.constant 5 : index
    %c0_131 = arith.constant 0 : index
    %c0_132 = arith.constant 0 : index
    %535 = vector.load %arg17[%c5_130, %c0_131, %c0_132] : memref<8x8x64xf32, #tpu.memory_space<vmem>>, vector<1x8x32xf32>
    %536 = vector.shape_cast %535 : vector<1x8x32xf32> to vector<8x32xf32>
    %537 = vector.shape_cast %534 : vector<8x32xf32> to vector<1x8x32xf32>
    tpu.vector_store %arg17[%c5_130, %c0_131, %c0_132], %537 {strides = array<i32>} : memref<8x8x64xf32, #tpu.memory_space<vmem>>, vector<1x8x32xf32>,
    %538 = vector.extract_strided_slice %394 {offsets = [6, 0, 0], sizes = [1, 8, 128], strides = [1, 1, 1]} : vector<8x8x128xf32> to vector<1x8x128xf32>
    %539 = vector.shape_cast %538 : vector<1x8x128xf32> to vector<8x128xf32>
    %cst_133 = arith.constant dense<0.000000e+00> : vector<8x128xf32>
    %540 = tpu.matmul %534, %391, %cst_133 {dimension_numbers = #tpu.dot_dimension_numbers<[1], [0], [0], [1], [0, 0, 1, 1], [], []>} : vector<8x32xf32>, vector<32x128xf32>, vector<8x128xf32> -> vector<8x128xf32>
    %541 = arith.addf %539, %540 : vector<8x128xf32>
    %542 = arith.addf %541, %397 : vector<8x128xf32>
    %543 = arith.negf %542 : vector<8x128xf32>
    %544 = math.exp %543 : vector<8x128xf32>
    %cst_134 = arith.constant 1.000000e+00 : f32
    %545 = vector.broadcast %cst_134 : f32 to vector<8x128xf32>
    %546 = arith.addf %545, %544 : vector<8x128xf32>
    %547 = arith.divf %545, %546 : vector<8x128xf32>
    %548 = math.tanh %542 : vector<8x128xf32>
    %549 = vector.extract_strided_slice %547 {offsets = [0, 0], sizes = [8, 32], strides = [1, 1]} : vector<8x128xf32> to vector<8x32xf32>
    %550 = vector.extract_strided_slice %547 {offsets = [0, 32], sizes = [8, 32], strides = [1, 1]} : vector<8x128xf32> to vector<8x32xf32>
    %551 = vector.extract_strided_slice %547 {offsets = [0, 96], sizes = [8, 32], strides = [1, 1]} : vector<8x128xf32> to vector<8x32xf32>
    %552 = vector.extract_strided_slice %548 {offsets = [0, 64], sizes = [8, 32], strides = [1, 1]} : vector<8x128xf32> to vector<8x32xf32>
    %553 = arith.mulf %550, %532 : vector<8x32xf32>
    %554 = arith.mulf %549, %552 : vector<8x32xf32>
    %555 = arith.addf %553, %554 : vector<8x32xf32>
    %556 = math.tanh %555 : vector<8x32xf32>
    %557 = arith.mulf %551, %556 : vector<8x32xf32>
    %c6_135 = arith.constant 6 : index
    %c0_136 = arith.constant 0 : index
    %c0_137 = arith.constant 0 : index
    %558 = vector.load %arg17[%c6_135, %c0_136, %c0_137] : memref<8x8x64xf32, #tpu.memory_space<vmem>>, vector<1x8x32xf32>
    %559 = vector.shape_cast %558 : vector<1x8x32xf32> to vector<8x32xf32>
    %560 = vector.shape_cast %557 : vector<8x32xf32> to vector<1x8x32xf32>
    tpu.vector_store %arg17[%c6_135, %c0_136, %c0_137], %560 {strides = array<i32>} : memref<8x8x64xf32, #tpu.memory_space<vmem>>, vector<1x8x32xf32>,
    %561 = vector.extract_strided_slice %394 {offsets = [7, 0, 0], sizes = [1, 8, 128], strides = [1, 1, 1]} : vector<8x8x128xf32> to vector<1x8x128xf32>
    %562 = vector.shape_cast %561 : vector<1x8x128xf32> to vector<8x128xf32>
    %cst_138 = arith.constant dense<0.000000e+00> : vector<8x128xf32>
    %563 = tpu.matmul %557, %391, %cst_138 {dimension_numbers = #tpu.dot_dimension_numbers<[1], [0], [0], [1], [0, 0, 1, 1], [], []>} : vector<8x32xf32>, vector<32x128xf32>, vector<8x128xf32> -> vector<8x128xf32>
    %564 = arith.addf %562, %563 : vector<8x128xf32>
    %565 = arith.addf %564, %397 : vector<8x128xf32>
    %566 = arith.negf %565 : vector<8x128xf32>
    %567 = math.exp %566 : vector<8x128xf32>
    %cst_139 = arith.constant 1.000000e+00 : f32
    %568 = vector.broadcast %cst_139 : f32 to vector<8x128xf32>
    %569 = arith.addf %568, %567 : vector<8x128xf32>
    %570 = arith.divf %568, %569 : vector<8x128xf32>
    %571 = math.tanh %565 : vector<8x128xf32>
    %572 = vector.extract_strided_slice %570 {offsets = [0, 0], sizes = [8, 32], strides = [1, 1]} : vector<8x128xf32> to vector<8x32xf32>
    %573 = vector.extract_strided_slice %570 {offsets = [0, 32], sizes = [8, 32], strides = [1, 1]} : vector<8x128xf32> to vector<8x32xf32>
    %574 = vector.extract_strided_slice %570 {offsets = [0, 96], sizes = [8, 32], strides = [1, 1]} : vector<8x128xf32> to vector<8x32xf32>
    %575 = vector.extract_strided_slice %571 {offsets = [0, 64], sizes = [8, 32], strides = [1, 1]} : vector<8x128xf32> to vector<8x32xf32>
    %576 = arith.mulf %573, %555 : vector<8x32xf32>
    %577 = arith.mulf %572, %575 : vector<8x32xf32>
    %578 = arith.addf %576, %577 : vector<8x32xf32>
    %579 = math.tanh %578 : vector<8x32xf32>
    %580 = arith.mulf %574, %579 : vector<8x32xf32>
    %c7_140 = arith.constant 7 : index
    %c0_141 = arith.constant 0 : index
    %c0_142 = arith.constant 0 : index
    %581 = vector.load %arg17[%c7_140, %c0_141, %c0_142] : memref<8x8x64xf32, #tpu.memory_space<vmem>>, vector<1x8x32xf32>
    %582 = vector.shape_cast %581 : vector<1x8x32xf32> to vector<8x32xf32>
    %583 = vector.shape_cast %580 : vector<8x32xf32> to vector<1x8x32xf32>
    tpu.vector_store %arg17[%c7_140, %c0_141, %c0_142], %583 {strides = array<i32>} : memref<8x8x64xf32, #tpu.memory_space<vmem>>, vector<1x8x32xf32>,
    %c0_143 = arith.constant 0 : index
    %c0_144 = arith.constant 0 : index
    %584 = vector.load %arg10[%c0_143, %c0_144] : memref<64x128xf32, #tpu.memory_space<vmem>>, vector<64x128xf32>
    %c0_145 = arith.constant 0 : index
    %c0_146 = arith.constant 0 : index
    %585 = vector.load %arg11[%c0_145, %c0_146] : memref<32x128xf32, #tpu.memory_space<vmem>>, vector<32x128xf32>
    %586 = vector.shape_cast %389 : vector<8x8x64xf32> to vector<64x64xf32>
    %cst_147 = arith.constant dense<0.000000e+00> : vector<64x128xf32>
    %587 = tpu.matmul %586, %584, %cst_147 {dimension_numbers = #tpu.dot_dimension_numbers<[1], [0], [0], [1], [0, 0, 1, 1], [], []>} : vector<64x64xf32>, vector<64x128xf32>, vector<64x128xf32> -> vector<64x128xf32>
    %588 = vector.shape_cast %587 : vector<64x128xf32> to vector<8x8x128xf32>
    %c0_148 = arith.constant 0 : index
    %c0_149 = arith.constant 0 : index
    %589 = vector.load %arg12[%c0_148, %c0_149] : memref<1x128xf32, #tpu.memory_space<vmem>>, vector<1x128xf32>
    %590 = vector.shape_cast %589 : vector<1x128xf32> to vector<1x128xf32>
    %591 = vector.broadcast %590 : vector<1x128xf32> to vector<8x128xf32>
    %cst_150 = arith.constant 0.000000e+00 : f32
    %592 = vector.broadcast %cst_150 : f32 to vector<8x32xf32>
    %cst_151 = arith.constant 0.000000e+00 : f32
    %593 = vector.broadcast %cst_151 : f32 to vector<8x32xf32>
    %594 = vector.extract_strided_slice %588 {offsets = [7, 0, 0], sizes = [1, 8, 128], strides = [1, 1, 1]} : vector<8x8x128xf32> to vector<1x8x128xf32>
    %595 = vector.shape_cast %594 : vector<1x8x128xf32> to vector<8x128xf32>
    %cst_152 = arith.constant dense<0.000000e+00> : vector<8x128xf32>
    %596 = tpu.matmul %592, %585, %cst_152 {dimension_numbers = #tpu.dot_dimension_numbers<[1], [0], [0], [1], [0, 0, 1, 1], [], []>} : vector<8x32xf32>, vector<32x128xf32>, vector<8x128xf32> -> vector<8x128xf32>
    %597 = arith.addf %595, %596 : vector<8x128xf32>
    %598 = arith.addf %597, %591 : vector<8x128xf32>
    %599 = arith.negf %598 : vector<8x128xf32>
    %600 = math.exp %599 : vector<8x128xf32>
    %cst_153 = arith.constant 1.000000e+00 : f32
    %601 = vector.broadcast %cst_153 : f32 to vector<8x128xf32>
    %602 = arith.addf %601, %600 : vector<8x128xf32>
    %603 = arith.divf %601, %602 : vector<8x128xf32>
    %604 = math.tanh %598 : vector<8x128xf32>
    %605 = vector.extract_strided_slice %603 {offsets = [0, 0], sizes = [8, 32], strides = [1, 1]} : vector<8x128xf32> to vector<8x32xf32>
    %606 = vector.extract_strided_slice %603 {offsets = [0, 32], sizes = [8, 32], strides = [1, 1]} : vector<8x128xf32> to vector<8x32xf32>
    %607 = vector.extract_strided_slice %603 {offsets = [0, 96], sizes = [8, 32], strides = [1, 1]} : vector<8x128xf32> to vector<8x32xf32>
    %608 = vector.extract_strided_slice %604 {offsets = [0, 64], sizes = [8, 32], strides = [1, 1]} : vector<8x128xf32> to vector<8x32xf32>
    %609 = arith.mulf %606, %593 : vector<8x32xf32>
    %610 = arith.mulf %605, %608 : vector<8x32xf32>
    %611 = arith.addf %609, %610 : vector<8x32xf32>
    %612 = math.tanh %611 : vector<8x32xf32>
    %613 = arith.mulf %607, %612 : vector<8x32xf32>
    %c7_154 = arith.constant 7 : index
    %c0_155 = arith.constant 0 : index
    %c32_156 = arith.constant 32 : index
    %614 = vector.load %arg17[%c7_154, %c0_155, %c32_156] : memref<8x8x64xf32, #tpu.memory_space<vmem>>, vector<1x8x32xf32>
    %615 = vector.shape_cast %614 : vector<1x8x32xf32> to vector<8x32xf32>
    %616 = vector.shape_cast %613 : vector<8x32xf32> to vector<1x8x32xf32>
    tpu.vector_store %arg17[%c7_154, %c0_155, %c32_156], %616 {strides = array<i32>} : memref<8x8x64xf32, #tpu.memory_space<vmem>>, vector<1x8x32xf32>,
    %617 = vector.extract_strided_slice %588 {offsets = [6, 0, 0], sizes = [1, 8, 128], strides = [1, 1, 1]} : vector<8x8x128xf32> to vector<1x8x128xf32>
    %618 = vector.shape_cast %617 : vector<1x8x128xf32> to vector<8x128xf32>
    %cst_157 = arith.constant dense<0.000000e+00> : vector<8x128xf32>
    %619 = tpu.matmul %613, %585, %cst_157 {dimension_numbers = #tpu.dot_dimension_numbers<[1], [0], [0], [1], [0, 0, 1, 1], [], []>} : vector<8x32xf32>, vector<32x128xf32>, vector<8x128xf32> -> vector<8x128xf32>
    %620 = arith.addf %618, %619 : vector<8x128xf32>
    %621 = arith.addf %620, %591 : vector<8x128xf32>
    %622 = arith.negf %621 : vector<8x128xf32>
    %623 = math.exp %622 : vector<8x128xf32>
    %cst_158 = arith.constant 1.000000e+00 : f32
    %624 = vector.broadcast %cst_158 : f32 to vector<8x128xf32>
    %625 = arith.addf %624, %623 : vector<8x128xf32>
    %626 = arith.divf %624, %625 : vector<8x128xf32>
    %627 = math.tanh %621 : vector<8x128xf32>
    %628 = vector.extract_strided_slice %626 {offsets = [0, 0], sizes = [8, 32], strides = [1, 1]} : vector<8x128xf32> to vector<8x32xf32>
    %629 = vector.extract_strided_slice %626 {offsets = [0, 32], sizes = [8, 32], strides = [1, 1]} : vector<8x128xf32> to vector<8x32xf32>
    %630 = vector.extract_strided_slice %626 {offsets = [0, 96], sizes = [8, 32], strides = [1, 1]} : vector<8x128xf32> to vector<8x32xf32>
    %631 = vector.extract_strided_slice %627 {offsets = [0, 64], sizes = [8, 32], strides = [1, 1]} : vector<8x128xf32> to vector<8x32xf32>
    %632 = arith.mulf %629, %611 : vector<8x32xf32>
    %633 = arith.mulf %628, %631 : vector<8x32xf32>
    %634 = arith.addf %632, %633 : vector<8x32xf32>
    %635 = math.tanh %634 : vector<8x32xf32>
    %636 = arith.mulf %630, %635 : vector<8x32xf32>
    %c6_159 = arith.constant 6 : index
    %c0_160 = arith.constant 0 : index
    %c32_161 = arith.constant 32 : index
    %637 = vector.load %arg17[%c6_159, %c0_160, %c32_161] : memref<8x8x64xf32, #tpu.memory_space<vmem>>, vector<1x8x32xf32>
    %638 = vector.shape_cast %637 : vector<1x8x32xf32> to vector<8x32xf32>
    %639 = vector.shape_cast %636 : vector<8x32xf32> to vector<1x8x32xf32>
    tpu.vector_store %arg17[%c6_159, %c0_160, %c32_161], %639 {strides = array<i32>} : memref<8x8x64xf32, #tpu.memory_space<vmem>>, vector<1x8x32xf32>,
    %640 = vector.extract_strided_slice %588 {offsets = [5, 0, 0], sizes = [1, 8, 128], strides = [1, 1, 1]} : vector<8x8x128xf32> to vector<1x8x128xf32>
    %641 = vector.shape_cast %640 : vector<1x8x128xf32> to vector<8x128xf32>
    %cst_162 = arith.constant dense<0.000000e+00> : vector<8x128xf32>
    %642 = tpu.matmul %636, %585, %cst_162 {dimension_numbers = #tpu.dot_dimension_numbers<[1], [0], [0], [1], [0, 0, 1, 1], [], []>} : vector<8x32xf32>, vector<32x128xf32>, vector<8x128xf32> -> vector<8x128xf32>
    %643 = arith.addf %641, %642 : vector<8x128xf32>
    %644 = arith.addf %643, %591 : vector<8x128xf32>
    %645 = arith.negf %644 : vector<8x128xf32>
    %646 = math.exp %645 : vector<8x128xf32>
    %cst_163 = arith.constant 1.000000e+00 : f32
    %647 = vector.broadcast %cst_163 : f32 to vector<8x128xf32>
    %648 = arith.addf %647, %646 : vector<8x128xf32>
    %649 = arith.divf %647, %648 : vector<8x128xf32>
    %650 = math.tanh %644 : vector<8x128xf32>
    %651 = vector.extract_strided_slice %649 {offsets = [0, 0], sizes = [8, 32], strides = [1, 1]} : vector<8x128xf32> to vector<8x32xf32>
    %652 = vector.extract_strided_slice %649 {offsets = [0, 32], sizes = [8, 32], strides = [1, 1]} : vector<8x128xf32> to vector<8x32xf32>
    %653 = vector.extract_strided_slice %649 {offsets = [0, 96], sizes = [8, 32], strides = [1, 1]} : vector<8x128xf32> to vector<8x32xf32>
    %654 = vector.extract_strided_slice %650 {offsets = [0, 64], sizes = [8, 32], strides = [1, 1]} : vector<8x128xf32> to vector<8x32xf32>
    %655 = arith.mulf %652, %634 : vector<8x32xf32>
    %656 = arith.mulf %651, %654 : vector<8x32xf32>
    %657 = arith.addf %655, %656 : vector<8x32xf32>
    %658 = math.tanh %657 : vector<8x32xf32>
    %659 = arith.mulf %653, %658 : vector<8x32xf32>
    %c5_164 = arith.constant 5 : index
    %c0_165 = arith.constant 0 : index
    %c32_166 = arith.constant 32 : index
    %660 = vector.load %arg17[%c5_164, %c0_165, %c32_166] : memref<8x8x64xf32, #tpu.memory_space<vmem>>, vector<1x8x32xf32>
    %661 = vector.shape_cast %660 : vector<1x8x32xf32> to vector<8x32xf32>
    %662 = vector.shape_cast %659 : vector<8x32xf32> to vector<1x8x32xf32>
    tpu.vector_store %arg17[%c5_164, %c0_165, %c32_166], %662 {strides = array<i32>} : memref<8x8x64xf32, #tpu.memory_space<vmem>>, vector<1x8x32xf32>,
    %663 = vector.extract_strided_slice %588 {offsets = [4, 0, 0], sizes = [1, 8, 128], strides = [1, 1, 1]} : vector<8x8x128xf32> to vector<1x8x128xf32>
    %664 = vector.shape_cast %663 : vector<1x8x128xf32> to vector<8x128xf32>
    %cst_167 = arith.constant dense<0.000000e+00> : vector<8x128xf32>
    %665 = tpu.matmul %659, %585, %cst_167 {dimension_numbers = #tpu.dot_dimension_numbers<[1], [0], [0], [1], [0, 0, 1, 1], [], []>} : vector<8x32xf32>, vector<32x128xf32>, vector<8x128xf32> -> vector<8x128xf32>
    %666 = arith.addf %664, %665 : vector<8x128xf32>
    %667 = arith.addf %666, %591 : vector<8x128xf32>
    %668 = arith.negf %667 : vector<8x128xf32>
    %669 = math.exp %668 : vector<8x128xf32>
    %cst_168 = arith.constant 1.000000e+00 : f32
    %670 = vector.broadcast %cst_168 : f32 to vector<8x128xf32>
    %671 = arith.addf %670, %669 : vector<8x128xf32>
    %672 = arith.divf %670, %671 : vector<8x128xf32>
    %673 = math.tanh %667 : vector<8x128xf32>
    %674 = vector.extract_strided_slice %672 {offsets = [0, 0], sizes = [8, 32], strides = [1, 1]} : vector<8x128xf32> to vector<8x32xf32>
    %675 = vector.extract_strided_slice %672 {offsets = [0, 32], sizes = [8, 32], strides = [1, 1]} : vector<8x128xf32> to vector<8x32xf32>
    %676 = vector.extract_strided_slice %672 {offsets = [0, 96], sizes = [8, 32], strides = [1, 1]} : vector<8x128xf32> to vector<8x32xf32>
    %677 = vector.extract_strided_slice %673 {offsets = [0, 64], sizes = [8, 32], strides = [1, 1]} : vector<8x128xf32> to vector<8x32xf32>
    %678 = arith.mulf %675, %657 : vector<8x32xf32>
    %679 = arith.mulf %674, %677 : vector<8x32xf32>
    %680 = arith.addf %678, %679 : vector<8x32xf32>
    %681 = math.tanh %680 : vector<8x32xf32>
    %682 = arith.mulf %676, %681 : vector<8x32xf32>
    %c4_169 = arith.constant 4 : index
    %c0_170 = arith.constant 0 : index
    %c32_171 = arith.constant 32 : index
    %683 = vector.load %arg17[%c4_169, %c0_170, %c32_171] : memref<8x8x64xf32, #tpu.memory_space<vmem>>, vector<1x8x32xf32>
    %684 = vector.shape_cast %683 : vector<1x8x32xf32> to vector<8x32xf32>
    %685 = vector.shape_cast %682 : vector<8x32xf32> to vector<1x8x32xf32>
    tpu.vector_store %arg17[%c4_169, %c0_170, %c32_171], %685 {strides = array<i32>} : memref<8x8x64xf32, #tpu.memory_space<vmem>>, vector<1x8x32xf32>,
    %686 = vector.extract_strided_slice %588 {offsets = [3, 0, 0], sizes = [1, 8, 128], strides = [1, 1, 1]} : vector<8x8x128xf32> to vector<1x8x128xf32>
    %687 = vector.shape_cast %686 : vector<1x8x128xf32> to vector<8x128xf32>
    %cst_172 = arith.constant dense<0.000000e+00> : vector<8x128xf32>
    %688 = tpu.matmul %682, %585, %cst_172 {dimension_numbers = #tpu.dot_dimension_numbers<[1], [0], [0], [1], [0, 0, 1, 1], [], []>} : vector<8x32xf32>, vector<32x128xf32>, vector<8x128xf32> -> vector<8x128xf32>
    %689 = arith.addf %687, %688 : vector<8x128xf32>
    %690 = arith.addf %689, %591 : vector<8x128xf32>
    %691 = arith.negf %690 : vector<8x128xf32>
    %692 = math.exp %691 : vector<8x128xf32>
    %cst_173 = arith.constant 1.000000e+00 : f32
    %693 = vector.broadcast %cst_173 : f32 to vector<8x128xf32>
    %694 = arith.addf %693, %692 : vector<8x128xf32>
    %695 = arith.divf %693, %694 : vector<8x128xf32>
    %696 = math.tanh %690 : vector<8x128xf32>
    %697 = vector.extract_strided_slice %695 {offsets = [0, 0], sizes = [8, 32], strides = [1, 1]} : vector<8x128xf32> to vector<8x32xf32>
    %698 = vector.extract_strided_slice %695 {offsets = [0, 32], sizes = [8, 32], strides = [1, 1]} : vector<8x128xf32> to vector<8x32xf32>
    %699 = vector.extract_strided_slice %695 {offsets = [0, 96], sizes = [8, 32], strides = [1, 1]} : vector<8x128xf32> to vector<8x32xf32>
    %700 = vector.extract_strided_slice %696 {offsets = [0, 64], sizes = [8, 32], strides = [1, 1]} : vector<8x128xf32> to vector<8x32xf32>
    %701 = arith.mulf %698, %680 : vector<8x32xf32>
    %702 = arith.mulf %697, %700 : vector<8x32xf32>
    %703 = arith.addf %701, %702 : vector<8x32xf32>
    %704 = math.tanh %703 : vector<8x32xf32>
    %705 = arith.mulf %699, %704 : vector<8x32xf32>
    %c3_174 = arith.constant 3 : index
    %c0_175 = arith.constant 0 : index
    %c32_176 = arith.constant 32 : index
    %706 = vector.load %arg17[%c3_174, %c0_175, %c32_176] : memref<8x8x64xf32, #tpu.memory_space<vmem>>, vector<1x8x32xf32>
    %707 = vector.shape_cast %706 : vector<1x8x32xf32> to vector<8x32xf32>
    %708 = vector.shape_cast %705 : vector<8x32xf32> to vector<1x8x32xf32>
    tpu.vector_store %arg17[%c3_174, %c0_175, %c32_176], %708 {strides = array<i32>} : memref<8x8x64xf32, #tpu.memory_space<vmem>>, vector<1x8x32xf32>,
    %709 = vector.extract_strided_slice %588 {offsets = [2, 0, 0], sizes = [1, 8, 128], strides = [1, 1, 1]} : vector<8x8x128xf32> to vector<1x8x128xf32>
    %710 = vector.shape_cast %709 : vector<1x8x128xf32> to vector<8x128xf32>
    %cst_177 = arith.constant dense<0.000000e+00> : vector<8x128xf32>
    %711 = tpu.matmul %705, %585, %cst_177 {dimension_numbers = #tpu.dot_dimension_numbers<[1], [0], [0], [1], [0, 0, 1, 1], [], []>} : vector<8x32xf32>, vector<32x128xf32>, vector<8x128xf32> -> vector<8x128xf32>
    %712 = arith.addf %710, %711 : vector<8x128xf32>
    %713 = arith.addf %712, %591 : vector<8x128xf32>
    %714 = arith.negf %713 : vector<8x128xf32>
    %715 = math.exp %714 : vector<8x128xf32>
    %cst_178 = arith.constant 1.000000e+00 : f32
    %716 = vector.broadcast %cst_178 : f32 to vector<8x128xf32>
    %717 = arith.addf %716, %715 : vector<8x128xf32>
    %718 = arith.divf %716, %717 : vector<8x128xf32>
    %719 = math.tanh %713 : vector<8x128xf32>
    %720 = vector.extract_strided_slice %718 {offsets = [0, 0], sizes = [8, 32], strides = [1, 1]} : vector<8x128xf32> to vector<8x32xf32>
    %721 = vector.extract_strided_slice %718 {offsets = [0, 32], sizes = [8, 32], strides = [1, 1]} : vector<8x128xf32> to vector<8x32xf32>
    %722 = vector.extract_strided_slice %718 {offsets = [0, 96], sizes = [8, 32], strides = [1, 1]} : vector<8x128xf32> to vector<8x32xf32>
    %723 = vector.extract_strided_slice %719 {offsets = [0, 64], sizes = [8, 32], strides = [1, 1]} : vector<8x128xf32> to vector<8x32xf32>
    %724 = arith.mulf %721, %703 : vector<8x32xf32>
    %725 = arith.mulf %720, %723 : vector<8x32xf32>
    %726 = arith.addf %724, %725 : vector<8x32xf32>
    %727 = math.tanh %726 : vector<8x32xf32>
    %728 = arith.mulf %722, %727 : vector<8x32xf32>
    %c2_179 = arith.constant 2 : index
    %c0_180 = arith.constant 0 : index
    %c32_181 = arith.constant 32 : index
    %729 = vector.load %arg17[%c2_179, %c0_180, %c32_181] : memref<8x8x64xf32, #tpu.memory_space<vmem>>, vector<1x8x32xf32>
    %730 = vector.shape_cast %729 : vector<1x8x32xf32> to vector<8x32xf32>
    %731 = vector.shape_cast %728 : vector<8x32xf32> to vector<1x8x32xf32>
    tpu.vector_store %arg17[%c2_179, %c0_180, %c32_181], %731 {strides = array<i32>} : memref<8x8x64xf32, #tpu.memory_space<vmem>>, vector<1x8x32xf32>,
    %732 = vector.extract_strided_slice %588 {offsets = [1, 0, 0], sizes = [1, 8, 128], strides = [1, 1, 1]} : vector<8x8x128xf32> to vector<1x8x128xf32>
    %733 = vector.shape_cast %732 : vector<1x8x128xf32> to vector<8x128xf32>
    %cst_182 = arith.constant dense<0.000000e+00> : vector<8x128xf32>
    %734 = tpu.matmul %728, %585, %cst_182 {dimension_numbers = #tpu.dot_dimension_numbers<[1], [0], [0], [1], [0, 0, 1, 1], [], []>} : vector<8x32xf32>, vector<32x128xf32>, vector<8x128xf32> -> vector<8x128xf32>
    %735 = arith.addf %733, %734 : vector<8x128xf32>
    %736 = arith.addf %735, %591 : vector<8x128xf32>
    %737 = arith.negf %736 : vector<8x128xf32>
    %738 = math.exp %737 : vector<8x128xf32>
    %cst_183 = arith.constant 1.000000e+00 : f32
    %739 = vector.broadcast %cst_183 : f32 to vector<8x128xf32>
    %740 = arith.addf %739, %738 : vector<8x128xf32>
    %741 = arith.divf %739, %740 : vector<8x128xf32>
    %742 = math.tanh %736 : vector<8x128xf32>
    %743 = vector.extract_strided_slice %741 {offsets = [0, 0], sizes = [8, 32], strides = [1, 1]} : vector<8x128xf32> to vector<8x32xf32>
    %744 = vector.extract_strided_slice %741 {offsets = [0, 32], sizes = [8, 32], strides = [1, 1]} : vector<8x128xf32> to vector<8x32xf32>
    %745 = vector.extract_strided_slice %741 {offsets = [0, 96], sizes = [8, 32], strides = [1, 1]} : vector<8x128xf32> to vector<8x32xf32>
    %746 = vector.extract_strided_slice %742 {offsets = [0, 64], sizes = [8, 32], strides = [1, 1]} : vector<8x128xf32> to vector<8x32xf32>
    %747 = arith.mulf %744, %726 : vector<8x32xf32>
    %748 = arith.mulf %743, %746 : vector<8x32xf32>
    %749 = arith.addf %747, %748 : vector<8x32xf32>
    %750 = math.tanh %749 : vector<8x32xf32>
    %751 = arith.mulf %745, %750 : vector<8x32xf32>
    %c1_184 = arith.constant 1 : index
    %c0_185 = arith.constant 0 : index
    %c32_186 = arith.constant 32 : index
    %752 = vector.load %arg17[%c1_184, %c0_185, %c32_186] : memref<8x8x64xf32, #tpu.memory_space<vmem>>, vector<1x8x32xf32>
    %753 = vector.shape_cast %752 : vector<1x8x32xf32> to vector<8x32xf32>
    %754 = vector.shape_cast %751 : vector<8x32xf32> to vector<1x8x32xf32>
    tpu.vector_store %arg17[%c1_184, %c0_185, %c32_186], %754 {strides = array<i32>} : memref<8x8x64xf32, #tpu.memory_space<vmem>>, vector<1x8x32xf32>,
    %755 = vector.extract_strided_slice %588 {offsets = [0, 0, 0], sizes = [1, 8, 128], strides = [1, 1, 1]} : vector<8x8x128xf32> to vector<1x8x128xf32>
    %756 = vector.shape_cast %755 : vector<1x8x128xf32> to vector<8x128xf32>
    %cst_187 = arith.constant dense<0.000000e+00> : vector<8x128xf32>
    %757 = tpu.matmul %751, %585, %cst_187 {dimension_numbers = #tpu.dot_dimension_numbers<[1], [0], [0], [1], [0, 0, 1, 1], [], []>} : vector<8x32xf32>, vector<32x128xf32>, vector<8x128xf32> -> vector<8x128xf32>
    %758 = arith.addf %756, %757 : vector<8x128xf32>
    %759 = arith.addf %758, %591 : vector<8x128xf32>
    %760 = arith.negf %759 : vector<8x128xf32>
    %761 = math.exp %760 : vector<8x128xf32>
    %cst_188 = arith.constant 1.000000e+00 : f32
    %762 = vector.broadcast %cst_188 : f32 to vector<8x128xf32>
    %763 = arith.addf %762, %761 : vector<8x128xf32>
    %764 = arith.divf %762, %763 : vector<8x128xf32>
    %765 = math.tanh %759 : vector<8x128xf32>
    %766 = vector.extract_strided_slice %764 {offsets = [0, 0], sizes = [8, 32], strides = [1, 1]} : vector<8x128xf32> to vector<8x32xf32>
    %767 = vector.extract_strided_slice %764 {offsets = [0, 32], sizes = [8, 32], strides = [1, 1]} : vector<8x128xf32> to vector<8x32xf32>
    %768 = vector.extract_strided_slice %764 {offsets = [0, 96], sizes = [8, 32], strides = [1, 1]} : vector<8x128xf32> to vector<8x32xf32>
    %769 = vector.extract_strided_slice %765 {offsets = [0, 64], sizes = [8, 32], strides = [1, 1]} : vector<8x128xf32> to vector<8x32xf32>
    %770 = arith.mulf %767, %749 : vector<8x32xf32>
    %771 = arith.mulf %766, %769 : vector<8x32xf32>
    %772 = arith.addf %770, %771 : vector<8x32xf32>
    %773 = math.tanh %772 : vector<8x32xf32>
    %774 = arith.mulf %768, %773 : vector<8x32xf32>
    %c0_189 = arith.constant 0 : index
    %c0_190 = arith.constant 0 : index
    %c32_191 = arith.constant 32 : index
    %775 = vector.load %arg17[%c0_189, %c0_190, %c32_191] : memref<8x8x64xf32, #tpu.memory_space<vmem>>, vector<1x8x32xf32>
    %776 = vector.shape_cast %775 : vector<1x8x32xf32> to vector<8x32xf32>
    %777 = vector.shape_cast %774 : vector<8x32xf32> to vector<1x8x32xf32>
    tpu.vector_store %arg17[%c0_189, %c0_190, %c32_191], %777 {strides = array<i32>} : memref<8x8x64xf32, #tpu.memory_space<vmem>>, vector<1x8x32xf32>,
    %c0_192 = arith.constant 0 : index
    %c0_193 = arith.constant 0 : index
    %c0_194 = arith.constant 0 : index
    %778 = vector.load %arg17[%c0_192, %c0_193, %c0_194] : memref<8x8x64xf32, #tpu.memory_space<vmem>>, vector<8x8x64xf32>
    %779 = vector.shape_cast %778 : vector<8x8x64xf32> to vector<64x64xf32>
    %c0_195 = arith.constant 0 : index
    %c0_196 = arith.constant 0 : index
    %780 = vector.load %arg13[%c0_195, %c0_196] : memref<64x64xf32, #tpu.memory_space<vmem>>, vector<64x64xf32>
    %cst_197 = arith.constant dense<0.000000e+00> : vector<64x64xf32>
    %781 = tpu.matmul %779, %780, %cst_197 {dimension_numbers = #tpu.dot_dimension_numbers<[1], [0], [0], [1], [0, 0, 1, 1], [], []>} : vector<64x64xf32>, vector<64x64xf32>, vector<64x64xf32> -> vector<64x64xf32>
    %782 = math.tanh %781 : vector<64x64xf32>
    %c0_198 = arith.constant 0 : index
    %c0_199 = arith.constant 0 : index
    %783 = vector.load %arg14[%c0_198, %c0_199] : memref<1x64xf32, #tpu.memory_space<vmem>>, vector<1x64xf32>
    %784 = vector.broadcast %783 : vector<1x64xf32> to vector<64x64xf32>
    %785 = arith.mulf %782, %784 : vector<64x64xf32>
    %cst_200 = arith.constant dense<0.000000e+00> : vector<64xf32>
    %786 = vector.multi_reduction <add>, %785, %cst_200 [1] : vector<64x64xf32> to vector<64xf32>
    %787 = vector.shape_cast %786 : vector<64xf32> to vector<64x1xf32>
    %788 = vector.shape_cast %787 : vector<64x1xf32> to vector<8x8x1xf32>
    %cst_201 = arith.constant dense<0xFF800000> : vector<8x1xf32>
    %789 = vector.multi_reduction <maximumf>, %788, %cst_201 [1] : vector<8x8x1xf32> to vector<8x1xf32>
    %790 = vector.shape_cast %789 : vector<8x1xf32> to vector<8x1x1xf32>
    %791 = vector.broadcast %790 : vector<8x1x1xf32> to vector<8x8x1xf32>
    %792 = arith.subf %788, %791 : vector<8x8x1xf32>
    %793 = math.exp %792 : vector<8x8x1xf32>
    %cst_202 = arith.constant dense<0.000000e+00> : vector<8x1xf32>
    %794 = vector.multi_reduction <add>, %793, %cst_202 [1] : vector<8x8x1xf32> to vector<8x1xf32>
    %795 = vector.shape_cast %794 : vector<8x1xf32> to vector<8x1x1xf32>
    %796 = vector.broadcast %795 : vector<8x1x1xf32> to vector<8x8x1xf32>
    %797 = arith.divf %793, %796 : vector<8x8x1xf32>
    %798 = vector.broadcast %797 : vector<8x8x1xf32> to vector<8x8x64xf32>
    %799 = arith.mulf %778, %798 : vector<8x8x64xf32>
    %cst_203 = arith.constant dense<0.000000e+00> : vector<8x64xf32>
    %800 = vector.multi_reduction <add>, %799, %cst_203 [1] : vector<8x8x64xf32> to vector<8x64xf32>
    %c0_204 = arith.constant 0 : index
    %c0_205 = arith.constant 0 : index
    %801 = vector.load %arg15[%c0_204, %c0_205] : memref<8x64xf32, #tpu.memory_space<vmem>>, vector<8x64xf32>
    tpu.vector_store %arg15[%c0_204, %c0_205], %800 {strides = array<i32>} : memref<8x64xf32, #tpu.memory_space<vmem>>, vector<8x64xf32>,
    return
  }
}

</mosaic_0001>

<llo_original>
// kernel: bilstm_attention_forward.1
$region0: #{bilstm_attention_forward.1}
  #allocation0 [shape = 'u32[]', space=smem, size = 0x4, offset = 0x4, fixed_abs, tag = 'smem constant byte address 0x4 - core index']
  #allocation1 [shape = 'u32[72,128]{1,0:T(1,128)}', space=vmem, size = 0x9000, scoped, tag = 'internal scratch']
  #allocation2 [shape = 'f32[8,8,64]{2,1,0:T(8,128)}', space=vmem, size = 0x8000, scoped, tag = 'scratch operand']
  #allocation3 [shape = 'f32[8,8,64]{2,1,0:T(8,128)}', space=vmem, size = 0x8000, scoped, tag = 'scratch operand']
  %s0 = inlined_call_operand.vmem [shape: f32[8,8,32], index: 0, kind: input, shape index: {}]
  %s1 = inlined_call_operand.vmem [shape: f32[32,128], index: 1, kind: input, shape index: {}]
  %s2 = inlined_call_operand.vmem [shape: f32[32,128], index: 2, kind: input, shape index: {}]
  %s3 = inlined_call_operand.vmem [shape: f32[1,128], index: 3, kind: input, shape index: {}]
  %s4 = inlined_call_operand.vmem [shape: f32[32,128], index: 4, kind: input, shape index: {}]
  %s5 = inlined_call_operand.vmem [shape: f32[32,128], index: 5, kind: input, shape index: {}]
  %s6 = inlined_call_operand.vmem [shape: f32[1,128], index: 6, kind: input, shape index: {}]
  %s7 = inlined_call_operand.vmem [shape: f32[64,128], index: 7, kind: input, shape index: {}]
  %s8 = inlined_call_operand.vmem [shape: f32[32,128], index: 8, kind: input, shape index: {}]
  %s9 = inlined_call_operand.vmem [shape: f32[1,128], index: 9, kind: input, shape index: {}]
  %s10 = inlined_call_operand.vmem [shape: f32[64,128], index: 10, kind: input, shape index: {}]
  %s11 = inlined_call_operand.vmem [shape: f32[32,128], index: 11, kind: input, shape index: {}]
  %s12 = inlined_call_operand.vmem [shape: f32[1,128], index: 12, kind: input, shape index: {}]
  %s13 = inlined_call_operand.vmem [shape: f32[64,64], index: 13, kind: input, shape index: {}]
  %s14 = inlined_call_operand.vmem [shape: f32[1,64], index: 14, kind: input, shape index: {}]
  %s15 = inlined_call_operand.vmem [shape: f32[8,64], index: 15, kind: output, shape index: {}]
  %s16 = sld [smem:[#allocation0]]
  $region70: #{bilstm_attention_forward.1} parent=0
    _
  %s18 = ssub.s32 1, %s16
  %s19 = scalar_select 0, %s18, %s16
  // Predicated region
  $region2: #{bilstm_attention_forward.1} parent=0 // pred_check
    _
  $region3: #{bilstm_attention_forward.1} parent=0 // pred_check_branch
    %21 = sbr.rel (0) target = $region5
  $region4: #{bilstm_attention_forward.1} parent=0 // pred_region
    _
  $region5: #{bilstm_attention_forward.1} parent=0 // pred_fallthru
    _
  // Predicated region
  $region6: #{bilstm_attention_forward.1} parent=0 // pred_check
    _
  $region7: #{bilstm_attention_forward.1} parent=0 // pred_check_branch
    %23 = sbr.rel (0) target = $region9
  $region8: #{bilstm_attention_forward.1} parent=0 // pred_region
    _
  $region9: #{bilstm_attention_forward.1} parent=0 // pred_fallthru
    _
  // Predicated region
  $region10: #{bilstm_attention_forward.1} parent=0 // pred_check
    _
  $region11: #{bilstm_attention_forward.1} parent=0 // pred_check_branch
    %25 = sbr.rel (0) target = $region13
  $region12: #{bilstm_attention_forward.1} parent=0 // pred_region
    _
  $region13: #{bilstm_attention_forward.1} parent=0 // pred_fallthru
    _
  // Predicated region
  $region14: #{bilstm_attention_forward.1} parent=0 // pred_check
    _
  $region15: #{bilstm_attention_forward.1} parent=0 // pred_check_branch
    %27 = sbr.rel (0) target = $region17
  $region16: #{bilstm_attention_forward.1} parent=0 // pred_region
    _
  $region17: #{bilstm_attention_forward.1} parent=0 // pred_fallthru
    _
  // Predicated region
  $region18: #{bilstm_attention_forward.1} parent=0 // pred_check
    _
  $region19: #{bilstm_attention_forward.1} parent=0 // pred_check_branch
    %29 = sbr.rel (0) target = $region21
  $region20: #{bilstm_attention_forward.1} parent=0 // pred_region
    _
  $region21: #{bilstm_attention_forward.1} parent=0 // pred_fallthru
    _
  // Predicated region
  $region22: #{bilstm_attention_forward.1} parent=0 // pred_check
    _
  $region23: #{bilstm_attention_forward.1} parent=0 // pred_check_branch
    %31 = sbr.rel (0) target = $region25
  $region24: #{bilstm_attention_forward.1} parent=0 // pred_region
    _
  $region25: #{bilstm_attention_forward.1} parent=0 // pred_fallthru
    _
  // Predicated region
  $region26: #{bilstm_attention_forward.1} parent=0 // pred_check
    _
  $region27: #{bilstm_attention_forward.1} parent=0 // pred_check_branch
    %33 = sbr.rel (0) target = $region29
  $region28: #{bilstm_attention_forward.1} parent=0 // pred_region
    _
  $region29: #{bilstm_attention_forward.1} parent=0 // pred_fallthru
    _
  // Predicated region
  $region30: #{bilstm_attention_forward.1} parent=0 // pred_check
    _
  $region31: #{bilstm_attention_forward.1} parent=0 // pred_check_branch
    %35 = sbr.rel (0) target = $region33
  $region32: #{bilstm_attention_forward.1} parent=0 // pred_region
    _
  $region33: #{bilstm_attention_forward.1} parent=0 // pred_fallthru
    _
  // Predicated region
  $region34: #{bilstm_attention_forward.1} parent=0 // pred_check
    _
  $region35: #{bilstm_attention_forward.1} parent=0 // pred_check_branch
    %37 = sbr.rel (0) target = $region37
  $region36: #{bilstm_attention_forward.1} parent=0 // pred_region
    _
  $region37: #{bilstm_attention_forward.1} parent=0 // pred_fallthru
    _
  // Predicated region
  $region38: #{bilstm_attention_forward.1} parent=0 // pred_check
    _
  $region39: #{bilstm_attention_forward.1} parent=0 // pred_check_branch
    %39 = sbr.rel (0) target = $region41
  $region40: #{bilstm_attention_forward.1} parent=0 // pred_region
    _
  $region41: #{bilstm_attention_forward.1} parent=0 // pred_fallthru
    _
  // Predicated region
  $region42: #{bilstm_attention_forward.1} parent=0 // pred_check
    _
  $region43: #{bilstm_attention_forward.1} parent=0 // pred_check_branch
    %41 = sbr.rel (0) target = $region45
  $region44: #{bilstm_attention_forward.1} parent=0 // pred_region
    _
  $region45: #{bilstm_attention_forward.1} parent=0 // pred_fallthru
    _
  // Predicated region
  $region46: #{bilstm_attention_forward.1} parent=0 // pred_check
    _
  $region47: #{bilstm_attention_forward.1} parent=0 // pred_check_branch
    %43 = sbr.rel (0) target = $region49
  $region48: #{bilstm_attention_forward.1} parent=0 // pred_region
    _
  $region49: #{bilstm_attention_forward.1} parent=0 // pred_fallthru
    _
  // Predicated region
  $region50: #{bilstm_attention_forward.1} parent=0 // pred_check
    _
  $region51: #{bilstm_attention_forward.1} parent=0 // pred_check_branch
    %45 = sbr.rel (0) target = $region53
  $region52: #{bilstm_attention_forward.1} parent=0 // pred_region
    _
  $region53: #{bilstm_attention_forward.1} parent=0 // pred_fallthru
    _
  // Predicated region
  $region54: #{bilstm_attention_forward.1} parent=0 // pred_check
    _
  $region55: #{bilstm_attention_forward.1} parent=0 // pred_check_branch
    %47 = sbr.rel (0) target = $region57
  $region56: #{bilstm_attention_forward.1} parent=0 // pred_region
    _
  $region57: #{bilstm_attention_forward.1} parent=0 // pred_fallthru
    _
  // Predicated region
  $region58: #{bilstm_attention_forward.1} parent=0 // pred_check
    _
  $region59: #{bilstm_attention_forward.1} parent=0 // pred_check_branch
    %49 = sbr.rel (0) target = $region61
  $region60: #{bilstm_attention_forward.1} parent=0 // pred_region
    _
  $region61: #{bilstm_attention_forward.1} parent=0 // pred_fallthru
    _
  %v50 = vld [vmem:[%s0] sm:$0xff]
  %v51 = vld [vmem:[%s0 + $0x8] sm:$0xff]
  %v52 = vld [vmem:[%s0 + $0x10] sm:$0xff]
  %v53 = vld [vmem:[%s0 + $0x18] sm:$0xff]
  %v54 = vld [vmem:[%s0 + $0x20] sm:$0xff]
  %v55 = vld [vmem:[%s0 + $0x28] sm:$0xff]
  %v56 = vld [vmem:[%s0 + $0x30] sm:$0xff]
  %v57 = vld [vmem:[%s0 + $0x38] sm:$0xff]
  %v58 = vld [vmem:[%s1] sm:$0xff]
  %v59 = vld [vmem:[%s1 + $0x8] sm:$0xff]
  %v60 = vld [vmem:[%s1 + $0x10] sm:$0xff]
  %v61 = vld [vmem:[%s1 + $0x18] sm:$0xff]
  %v62 = vld [vmem:[%s2] sm:$0xff]
  %v63 = vld [vmem:[%s2 + $0x8] sm:$0xff]
  %v64 = vld [vmem:[%s2 + $0x10] sm:$0xff]
  %v65 = vld [vmem:[%s2 + $0x18] sm:$0xff]
  %vm66 = vcmask 261120
  %v68 = vsel %vm66, %v50, 0
  %v71 = vsel %vm66, %v51, 0
  %v74 = vsel %vm66, %v52, 0
  %v77 = vsel %vm66, %v53, 0
  %v80 = vsel %vm66, %v54, 0
  %v83 = vsel %vm66, %v55, 0
  %v86 = vsel %vm66, %v56, 0
  %v89 = vsel %vm66, %v57, 0
  %91 = vmatpush.msra.mxu0 0.0
  %92 = vmatpush.msra.mxu0 0.0
  %93 = vmatpush.msra.mxu0 0.0
  %94 = vmatpush.msra.mxu0 0.0
  %95 = vmatpush.msra.mxu0 0.0
  %96 = vmatpush.msra.mxu0 0.0
  %97 = vmatpush.msra.mxu0 0.0
  %98 = vmatpush.msra.mxu0 0.0
  %99 = vmatpush.msra.mxu0 0.0
  %100 = vmatpush.msra.mxu0 0.0
  %101 = vmatpush.msra.mxu0 0.0
  %102 = vmatpush.msra.mxu0 0.0
  %103 = vmatpush.msra.mxu0 %v61
  %104 = vmatpush.msra.mxu0 %v60
  %105 = vmatpush.msra.mxu0 %v59
  %106 = vmatpush.msra.mxu0 %v58
  %107 = vmatmul.f32.gmra.mxu0 %v68
  %v108 = vpop.f32.mrf.mxu0
  %v109 = vadd.f32 0.0, %v108
  %110 = vmatmul.f32.gmra.mxu0 %v71
  %v111 = vpop.f32.mrf.mxu0
  %v112 = vadd.f32 0.0, %v111
  %113 = vmatmul.f32.gmra.mxu0 %v74
  %v114 = vpop.f32.mrf.mxu0
  %v115 = vadd.f32 0.0, %v114
  %116 = vmatmul.f32.gmra.mxu0 %v77
  %v117 = vpop.f32.mrf.mxu0
  %v118 = vadd.f32 0.0, %v117
  %119 = vmatmul.f32.gmra.mxu0 %v80
  %v120 = vpop.f32.mrf.mxu0
  %v121 = vadd.f32 0.0, %v120
  %122 = vmatmul.f32.gmra.mxu0 %v83
  %v123 = vpop.f32.mrf.mxu0
  %v124 = vadd.f32 0.0, %v123
  %125 = vmatmul.f32.gmra.mxu0 %v86
  %v126 = vpop.f32.mrf.mxu0
  %v127 = vadd.f32 0.0, %v126
  %128 = vmatmul.f32.gmra.mxu0 %v89
  %v129 = vpop.f32.mrf.mxu0
  %v130 = vadd.f32 0.0, %v129
  %131 = vdwg.mxu0
  %v132 = vld [vmem:[%s3] sm:$0x1]
  %v134 = vperm.slane %v132, 0
  %v137 = vsel %vm66, 0.0, 0
  %139 = vmatpush.msra.mxu0 0.0
  %140 = vmatpush.msra.mxu0 0.0
  %141 = vmatpush.msra.mxu0 0.0
  %142 = vmatpush.msra.mxu0 0.0
  %143 = vmatpush.msra.mxu0 0.0
  %144 = vmatpush.msra.mxu0 0.0
  %145 = vmatpush.msra.mxu0 0.0
  %146 = vmatpush.msra.mxu0 0.0
  %147 = vmatpush.msra.mxu0 0.0
  %148 = vmatpush.msra.mxu0 0.0
  %149 = vmatpush.msra.mxu0 0.0
  %150 = vmatpush.msra.mxu0 0.0
  %151 = vmatpush.msra.mxu0 %v65
  %152 = vmatpush.msra.mxu0 %v64
  %153 = vmatpush.msra.mxu0 %v63
  %154 = vmatpush.msra.mxu0 %v62
  %155 = vmatmul.f32.gmra.mxu0 %v137
  %v156 = vpop.f32.mrf.mxu0
  %v157 = vadd.f32 0.0, %v156
  %158 = vdwg.mxu0
  %v159 = vadd.f32 %v109, %v157
  %v160 = vadd.f32 %v159, %v134
  %v161 = vxor.u32 %v160, 2147483648
  %v162 = vmul.f32 %v161, 1.442695
  %v163 = vpow.pop %v162
  %v164 = vadd.f32 %v163, 1.0
  %v165 = vrcp.pop %v164
  %v166 = vmul.f32 %v164, %v165
  %v167 = vsub.f32 1.0, %v166
  %v168 = vmul.f32 %v165, %v167
  %v169 = vadd.f32 %v165, %v168
  %vm170 = vweird.f32 %v164
  %vm171 = vweird.f32 %v165
  %vm172 = vmor %vm170, %vm171
  %v173 = vsel %vm172, %v165, %v169
  %v174 = vand.u32 2147483647, %v164
  %vm175 = vcmp.eq.f32.partialorder %v174, 8.507059e+37
  %v176 = vand.u32 %v164, 2147483648
  %v177 = vor.u32 1.1754944e-38, %v176
  %v178 = vsel %vm175, %v177, %v173
  %v179 = vmul.f32 1.0, %v178
  %v180 = vtanh.pop %v160
  %v181 = vmul.f32 %v179, 0.0
  %183 = vrot.lane.b32.xlu0 %v180, 64
  %v184 = vpop.permute.xlu0 %183
  %v186 = vmul.f32 %v179, %v184
  %188 = vrot.lane.b32.xlu0 %v186, 32
  %v189 = vpop.permute.xlu0 %188
  %v191 = vadd.f32 %v181, %v189
  %v192 = vtanh.pop %v191
  %194 = vrot.lane.b32.xlu0 %v192, 64
  %v195 = vpop.permute.xlu0 %194
  %v197 = vmul.f32 %v179, %v195
  %199 = vrot.lane.b32.xlu0 %v197, 32
  %v200 = vpop.permute.xlu0 %199
  %202 = vst.msk [vmem:[#allocation2] sm:$0xff] %vm66, %v200
  %v203 = vsel %vm66, %v200, 0
  %205 = vmatpush.msra.mxu0 0.0
  %206 = vmatpush.msra.mxu0 0.0
  %207 = vmatpush.msra.mxu0 0.0
  %208 = vmatpush.msra.mxu0 0.0
  %209 = vmatpush.msra.mxu0 0.0
  %210 = vmatpush.msra.mxu0 0.0
  %211 = vmatpush.msra.mxu0 0.0
  %212 = vmatpush.msra.mxu0 0.0
  %213 = vmatpush.msra.mxu0 0.0
  %214 = vmatpush.msra.mxu0 0.0
  %215 = vmatpush.msra.mxu0 0.0
  %216 = vmatpush.msra.mxu0 0.0
  %217 = vmatpush.msra.mxu0 %v65
  %218 = vmatpush.msra.mxu0 %v64
  %219 = vmatpush.msra.mxu0 %v63
  %220 = vmatpush.msra.mxu0 %v62
  %221 = vmatmul.f32.gmra.mxu0 %v203
  %v222 = vpop.f32.mrf.mxu0
  %v223 = vadd.f32 0.0, %v222
  %224 = vdwg.mxu0
  %v225 = vadd.f32 %v112, %v223
  %v226 = vadd.f32 %v225, %v134
  %v227 = vxor.u32 %v226, 2147483648
  %v228 = vmul.f32 %v227, 1.442695
  %v229 = vpow.pop %v228
  %v230 = vadd.f32 %v229, 1.0
  %v231 = vrcp.pop %v230
  %v232 = vmul.f32 %v230, %v231
  %v233 = vsub.f32 1.0, %v232
  %v234 = vmul.f32 %v231, %v233
  %v235 = vadd.f32 %v231, %v234
  %vm236 = vweird.f32 %v230
  %vm237 = vweird.f32 %v231
  %vm238 = vmor %vm236, %vm237
  %v239 = vsel %vm238, %v231, %v235
  %v240 = vand.u32 2147483647, %v230
  %vm241 = vcmp.eq.f32.partialorder %v240, 8.507059e+37
  %v242 = vand.u32 %v230, 2147483648
  %v243 = vor.u32 1.1754944e-38, %v242
  %v244 = vsel %vm241, %v243, %v239
  %v245 = vmul.f32 1.0, %v244
  %v246 = vtanh.pop %v226
  %v247 = vmul.f32 %v245, %v191
  %249 = vrot.lane.b32.xlu0 %v246, 64
  %v250 = vpop.permute.xlu0 %249
  %v252 = vmul.f32 %v245, %v250
  %254 = vrot.lane.b32.xlu0 %v252, 32
  %v255 = vpop.permute.xlu0 %254
  %v257 = vadd.f32 %v247, %v255
  %v258 = vtanh.pop %v257
  %260 = vrot.lane.b32.xlu0 %v258, 64
  %v261 = vpop.permute.xlu0 %260
  %v263 = vmul.f32 %v245, %v261
  %265 = vrot.lane.b32.xlu0 %v263, 32
  %v266 = vpop.permute.xlu0 %265
  %s268 = scalar_lea.vmem [#allocation2], 8
  %269 = vst.msk [vmem:[%s268] sm:$0xff] %vm66, %v266
  %v270 = vsel %vm66, %v266, 0
  %272 = vmatpush.msra.mxu0 0.0
  %273 = vmatpush.msra.mxu0 0.0
  %274 = vmatpush.msra.mxu0 0.0
  %275 = vmatpush.msra.mxu0 0.0
  %276 = vmatpush.msra.mxu0 0.0
  %277 = vmatpush.msra.mxu0 0.0
  %278 = vmatpush.msra.mxu0 0.0
  %279 = vmatpush.msra.mxu0 0.0
  %280 = vmatpush.msra.mxu0 0.0
  %281 = vmatpush.msra.mxu0 0.0
  %282 = vmatpush.msra.mxu0 0.0
  %283 = vmatpush.msra.mxu0 0.0
  %284 = vmatpush.msra.mxu0 %v65
  %285 = vmatpush.msra.mxu0 %v64
  %286 = vmatpush.msra.mxu0 %v63
  %287 = vmatpush.msra.mxu0 %v62
  %288 = vmatmul.f32.gmra.mxu0 %v270
  %v289 = vpop.f32.mrf.mxu0
  %v290 = vadd.f32 0.0, %v289
  %291 = vdwg.mxu0
  %v292 = vadd.f32 %v115, %v290
  %v293 = vadd.f32 %v292, %v134
  %v294 = vxor.u32 %v293, 2147483648
  %v295 = vmul.f32 %v294, 1.442695
  %v296 = vpow.pop %v295
  %v297 = vadd.f32 %v296, 1.0
  %v298 = vrcp.pop %v297
  %v299 = vmul.f32 %v297, %v298
  %v300 = vsub.f32 1.0, %v299
  %v301 = vmul.f32 %v298, %v300
  %v302 = vadd.f32 %v298, %v301
  %vm303 = vweird.f32 %v297
  %vm304 = vweird.f32 %v298
  %vm305 = vmor %vm303, %vm304
  %v306 = vsel %vm305, %v298, %v302
  %v307 = vand.u32 2147483647, %v297
  %vm308 = vcmp.eq.f32.partialorder %v307, 8.507059e+37
  %v309 = vand.u32 %v297, 2147483648
  %v310 = vor.u32 1.1754944e-38, %v309
  %v311 = vsel %vm308, %v310, %v306
  %v312 = vmul.f32 1.0, %v311
  %v313 = vtanh.pop %v293
  %v314 = vmul.f32 %v312, %v257
  %316 = vrot.lane.b32.xlu0 %v313, 64
  %v317 = vpop.permute.xlu0 %316
  %v319 = vmul.f32 %v312, %v317
  %321 = vrot.lane.b32.xlu0 %v319, 32
  %v322 = vpop.permute.xlu0 %321
  %v324 = vadd.f32 %v314, %v322
  %v325 = vtanh.pop %v324
  %327 = vrot.lane.b32.xlu0 %v325, 64
  %v328 = vpop.permute.xlu0 %327
  %v330 = vmul.f32 %v312, %v328
  %332 = vrot.lane.b32.xlu0 %v330, 32
  %v333 = vpop.permute.xlu0 %332
  %s335 = scalar_lea.vmem [#allocation2], 16
  %336 = vst.msk [vmem:[%s335] sm:$0xff] %vm66, %v333
  %v337 = vsel %vm66, %v333, 0
  %339 = vmatpush.msra.mxu0 0.0
  %340 = vmatpush.msra.mxu0 0.0
  %341 = vmatpush.msra.mxu0 0.0
  %342 = vmatpush.msra.mxu0 0.0
  %343 = vmatpush.msra.mxu0 0.0
  %344 = vmatpush.msra.mxu0 0.0
  %345 = vmatpush.msra.mxu0 0.0
  %346 = vmatpush.msra.mxu0 0.0
  %347 = vmatpush.msra.mxu0 0.0
  %348 = vmatpush.msra.mxu0 0.0
  %349 = vmatpush.msra.mxu0 0.0
  %350 = vmatpush.msra.mxu0 0.0
  %351 = vmatpush.msra.mxu0 %v65
  %352 = vmatpush.msra.mxu0 %v64
  %353 = vmatpush.msra.mxu0 %v63
  %354 = vmatpush.msra.mxu0 %v62
  %355 = vmatmul.f32.gmra.mxu0 %v337
  %v356 = vpop.f32.mrf.mxu0
  %v357 = vadd.f32 0.0, %v356
  %358 = vdwg.mxu0
  %v359 = vadd.f32 %v118, %v357
  %v360 = vadd.f32 %v359, %v134
  %v361 = vxor.u32 %v360, 2147483648
  %v362 = vmul.f32 %v361, 1.442695
  %v363 = vpow.pop %v362
  %v364 = vadd.f32 %v363, 1.0
  %v365 = vrcp.pop %v364
  %v366 = vmul.f32 %v364, %v365
  %v367 = vsub.f32 1.0, %v366
  %v368 = vmul.f32 %v365, %v367
  %v369 = vadd.f32 %v365, %v368
  %vm370 = vweird.f32 %v364
  %vm371 = vweird.f32 %v365
  %vm372 = vmor %vm370, %vm371
  %v373 = vsel %vm372, %v365, %v369
  %v374 = vand.u32 2147483647, %v364
  %vm375 = vcmp.eq.f32.partialorder %v374, 8.507059e+37
  %v376 = vand.u32 %v364, 2147483648
  %v377 = vor.u32 1.1754944e-38, %v376
  %v378 = vsel %vm375, %v377, %v373
  %v379 = vmul.f32 1.0, %v378
  %v380 = vtanh.pop %v360
  %v381 = vmul.f32 %v379, %v324
  %383 = vrot.lane.b32.xlu0 %v380, 64
  %v384 = vpop.permute.xlu0 %383
  %v386 = vmul.f32 %v379, %v384
  %388 = vrot.lane.b32.xlu0 %v386, 32
  %v389 = vpop.permute.xlu0 %388
  %v391 = vadd.f32 %v381, %v389
  %v392 = vtanh.pop %v391
  %394 = vrot.lane.b32.xlu0 %v392, 64
  %v395 = vpop.permute.xlu0 %394
  %v397 = vmul.f32 %v379, %v395
  %399 = vrot.lane.b32.xlu0 %v397, 32
  %v400 = vpop.permute.xlu0 %399
  %s402 = scalar_lea.vmem [#allocation2], 24
  %403 = vst.msk [vmem:[%s402] sm:$0xff] %vm66, %v400
  %v404 = vsel %vm66, %v400, 0
  %406 = vmatpush.msra.mxu0 0.0
  %407 = vmatpush.msra.mxu0 0.0
  %408 = vmatpush.msra.mxu0 0.0
  %409 = vmatpush.msra.mxu0 0.0
  %410 = vmatpush.msra.mxu0 0.0
  %411 = vmatpush.msra.mxu0 0.0
  %412 = vmatpush.msra.mxu0 0.0
  %413 = vmatpush.msra.mxu0 0.0
  %414 = vmatpush.msra.mxu0 0.0
  %415 = vmatpush.msra.mxu0 0.0
  %416 = vmatpush.msra.mxu0 0.0
  %417 = vmatpush.msra.mxu0 0.0
  %418 = vmatpush.msra.mxu0 %v65
  %419 = vmatpush.msra.mxu0 %v64
  %420 = vmatpush.msra.mxu0 %v63
  %421 = vmatpush.msra.mxu0 %v62
  %422 = vmatmul.f32.gmra.mxu0 %v404
  %v423 = vpop.f32.mrf.mxu0
  %v424 = vadd.f32 0.0, %v423
  %425 = vdwg.mxu0
  %v426 = vadd.f32 %v121, %v424
  %v427 = vadd.f32 %v426, %v134
  %v428 = vxor.u32 %v427, 2147483648
  %v429 = vmul.f32 %v428, 1.442695
  %v430 = vpow.pop %v429
  %v431 = vadd.f32 %v430, 1.0
  %v432 = vrcp.pop %v431
  %v433 = vmul.f32 %v431, %v432
  %v434 = vsub.f32 1.0, %v433
  %v435 = vmul.f32 %v432, %v434
  %v436 = vadd.f32 %v432, %v435
  %vm437 = vweird.f32 %v431
  %vm438 = vweird.f32 %v432
  %vm439 = vmor %vm437, %vm438
  %v440 = vsel %vm439, %v432, %v436
  %v441 = vand.u32 2147483647, %v431
  %vm442 = vcmp.eq.f32.partialorder %v441, 8.507059e+37
  %v443 = vand.u32 %v431, 2147483648
  %v444 = vor.u32 1.1754944e-38, %v443
  %v445 = vsel %vm442, %v444, %v440
  %v446 = vmul.f32 1.0, %v445
  %v447 = vtanh.pop %v427
  %v448 = vmul.f32 %v446, %v391
  %450 = vrot.lane.b32.xlu0 %v447, 64
  %v451 = vpop.permute.xlu0 %450
  %v453 = vmul.f32 %v446, %v451
  %455 = vrot.lane.b32.xlu0 %v453, 32
  %v456 = vpop.permute.xlu0 %455
  %v458 = vadd.f32 %v448, %v456
  %v459 = vtanh.pop %v458
  %461 = vrot.lane.b32.xlu0 %v459, 64
  %v462 = vpop.permute.xlu0 %461
  %v464 = vmul.f32 %v446, %v462
  %466 = vrot.lane.b32.xlu0 %v464, 32
  %v467 = vpop.permute.xlu0 %466
  %s469 = scalar_lea.vmem [#allocation2], 32
  %470 = vst.msk [vmem:[%s469] sm:$0xff] %vm66, %v467
  %v471 = vsel %vm66, %v467, 0
  %473 = vmatpush.msra.mxu0 0.0
  %474 = vmatpush.msra.mxu0 0.0
  %475 = vmatpush.msra.mxu0 0.0
  %476 = vmatpush.msra.mxu0 0.0
  %477 = vmatpush.msra.mxu0 0.0
  %478 = vmatpush.msra.mxu0 0.0
  %479 = vmatpush.msra.mxu0 0.0
  %480 = vmatpush.msra.mxu0 0.0
  %481 = vmatpush.msra.mxu0 0.0
  %482 = vmatpush.msra.mxu0 0.0
  %483 = vmatpush.msra.mxu0 0.0
  %484 = vmatpush.msra.mxu0 0.0
  %485 = vmatpush.msra.mxu0 %v65
  %486 = vmatpush.msra.mxu0 %v64
  %487 = vmatpush.msra.mxu0 %v63
  %488 = vmatpush.msra.mxu0 %v62
  %489 = vmatmul.f32.gmra.mxu0 %v471
  %v490 = vpop.f32.mrf.mxu0
  %v491 = vadd.f32 0.0, %v490
  %492 = vdwg.mxu0
  %v493 = vadd.f32 %v124, %v491
  %v494 = vadd.f32 %v493, %v134
  %v495 = vxor.u32 %v494, 2147483648
  %v496 = vmul.f32 %v495, 1.442695
  %v497 = vpow.pop %v496
  %v498 = vadd.f32 %v497, 1.0
  %v499 = vrcp.pop %v498
  %v500 = vmul.f32 %v498, %v499
  %v501 = vsub.f32 1.0, %v500
  %v502 = vmul.f32 %v499, %v501
  %v503 = vadd.f32 %v499, %v502
  %vm504 = vweird.f32 %v498
  %vm505 = vweird.f32 %v499
  %vm506 = vmor %vm504, %vm505
  %v507 = vsel %vm506, %v499, %v503
  %v508 = vand.u32 2147483647, %v498
  %vm509 = vcmp.eq.f32.partialorder %v508, 8.507059e+37
  %v510 = vand.u32 %v498, 2147483648
  %v511 = vor.u32 1.1754944e-38, %v510
  %v512 = vsel %vm509, %v511, %v507
  %v513 = vmul.f32 1.0, %v512
  %v514 = vtanh.pop %v494
  %v515 = vmul.f32 %v513, %v458
  %517 = vrot.lane.b32.xlu0 %v514, 64
  %v518 = vpop.permute.xlu0 %517
  %v520 = vmul.f32 %v513, %v518
  %522 = vrot.lane.b32.xlu0 %v520, 32
  %v523 = vpop.permute.xlu0 %522
  %v525 = vadd.f32 %v515, %v523
  %v526 = vtanh.pop %v525
  %528 = vrot.lane.b32.xlu0 %v526, 64
  %v529 = vpop.permute.xlu0 %528
  %v531 = vmul.f32 %v513, %v529
  %533 = vrot.lane.b32.xlu0 %v531, 32
  %v534 = vpop.permute.xlu0 %533
  %s536 = scalar_lea.vmem [#allocation2], 40
  %537 = vst.msk [vmem:[%s536] sm:$0xff] %vm66, %v534
  %v538 = vsel %vm66, %v534, 0
  %540 = vmatpush.msra.mxu0 0.0
  %541 = vmatpush.msra.mxu0 0.0
  %542 = vmatpush.msra.mxu0 0.0
  %543 = vmatpush.msra.mxu0 0.0
  %544 = vmatpush.msra.mxu0 0.0
  %545 = vmatpush.msra.mxu0 0.0
  %546 = vmatpush.msra.mxu0 0.0
  %547 = vmatpush.msra.mxu0 0.0
  %548 = vmatpush.msra.mxu0 0.0
  %549 = vmatpush.msra.mxu0 0.0
  %550 = vmatpush.msra.mxu0 0.0
  %551 = vmatpush.msra.mxu0 0.0
  %552 = vmatpush.msra.mxu0 %v65
  %553 = vmatpush.msra.mxu0 %v64
  %554 = vmatpush.msra.mxu0 %v63
  %555 = vmatpush.msra.mxu0 %v62
  %556 = vmatmul.f32.gmra.mxu0 %v538
  %v557 = vpop.f32.mrf.mxu0
  %v558 = vadd.f32 0.0, %v557
  %559 = vdwg.mxu0
  %v560 = vadd.f32 %v127, %v558
  %v561 = vadd.f32 %v560, %v134
  %v562 = vxor.u32 %v561, 2147483648
  %v563 = vmul.f32 %v562, 1.442695
  %v564 = vpow.pop %v563
  %v565 = vadd.f32 %v564, 1.0
  %v566 = vrcp.pop %v565
  %v567 = vmul.f32 %v565, %v566
  %v568 = vsub.f32 1.0, %v567
  %v569 = vmul.f32 %v566, %v568
  %v570 = vadd.f32 %v566, %v569
  %vm571 = vweird.f32 %v565
  %vm572 = vweird.f32 %v566
  %vm573 = vmor %vm571, %vm572
  %v574 = vsel %vm573, %v566, %v570
  %v575 = vand.u32 2147483647, %v565
  %vm576 = vcmp.eq.f32.partialorder %v575, 8.507059e+37
  %v577 = vand.u32 %v565, 2147483648
  %v578 = vor.u32 1.1754944e-38, %v577
  %v579 = vsel %vm576, %v578, %v574
  %v580 = vmul.f32 1.0, %v579
  %v581 = vtanh.pop %v561
  %v582 = vmul.f32 %v580, %v525
  %584 = vrot.lane.b32.xlu0 %v581, 64
  %v585 = vpop.permute.xlu0 %584
  %v587 = vmul.f32 %v580, %v585
  %589 = vrot.lane.b32.xlu0 %v587, 32
  %v590 = vpop.permute.xlu0 %589
  %v592 = vadd.f32 %v582, %v590
  %v593 = vtanh.pop %v592
  %595 = vrot.lane.b32.xlu0 %v593, 64
  %v596 = vpop.permute.xlu0 %595
  %v598 = vmul.f32 %v580, %v596
  %600 = vrot.lane.b32.xlu0 %v598, 32
  %v601 = vpop.permute.xlu0 %600
  %s603 = scalar_lea.vmem [#allocation2], 48
  %604 = vst.msk [vmem:[%s603] sm:$0xff] %vm66, %v601
  %v605 = vsel %vm66, %v601, 0
  %607 = vmatpush.msra.mxu0 0.0
  %608 = vmatpush.msra.mxu0 0.0
  %609 = vmatpush.msra.mxu0 0.0
  %610 = vmatpush.msra.mxu0 0.0
  %611 = vmatpush.msra.mxu0 0.0
  %612 = vmatpush.msra.mxu0 0.0
  %613 = vmatpush.msra.mxu0 0.0
  %614 = vmatpush.msra.mxu0 0.0
  %615 = vmatpush.msra.mxu0 0.0
  %616 = vmatpush.msra.mxu0 0.0
  %617 = vmatpush.msra.mxu0 0.0
  %618 = vmatpush.msra.mxu0 0.0
  %619 = vmatpush.msra.mxu0 %v65
  %620 = vmatpush.msra.mxu0 %v64
  %621 = vmatpush.msra.mxu0 %v63
  %622 = vmatpush.msra.mxu0 %v62
  %623 = vmatmul.f32.gmra.mxu0 %v605
  %v624 = vpop.f32.mrf.mxu0
  %v625 = vadd.f32 0.0, %v624
  %626 = vdwg.mxu0
  %v627 = vadd.f32 %v130, %v625
  %v628 = vadd.f32 %v627, %v134
  %v629 = vxor.u32 %v628, 2147483648
  %v630 = vmul.f32 %v629, 1.442695
  %v631 = vpow.pop %v630
  %v632 = vadd.f32 %v631, 1.0
  %v633 = vrcp.pop %v632
  %v634 = vmul.f32 %v632, %v633
  %v635 = vsub.f32 1.0, %v634
  %v636 = vmul.f32 %v633, %v635
  %v637 = vadd.f32 %v633, %v636
  %vm638 = vweird.f32 %v632
  %vm639 = vweird.f32 %v633
  %vm640 = vmor %vm638, %vm639
  %v641 = vsel %vm640, %v633, %v637
  %v642 = vand.u32 2147483647, %v632
  %vm643 = vcmp.eq.f32.partialorder %v642, 8.507059e+37
  %v644 = vand.u32 %v632, 2147483648
  %v645 = vor.u32 1.1754944e-38, %v644
  %v646 = vsel %vm643, %v645, %v641
  %v647 = vmul.f32 1.0, %v646
  %v648 = vtanh.pop %v628
  %v649 = vmul.f32 %v647, %v592
  %651 = vrot.lane.b32.xlu0 %v648, 64
  %v652 = vpop.permute.xlu0 %651
  %v654 = vmul.f32 %v647, %v652
  %656 = vrot.lane.b32.xlu0 %v654, 32
  %v657 = vpop.permute.xlu0 %656
  %v659 = vadd.f32 %v649, %v657
  %v660 = vtanh.pop %v659
  %662 = vrot.lane.b32.xlu0 %v660, 64
  %v663 = vpop.permute.xlu0 %662
  %v665 = vmul.f32 %v647, %v663
  %667 = vrot.lane.b32.xlu0 %v665, 32
  %v668 = vpop.permute.xlu0 %667
  %s670 = scalar_lea.vmem [#allocation2], 56
  %671 = vst.msk [vmem:[%s670] sm:$0xff] %vm66, %v668
  %v672 = vld [vmem:[%s4] sm:$0xff]
  %v673 = vld [vmem:[%s4 + $0x8] sm:$0xff]
  %v674 = vld [vmem:[%s4 + $0x10] sm:$0xff]
  %v675 = vld [vmem:[%s4 + $0x18] sm:$0xff]
  %v676 = vld [vmem:[%s5] sm:$0xff]
  %v677 = vld [vmem:[%s5 + $0x8] sm:$0xff]
  %v678 = vld [vmem:[%s5 + $0x10] sm:$0xff]
  %v679 = vld [vmem:[%s5 + $0x18] sm:$0xff]
  %680 = vmatpush.msra.mxu0 0.0
  %681 = vmatpush.msra.mxu0 0.0
  %682 = vmatpush.msra.mxu0 0.0
  %683 = vmatpush.msra.mxu0 0.0
  %684 = vmatpush.msra.mxu0 0.0
  %685 = vmatpush.msra.mxu0 0.0
  %686 = vmatpush.msra.mxu0 0.0
  %687 = vmatpush.msra.mxu0 0.0
  %688 = vmatpush.msra.mxu0 0.0
  %689 = vmatpush.msra.mxu0 0.0
  %690 = vmatpush.msra.mxu0 0.0
  %691 = vmatpush.msra.mxu0 0.0
  %692 = vmatpush.msra.mxu0 %v675
  %693 = vmatpush.msra.mxu0 %v674
  %694 = vmatpush.msra.mxu0 %v673
  %695 = vmatpush.msra.mxu0 %v672
  %696 = vmatmul.f32.gmra.mxu0 %v68
  %v697 = vpop.f32.mrf.mxu0
  %v698 = vadd.f32 0.0, %v697
  %699 = vmatmul.f32.gmra.mxu0 %v71
  %v700 = vpop.f32.mrf.mxu0
  %v701 = vadd.f32 0.0, %v700
  %702 = vmatmul.f32.gmra.mxu0 %v74
  %v703 = vpop.f32.mrf.mxu0
  %v704 = vadd.f32 0.0, %v703
  %705 = vmatmul.f32.gmra.mxu0 %v77
  %v706 = vpop.f32.mrf.mxu0
  %v707 = vadd.f32 0.0, %v706
  %708 = vmatmul.f32.gmra.mxu0 %v80
  %v709 = vpop.f32.mrf.mxu0
  %v710 = vadd.f32 0.0, %v709
  %711 = vmatmul.f32.gmra.mxu0 %v83
  %v712 = vpop.f32.mrf.mxu0
  %v713 = vadd.f32 0.0, %v712
  %714 = vmatmul.f32.gmra.mxu0 %v86
  %v715 = vpop.f32.mrf.mxu0
  %v716 = vadd.f32 0.0, %v715
  %717 = vmatmul.f32.gmra.mxu0 %v89
  %v718 = vpop.f32.mrf.mxu0
  %v719 = vadd.f32 0.0, %v718
  %720 = vdwg.mxu0
  %v721 = vld [vmem:[%s6] sm:$0x1]
  %v723 = vperm.slane %v721, 0
  %725 = vmatpush.msra.mxu0 0.0
  %726 = vmatpush.msra.mxu0 0.0
  %727 = vmatpush.msra.mxu0 0.0
  %728 = vmatpush.msra.mxu0 0.0
  %729 = vmatpush.msra.mxu0 0.0
  %730 = vmatpush.msra.mxu0 0.0
  %731 = vmatpush.msra.mxu0 0.0
  %732 = vmatpush.msra.mxu0 0.0
  %733 = vmatpush.msra.mxu0 0.0
  %734 = vmatpush.msra.mxu0 0.0
  %735 = vmatpush.msra.mxu0 0.0
  %736 = vmatpush.msra.mxu0 0.0
  %737 = vmatpush.msra.mxu0 %v679
  %738 = vmatpush.msra.mxu0 %v678
  %739 = vmatpush.msra.mxu0 %v677
  %740 = vmatpush.msra.mxu0 %v676
  %741 = vmatmul.f32.gmra.mxu0 %v137
  %v742 = vpop.f32.mrf.mxu0
  %v743 = vadd.f32 0.0, %v742
  %744 = vdwg.mxu0
  %v745 = vadd.f32 %v719, %v743
  %v746 = vadd.f32 %v745, %v723
  %v747 = vxor.u32 %v746, 2147483648
  %v748 = vmul.f32 %v747, 1.442695
  %v749 = vpow.pop %v748
  %v750 = vadd.f32 %v749, 1.0
  %v751 = vrcp.pop %v750
  %v752 = vmul.f32 %v750, %v751
  %v753 = vsub.f32 1.0, %v752
  %v754 = vmul.f32 %v751, %v753
  %v755 = vadd.f32 %v751, %v754
  %vm756 = vweird.f32 %v750
  %vm757 = vweird.f32 %v751
  %vm758 = vmor %vm756, %vm757
  %v759 = vsel %vm758, %v751, %v755
  %v760 = vand.u32 2147483647, %v750
  %vm761 = vcmp.eq.f32.partialorder %v760, 8.507059e+37
  %v762 = vand.u32 %v750, 2147483648
  %v763 = vor.u32 1.1754944e-38, %v762
  %v764 = vsel %vm761, %v763, %v759
  %v765 = vmul.f32 1.0, %v764
  %v766 = vtanh.pop %v746
  %v767 = vmul.f32 %v765, 0.0
  %769 = vrot.lane.b32.xlu0 %v766, 64
  %v770 = vpop.permute.xlu0 %769
  %v772 = vmul.f32 %v765, %v770
  %774 = vrot.lane.b32.xlu0 %v772, 32
  %v775 = vpop.permute.xlu0 %774
  %v777 = vadd.f32 %v767, %v775
  %v778 = vtanh.pop %v777
  %780 = vrot.lane.b32.xlu0 %v778, 64
  %v781 = vpop.permute.xlu0 %780
  %v783 = vmul.f32 %v765, %v781
  %785 = vrot.lane.b32.xlu0 %v783, 64
  %v786 = vpop.permute.xlu0 %785
  %vm788 = vcmask 523520
  %789 = vst.msk [vmem:[%s670] sm:$0xff] %vm788, %v786
  %790 = vrot.lane.b32.xlu0 %v783, 32
  %v791 = vpop.permute.xlu0 %790
  %v792 = vsel %vm66, %v791, 0
  %794 = vmatpush.msra.mxu0 0.0
  %795 = vmatpush.msra.mxu0 0.0
  %796 = vmatpush.msra.mxu0 0.0
  %797 = vmatpush.msra.mxu0 0.0
  %798 = vmatpush.msra.mxu0 0.0
  %799 = vmatpush.msra.mxu0 0.0
  %800 = vmatpush.msra.mxu0 0.0
  %801 = vmatpush.msra.mxu0 0.0
  %802 = vmatpush.msra.mxu0 0.0
  %803 = vmatpush.msra.mxu0 0.0
  %804 = vmatpush.msra.mxu0 0.0
  %805 = vmatpush.msra.mxu0 0.0
  %806 = vmatpush.msra.mxu0 %v679
  %807 = vmatpush.msra.mxu0 %v678
  %808 = vmatpush.msra.mxu0 %v677
  %809 = vmatpush.msra.mxu0 %v676
  %810 = vmatmul.f32.gmra.mxu0 %v792
  %v811 = vpop.f32.mrf.mxu0
  %v812 = vadd.f32 0.0, %v811
  %813 = vdwg.mxu0
  %v814 = vadd.f32 %v716, %v812
  %v815 = vadd.f32 %v814, %v723
  %v816 = vxor.u32 %v815, 2147483648
  %v817 = vmul.f32 %v816, 1.442695
  %v818 = vpow.pop %v817
  %v819 = vadd.f32 %v818, 1.0
  %v820 = vrcp.pop %v819
  %v821 = vmul.f32 %v819, %v820
  %v822 = vsub.f32 1.0, %v821
  %v823 = vmul.f32 %v820, %v822
  %v824 = vadd.f32 %v820, %v823
  %vm825 = vweird.f32 %v819
  %vm826 = vweird.f32 %v820
  %vm827 = vmor %vm825, %vm826
  %v828 = vsel %vm827, %v820, %v824
  %v829 = vand.u32 2147483647, %v819
  %vm830 = vcmp.eq.f32.partialorder %v829, 8.507059e+37
  %v831 = vand.u32 %v819, 2147483648
  %v832 = vor.u32 1.1754944e-38, %v831
  %v833 = vsel %vm830, %v832, %v828
  %v834 = vmul.f32 1.0, %v833
  %v835 = vtanh.pop %v815
  %v836 = vmul.f32 %v834, %v777
  %838 = vrot.lane.b32.xlu0 %v835, 64
  %v839 = vpop.permute.xlu0 %838
  %v841 = vmul.f32 %v834, %v839
  %843 = vrot.lane.b32.xlu0 %v841, 32
  %v844 = vpop.permute.xlu0 %843
  %v846 = vadd.f32 %v836, %v844
  %v847 = vtanh.pop %v846
  %849 = vrot.lane.b32.xlu0 %v847, 64
  %v850 = vpop.permute.xlu0 %849
  %v852 = vmul.f32 %v834, %v850
  %854 = vrot.lane.b32.xlu0 %v852, 64
  %v855 = vpop.permute.xlu0 %854
  %857 = vst.msk [vmem:[%s603] sm:$0xff] %vm788, %v855
  %858 = vrot.lane.b32.xlu0 %v852, 32
  %v859 = vpop.permute.xlu0 %858
  %v860 = vsel %vm66, %v859, 0
  %862 = vmatpush.msra.mxu0 0.0
  %863 = vmatpush.msra.mxu0 0.0
  %864 = vmatpush.msra.mxu0 0.0
  %865 = vmatpush.msra.mxu0 0.0
  %866 = vmatpush.msra.mxu0 0.0
  %867 = vmatpush.msra.mxu0 0.0
  %868 = vmatpush.msra.mxu0 0.0
  %869 = vmatpush.msra.mxu0 0.0
  %870 = vmatpush.msra.mxu0 0.0
  %871 = vmatpush.msra.mxu0 0.0
  %872 = vmatpush.msra.mxu0 0.0
  %873 = vmatpush.msra.mxu0 0.0
  %874 = vmatpush.msra.mxu0 %v679
  %875 = vmatpush.msra.mxu0 %v678
  %876 = vmatpush.msra.mxu0 %v677
  %877 = vmatpush.msra.mxu0 %v676
  %878 = vmatmul.f32.gmra.mxu0 %v860
  %v879 = vpop.f32.mrf.mxu0
  %v880 = vadd.f32 0.0, %v879
  %881 = vdwg.mxu0
  %v882 = vadd.f32 %v713, %v880
  %v883 = vadd.f32 %v882, %v723
  %v884 = vxor.u32 %v883, 2147483648
  %v885 = vmul.f32 %v884, 1.442695
  %v886 = vpow.pop %v885
  %v887 = vadd.f32 %v886, 1.0
  %v888 = vrcp.pop %v887
  %v889 = vmul.f32 %v887, %v888
  %v890 = vsub.f32 1.0, %v889
  %v891 = vmul.f32 %v888, %v890
  %v892 = vadd.f32 %v888, %v891
  %vm893 = vweird.f32 %v887
  %vm894 = vweird.f32 %v888
  %vm895 = vmor %vm893, %vm894
  %v896 = vsel %vm895, %v888, %v892
  %v897 = vand.u32 2147483647, %v887
  %vm898 = vcmp.eq.f32.partialorder %v897, 8.507059e+37
  %v899 = vand.u32 %v887, 2147483648
  %v900 = vor.u32 1.1754944e-38, %v899
  %v901 = vsel %vm898, %v900, %v896
  %v902 = vmul.f32 1.0, %v901
  %v903 = vtanh.pop %v883
  %v904 = vmul.f32 %v902, %v846
  %906 = vrot.lane.b32.xlu0 %v903, 64
  %v907 = vpop.permute.xlu0 %906
  %v909 = vmul.f32 %v902, %v907
  %911 = vrot.lane.b32.xlu0 %v909, 32
  %v912 = vpop.permute.xlu0 %911
  %v914 = vadd.f32 %v904, %v912
  %v915 = vtanh.pop %v914
  %917 = vrot.lane.b32.xlu0 %v915, 64
  %v918 = vpop.permute.xlu0 %917
  %v920 = vmul.f32 %v902, %v918
  %922 = vrot.lane.b32.xlu0 %v920, 64
  %v923 = vpop.permute.xlu0 %922
  %925 = vst.msk [vmem:[%s536] sm:$0xff] %vm788, %v923
  %926 = vrot.lane.b32.xlu0 %v920, 32
  %v927 = vpop.permute.xlu0 %926
  %v928 = vsel %vm66, %v927, 0
  %930 = vmatpush.msra.mxu0 0.0
  %931 = vmatpush.msra.mxu0 0.0
  %932 = vmatpush.msra.mxu0 0.0
  %933 = vmatpush.msra.mxu0 0.0
  %934 = vmatpush.msra.mxu0 0.0
  %935 = vmatpush.msra.mxu0 0.0
  %936 = vmatpush.msra.mxu0 0.0
  %937 = vmatpush.msra.mxu0 0.0
  %938 = vmatpush.msra.mxu0 0.0
  %939 = vmatpush.msra.mxu0 0.0
  %940 = vmatpush.msra.mxu0 0.0
  %941 = vmatpush.msra.mxu0 0.0
  %942 = vmatpush.msra.mxu0 %v679
  %943 = vmatpush.msra.mxu0 %v678
  %944 = vmatpush.msra.mxu0 %v677
  %945 = vmatpush.msra.mxu0 %v676
  %946 = vmatmul.f32.gmra.mxu0 %v928
  %v947 = vpop.f32.mrf.mxu0
  %v948 = vadd.f32 0.0, %v947
  %949 = vdwg.mxu0
  %v950 = vadd.f32 %v710, %v948
  %v951 = vadd.f32 %v950, %v723
  %v952 = vxor.u32 %v951, 2147483648
  %v953 = vmul.f32 %v952, 1.442695
  %v954 = vpow.pop %v953
  %v955 = vadd.f32 %v954, 1.0
  %v956 = vrcp.pop %v955
  %v957 = vmul.f32 %v955, %v956
  %v958 = vsub.f32 1.0, %v957
  %v959 = vmul.f32 %v956, %v958
  %v960 = vadd.f32 %v956, %v959
  %vm961 = vweird.f32 %v955
  %vm962 = vweird.f32 %v956
  %vm963 = vmor %vm961, %vm962
  %v964 = vsel %vm963, %v956, %v960
  %v965 = vand.u32 2147483647, %v955
  %vm966 = vcmp.eq.f32.partialorder %v965, 8.507059e+37
  %v967 = vand.u32 %v955, 2147483648
  %v968 = vor.u32 1.1754944e-38, %v967
  %v969 = vsel %vm966, %v968, %v964
  %v970 = vmul.f32 1.0, %v969
  %v971 = vtanh.pop %v951
  %v972 = vmul.f32 %v970, %v914
  %974 = vrot.lane.b32.xlu0 %v971, 64
  %v975 = vpop.permute.xlu0 %974
  %v977 = vmul.f32 %v970, %v975
  %979 = vrot.lane.b32.xlu0 %v977, 32
  %v980 = vpop.permute.xlu0 %979
  %v982 = vadd.f32 %v972, %v980
  %v983 = vtanh.pop %v982
  %985 = vrot.lane.b32.xlu0 %v983, 64
  %v986 = vpop.permute.xlu0 %985
  %v988 = vmul.f32 %v970, %v986
  %990 = vrot.lane.b32.xlu0 %v988, 64
  %v991 = vpop.permute.xlu0 %990
  %993 = vst.msk [vmem:[%s469] sm:$0xff] %vm788, %v991
  %994 = vrot.lane.b32.xlu0 %v988, 32
  %v995 = vpop.permute.xlu0 %994
  %v996 = vsel %vm66, %v995, 0
  %998 = vmatpush.msra.mxu0 0.0
  %999 = vmatpush.msra.mxu0 0.0
  %1000 = vmatpush.msra.mxu0 0.0
  %1001 = vmatpush.msra.mxu0 0.0
  %1002 = vmatpush.msra.mxu0 0.0
  %1003 = vmatpush.msra.mxu0 0.0
  %1004 = vmatpush.msra.mxu0 0.0
  %1005 = vmatpush.msra.mxu0 0.0
  %1006 = vmatpush.msra.mxu0 0.0
  %1007 = vmatpush.msra.mxu0 0.0
  %1008 = vmatpush.msra.mxu0 0.0
  %1009 = vmatpush.msra.mxu0 0.0
  %1010 = vmatpush.msra.mxu0 %v679
  %1011 = vmatpush.msra.mxu0 %v678
  %1012 = vmatpush.msra.mxu0 %v677
  %1013 = vmatpush.msra.mxu0 %v676
  %1014 = vmatmul.f32.gmra.mxu0 %v996
  %v1015 = vpop.f32.mrf.mxu0
  %v1016 = vadd.f32 0.0, %v1015
  %1017 = vdwg.mxu0
  %v1018 = vadd.f32 %v707, %v1016
  %v1019 = vadd.f32 %v1018, %v723
  %v1020 = vxor.u32 %v1019, 2147483648
  %v1021 = vmul.f32 %v1020, 1.442695
  %v1022 = vpow.pop %v1021
  %v1023 = vadd.f32 %v1022, 1.0
  %v1024 = vrcp.pop %v1023
  %v1025 = vmul.f32 %v1023, %v1024
  %v1026 = vsub.f32 1.0, %v1025
  %v1027 = vmul.f32 %v1024, %v1026
  %v1028 = vadd.f32 %v1024, %v1027
  %vm1029 = vweird.f32 %v1023
  %vm1030 = vweird.f32 %v1024
  %vm1031 = vmor %vm1029, %vm1030
  %v1032 = vsel %vm1031, %v1024, %v1028
  %v1033 = vand.u32 2147483647, %v1023
  %vm1034 = vcmp.eq.f32.partialorder %v1033, 8.507059e+37
  %v1035 = vand.u32 %v1023, 2147483648
  %v1036 = vor.u32 1.1754944e-38, %v1035
  %v1037 = vsel %vm1034, %v1036, %v1032
  %v1038 = vmul.f32 1.0, %v1037
  %v1039 = vtanh.pop %v1019
  %v1040 = vmul.f32 %v1038, %v982
  %1042 = vrot.lane.b32.xlu0 %v1039, 64
  %v1043 = vpop.permute.xlu0 %1042
  %v1045 = vmul.f32 %v1038, %v1043
  %1047 = vrot.lane.b32.xlu0 %v1045, 32
  %v1048 = vpop.permute.xlu0 %1047
  %v1050 = vadd.f32 %v1040, %v1048
  %v1051 = vtanh.pop %v1050
  %1053 = vrot.lane.b32.xlu0 %v1051, 64
  %v1054 = vpop.permute.xlu0 %1053
  %v1056 = vmul.f32 %v1038, %v1054
  %1058 = vrot.lane.b32.xlu0 %v1056, 64
  %v1059 = vpop.permute.xlu0 %1058
  %1061 = vst.msk [vmem:[%s402] sm:$0xff] %vm788, %v1059
  %1062 = vrot.lane.b32.xlu0 %v1056, 32
  %v1063 = vpop.permute.xlu0 %1062
  %v1064 = vsel %vm66, %v1063, 0
  %1066 = vmatpush.msra.mxu0 0.0
  %1067 = vmatpush.msra.mxu0 0.0
  %1068 = vmatpush.msra.mxu0 0.0
  %1069 = vmatpush.msra.mxu0 0.0
  %1070 = vmatpush.msra.mxu0 0.0
  %1071 = vmatpush.msra.mxu0 0.0
  %1072 = vmatpush.msra.mxu0 0.0
  %1073 = vmatpush.msra.mxu0 0.0
  %1074 = vmatpush.msra.mxu0 0.0
  %1075 = vmatpush.msra.mxu0 0.0
  %1076 = vmatpush.msra.mxu0 0.0
  %1077 = vmatpush.msra.mxu0 0.0
  %1078 = vmatpush.msra.mxu0 %v679
  %1079 = vmatpush.msra.mxu0 %v678
  %1080 = vmatpush.msra.mxu0 %v677
  %1081 = vmatpush.msra.mxu0 %v676
  %1082 = vmatmul.f32.gmra.mxu0 %v1064
  %v1083 = vpop.f32.mrf.mxu0
  %v1084 = vadd.f32 0.0, %v1083
  %1085 = vdwg.mxu0
  %v1086 = vadd.f32 %v704, %v1084
  %v1087 = vadd.f32 %v1086, %v723
  %v1088 = vxor.u32 %v1087, 2147483648
  %v1089 = vmul.f32 %v1088, 1.442695
  %v1090 = vpow.pop %v1089
  %v1091 = vadd.f32 %v1090, 1.0
  %v1092 = vrcp.pop %v1091
  %v1093 = vmul.f32 %v1091, %v1092
  %v1094 = vsub.f32 1.0, %v1093
  %v1095 = vmul.f32 %v1092, %v1094
  %v1096 = vadd.f32 %v1092, %v1095
  %vm1097 = vweird.f32 %v1091
  %vm1098 = vweird.f32 %v1092
  %vm1099 = vmor %vm1097, %vm1098
  %v1100 = vsel %vm1099, %v1092, %v1096
  %v1101 = vand.u32 2147483647, %v1091
  %vm1102 = vcmp.eq.f32.partialorder %v1101, 8.507059e+37
  %v1103 = vand.u32 %v1091, 2147483648
  %v1104 = vor.u32 1.1754944e-38, %v1103
  %v1105 = vsel %vm1102, %v1104, %v1100
  %v1106 = vmul.f32 1.0, %v1105
  %v1107 = vtanh.pop %v1087
  %v1108 = vmul.f32 %v1106, %v1050
  %1110 = vrot.lane.b32.xlu0 %v1107, 64
  %v1111 = vpop.permute.xlu0 %1110
  %v1113 = vmul.f32 %v1106, %v1111
  %1115 = vrot.lane.b32.xlu0 %v1113, 32
  %v1116 = vpop.permute.xlu0 %1115
  %v1118 = vadd.f32 %v1108, %v1116
  %v1119 = vtanh.pop %v1118
  %1121 = vrot.lane.b32.xlu0 %v1119, 64
  %v1122 = vpop.permute.xlu0 %1121
  %v1124 = vmul.f32 %v1106, %v1122
  %1126 = vrot.lane.b32.xlu0 %v1124, 64
  %v1127 = vpop.permute.xlu0 %1126
  %1129 = vst.msk [vmem:[%s335] sm:$0xff] %vm788, %v1127
  %1130 = vrot.lane.b32.xlu0 %v1124, 32
  %v1131 = vpop.permute.xlu0 %1130
  %v1132 = vsel %vm66, %v1131, 0
  %1134 = vmatpush.msra.mxu0 0.0
  %1135 = vmatpush.msra.mxu0 0.0
  %1136 = vmatpush.msra.mxu0 0.0
  %1137 = vmatpush.msra.mxu0 0.0
  %1138 = vmatpush.msra.mxu0 0.0
  %1139 = vmatpush.msra.mxu0 0.0
  %1140 = vmatpush.msra.mxu0 0.0
  %1141 = vmatpush.msra.mxu0 0.0
  %1142 = vmatpush.msra.mxu0 0.0
  %1143 = vmatpush.msra.mxu0 0.0
  %1144 = vmatpush.msra.mxu0 0.0
  %1145 = vmatpush.msra.mxu0 0.0
  %1146 = vmatpush.msra.mxu0 %v679
  %1147 = vmatpush.msra.mxu0 %v678
  %1148 = vmatpush.msra.mxu0 %v677
  %1149 = vmatpush.msra.mxu0 %v676
  %1150 = vmatmul.f32.gmra.mxu0 %v1132
  %v1151 = vpop.f32.mrf.mxu0
  %v1152 = vadd.f32 0.0, %v1151
  %1153 = vdwg.mxu0
  %v1154 = vadd.f32 %v701, %v1152
  %v1155 = vadd.f32 %v1154, %v723
  %v1156 = vxor.u32 %v1155, 2147483648
  %v1157 = vmul.f32 %v1156, 1.442695
  %v1158 = vpow.pop %v1157
  %v1159 = vadd.f32 %v1158, 1.0
  %v1160 = vrcp.pop %v1159
  %v1161 = vmul.f32 %v1159, %v1160
  %v1162 = vsub.f32 1.0, %v1161
  %v1163 = vmul.f32 %v1160, %v1162
  %v1164 = vadd.f32 %v1160, %v1163
  %vm1165 = vweird.f32 %v1159
  %vm1166 = vweird.f32 %v1160
  %vm1167 = vmor %vm1165, %vm1166
  %v1168 = vsel %vm1167, %v1160, %v1164
  %v1169 = vand.u32 2147483647, %v1159
  %vm1170 = vcmp.eq.f32.partialorder %v1169, 8.507059e+37
  %v1171 = vand.u32 %v1159, 2147483648
  %v1172 = vor.u32 1.1754944e-38, %v1171
  %v1173 = vsel %vm1170, %v1172, %v1168
  %v1174 = vmul.f32 1.0, %v1173
  %v1175 = vtanh.pop %v1155
  %v1176 = vmul.f32 %v1174, %v1118
  %1178 = vrot.lane.b32.xlu0 %v1175, 64
  %v1179 = vpop.permute.xlu0 %1178
  %v1181 = vmul.f32 %v1174, %v1179
  %1183 = vrot.lane.b32.xlu0 %v1181, 32
  %v1184 = vpop.permute.xlu0 %1183
  %v1186 = vadd.f32 %v1176, %v1184
  %v1187 = vtanh.pop %v1186
  %1189 = vrot.lane.b32.xlu0 %v1187, 64
  %v1190 = vpop.permute.xlu0 %1189
  %v1192 = vmul.f32 %v1174, %v1190
  %1194 = vrot.lane.b32.xlu0 %v1192, 64
  %v1195 = vpop.permute.xlu0 %1194
  %1197 = vst.msk [vmem:[%s268] sm:$0xff] %vm788, %v1195
  %1198 = vrot.lane.b32.xlu0 %v1192, 32
  %v1199 = vpop.permute.xlu0 %1198
  %v1200 = vsel %vm66, %v1199, 0
  %1202 = vmatpush.msra.mxu0 0.0
  %1203 = vmatpush.msra.mxu0 0.0
  %1204 = vmatpush.msra.mxu0 0.0
  %1205 = vmatpush.msra.mxu0 0.0
  %1206 = vmatpush.msra.mxu0 0.0
  %1207 = vmatpush.msra.mxu0 0.0
  %1208 = vmatpush.msra.mxu0 0.0
  %1209 = vmatpush.msra.mxu0 0.0
  %1210 = vmatpush.msra.mxu0 0.0
  %1211 = vmatpush.msra.mxu0 0.0
  %1212 = vmatpush.msra.mxu0 0.0
  %1213 = vmatpush.msra.mxu0 0.0
  %1214 = vmatpush.msra.mxu0 %v679
  %1215 = vmatpush.msra.mxu0 %v678
  %1216 = vmatpush.msra.mxu0 %v677
  %1217 = vmatpush.msra.mxu0 %v676
  %1218 = vmatmul.f32.gmra.mxu0 %v1200
  %v1219 = vpop.f32.mrf.mxu0
  %v1220 = vadd.f32 0.0, %v1219
  %1221 = vdwg.mxu0
  %v1222 = vadd.f32 %v698, %v1220
  %v1223 = vadd.f32 %v1222, %v723
  %v1224 = vxor.u32 %v1223, 2147483648
  %v1225 = vmul.f32 %v1224, 1.442695
  %v1226 = vpow.pop %v1225
  %v1227 = vadd.f32 %v1226, 1.0
  %v1228 = vrcp.pop %v1227
  %v1229 = vmul.f32 %v1227, %v1228
  %v1230 = vsub.f32 1.0, %v1229
  %v1231 = vmul.f32 %v1228, %v1230
  %v1232 = vadd.f32 %v1228, %v1231
  %vm1233 = vweird.f32 %v1227
  %vm1234 = vweird.f32 %v1228
  %vm1235 = vmor %vm1233, %vm1234
  %v1236 = vsel %vm1235, %v1228, %v1232
  %v1237 = vand.u32 2147483647, %v1227
  %vm1238 = vcmp.eq.f32.partialorder %v1237, 8.507059e+37
  %v1239 = vand.u32 %v1227, 2147483648
  %v1240 = vor.u32 1.1754944e-38, %v1239
  %v1241 = vsel %vm1238, %v1240, %v1236
  %v1242 = vmul.f32 1.0, %v1241
  %v1243 = vtanh.pop %v1223
  %v1244 = vmul.f32 %v1242, %v1186
  %1246 = vrot.lane.b32.xlu0 %v1243, 64
  %v1247 = vpop.permute.xlu0 %1246
  %v1249 = vmul.f32 %v1242, %v1247
  %1251 = vrot.lane.b32.xlu0 %v1249, 32
  %v1252 = vpop.permute.xlu0 %1251
  %v1254 = vadd.f32 %v1244, %v1252
  %v1255 = vtanh.pop %v1254
  %1257 = vrot.lane.b32.xlu0 %v1255, 64
  %v1258 = vpop.permute.xlu0 %1257
  %v1260 = vmul.f32 %v1242, %v1258
  %1262 = vrot.lane.b32.xlu0 %v1260, 64
  %v1263 = vpop.permute.xlu0 %1262
  %1265 = vst.msk [vmem:[#allocation2] sm:$0xff] %vm788, %v1263
  %v1266 = vld [vmem:[#allocation2] sm:$0xff]
  %v1267 = vld [vmem:[#allocation2 + $0x8] sm:$0xff]
  %v1268 = vld [vmem:[#allocation2 + $0x10] sm:$0xff]
  %v1269 = vld [vmem:[#allocation2 + $0x18] sm:$0xff]
  %v1270 = vld [vmem:[#allocation2 + $0x20] sm:$0xff]
  %v1271 = vld [vmem:[#allocation2 + $0x28] sm:$0xff]
  %v1272 = vld [vmem:[#allocation2 + $0x30] sm:$0xff]
  %v1273 = vld [vmem:[#allocation2 + $0x38] sm:$0xff]
  %v1274 = vld [vmem:[%s7] sm:$0xff]
  %v1275 = vld [vmem:[%s7 + $0x8] sm:$0xff]
  %v1276 = vld [vmem:[%s7 + $0x10] sm:$0xff]
  %v1277 = vld [vmem:[%s7 + $0x18] sm:$0xff]
  %v1278 = vld [vmem:[%s7 + $0x20] sm:$0xff]
  %v1279 = vld [vmem:[%s7 + $0x28] sm:$0xff]
  %v1280 = vld [vmem:[%s7 + $0x30] sm:$0xff]
  %v1281 = vld [vmem:[%s7 + $0x38] sm:$0xff]
  %v1282 = vld [vmem:[%s8] sm:$0xff]
  %v1283 = vld [vmem:[%s8 + $0x8] sm:$0xff]
  %v1284 = vld [vmem:[%s8 + $0x10] sm:$0xff]
  %v1285 = vld [vmem:[%s8 + $0x18] sm:$0xff]
  %vm1286 = vcmask 523264
  %v1288 = vsel %vm1286, %v1266, 0
  %v1291 = vsel %vm1286, %v1267, 0
  %v1294 = vsel %vm1286, %v1268, 0
  %v1297 = vsel %vm1286, %v1269, 0
  %v1300 = vsel %vm1286, %v1270, 0
  %v1303 = vsel %vm1286, %v1271, 0
  %v1306 = vsel %vm1286, %v1272, 0
  %v1309 = vsel %vm1286, %v1273, 0
  %1311 = vmatpush.msra.mxu0 0.0
  %1312 = vmatpush.msra.mxu0 0.0
  %1313 = vmatpush.msra.mxu0 0.0
  %1314 = vmatpush.msra.mxu0 0.0
  %1315 = vmatpush.msra.mxu0 0.0
  %1316 = vmatpush.msra.mxu0 0.0
  %1317 = vmatpush.msra.mxu0 0.0
  %1318 = vmatpush.msra.mxu0 0.0
  %1319 = vmatpush.msra.mxu0 %v1281
  %1320 = vmatpush.msra.mxu0 %v1280
  %1321 = vmatpush.msra.mxu0 %v1279
  %1322 = vmatpush.msra.mxu0 %v1278
  %1323 = vmatpush.msra.mxu0 %v1277
  %1324 = vmatpush.msra.mxu0 %v1276
  %1325 = vmatpush.msra.mxu0 %v1275
  %1326 = vmatpush.msra.mxu0 %v1274
  %1327 = vmatmul.f32.gmra.mxu0 %v1288
  %v1328 = vpop.f32.mrf.mxu0
  %v1329 = vadd.f32 0.0, %v1328
  %1330 = vmatmul.f32.gmra.mxu0 %v1291
  %v1331 = vpop.f32.mrf.mxu0
  %v1332 = vadd.f32 0.0, %v1331
  %1333 = vmatmul.f32.gmra.mxu0 %v1294
  %v1334 = vpop.f32.mrf.mxu0
  %v1335 = vadd.f32 0.0, %v1334
  %1336 = vmatmul.f32.gmra.mxu0 %v1297
  %v1337 = vpop.f32.mrf.mxu0
  %v1338 = vadd.f32 0.0, %v1337
  %1339 = vmatmul.f32.gmra.mxu0 %v1300
  %v1340 = vpop.f32.mrf.mxu0
  %v1341 = vadd.f32 0.0, %v1340
  %1342 = vmatmul.f32.gmra.mxu0 %v1303
  %v1343 = vpop.f32.mrf.mxu0
  %v1344 = vadd.f32 0.0, %v1343
  %1345 = vmatmul.f32.gmra.mxu0 %v1306
  %v1346 = vpop.f32.mrf.mxu0
  %v1347 = vadd.f32 0.0, %v1346
  %1348 = vmatmul.f32.gmra.mxu0 %v1309
  %v1349 = vpop.f32.mrf.mxu0
  %v1350 = vadd.f32 0.0, %v1349
  %1351 = vdwg.mxu0
  %v1352 = vld [vmem:[%s9] sm:$0x1]
  %v1354 = vperm.slane %v1352, 0
  %1356 = vmatpush.msra.mxu0 0.0
  %1357 = vmatpush.msra.mxu0 0.0
  %1358 = vmatpush.msra.mxu0 0.0
  %1359 = vmatpush.msra.mxu0 0.0
  %1360 = vmatpush.msra.mxu0 0.0
  %1361 = vmatpush.msra.mxu0 0.0
  %1362 = vmatpush.msra.mxu0 0.0
  %1363 = vmatpush.msra.mxu0 0.0
  %1364 = vmatpush.msra.mxu0 0.0
  %1365 = vmatpush.msra.mxu0 0.0
  %1366 = vmatpush.msra.mxu0 0.0
  %1367 = vmatpush.msra.mxu0 0.0
  %1368 = vmatpush.msra.mxu0 %v1285
  %1369 = vmatpush.msra.mxu0 %v1284
  %1370 = vmatpush.msra.mxu0 %v1283
  %1371 = vmatpush.msra.mxu0 %v1282
  %1372 = vmatmul.f32.gmra.mxu0 %v137
  %v1373 = vpop.f32.mrf.mxu0
  %v1374 = vadd.f32 0.0, %v1373
  %1375 = vdwg.mxu0
  %v1376 = vadd.f32 %v1329, %v1374
  %v1377 = vadd.f32 %v1376, %v1354
  %v1378 = vxor.u32 %v1377, 2147483648
  %v1379 = vmul.f32 %v1378, 1.442695
  %v1380 = vpow.pop %v1379
  %v1381 = vadd.f32 %v1380, 1.0
  %v1382 = vrcp.pop %v1381
  %v1383 = vmul.f32 %v1381, %v1382
  %v1384 = vsub.f32 1.0, %v1383
  %v1385 = vmul.f32 %v1382, %v1384
  %v1386 = vadd.f32 %v1382, %v1385
  %vm1387 = vweird.f32 %v1381
  %vm1388 = vweird.f32 %v1382
  %vm1389 = vmor %vm1387, %vm1388
  %v1390 = vsel %vm1389, %v1382, %v1386
  %v1391 = vand.u32 2147483647, %v1381
  %vm1392 = vcmp.eq.f32.partialorder %v1391, 8.507059e+37
  %v1393 = vand.u32 %v1381, 2147483648
  %v1394 = vor.u32 1.1754944e-38, %v1393
  %v1395 = vsel %vm1392, %v1394, %v1390
  %v1396 = vmul.f32 1.0, %v1395
  %v1397 = vtanh.pop %v1377
  %v1398 = vmul.f32 %v1396, 0.0
  %1400 = vrot.lane.b32.xlu0 %v1397, 64
  %v1401 = vpop.permute.xlu0 %1400
  %v1403 = vmul.f32 %v1396, %v1401
  %1405 = vrot.lane.b32.xlu0 %v1403, 32
  %v1406 = vpop.permute.xlu0 %1405
  %v1408 = vadd.f32 %v1398, %v1406
  %v1409 = vtanh.pop %v1408
  %1411 = vrot.lane.b32.xlu0 %v1409, 64
  %v1412 = vpop.permute.xlu0 %1411
  %v1414 = vmul.f32 %v1396, %v1412
  %1416 = vrot.lane.b32.xlu0 %v1414, 32
  %v1417 = vpop.permute.xlu0 %1416
  %1419 = vst.msk [vmem:[#allocation3] sm:$0xff] %vm66, %v1417
  %v1420 = vsel %vm66, %v1417, 0
  %1422 = vmatpush.msra.mxu0 0.0
  %1423 = vmatpush.msra.mxu0 0.0
  %1424 = vmatpush.msra.mxu0 0.0
  %1425 = vmatpush.msra.mxu0 0.0
  %1426 = vmatpush.msra.mxu0 0.0
  %1427 = vmatpush.msra.mxu0 0.0
  %1428 = vmatpush.msra.mxu0 0.0
  %1429 = vmatpush.msra.mxu0 0.0
  %1430 = vmatpush.msra.mxu0 0.0
  %1431 = vmatpush.msra.mxu0 0.0
  %1432 = vmatpush.msra.mxu0 0.0
  %1433 = vmatpush.msra.mxu0 0.0
  %1434 = vmatpush.msra.mxu0 %v1285
  %1435 = vmatpush.msra.mxu0 %v1284
  %1436 = vmatpush.msra.mxu0 %v1283
  %1437 = vmatpush.msra.mxu0 %v1282
  %1438 = vmatmul.f32.gmra.mxu0 %v1420
  %v1439 = vpop.f32.mrf.mxu0
  %v1440 = vadd.f32 0.0, %v1439
  %1441 = vdwg.mxu0
  %v1442 = vadd.f32 %v1332, %v1440
  %v1443 = vadd.f32 %v1442, %v1354
  %v1444 = vxor.u32 %v1443, 2147483648
  %v1445 = vmul.f32 %v1444, 1.442695
  %v1446 = vpow.pop %v1445
  %v1447 = vadd.f32 %v1446, 1.0
  %v1448 = vrcp.pop %v1447
  %v1449 = vmul.f32 %v1447, %v1448
  %v1450 = vsub.f32 1.0, %v1449
  %v1451 = vmul.f32 %v1448, %v1450
  %v1452 = vadd.f32 %v1448, %v1451
  %vm1453 = vweird.f32 %v1447
  %vm1454 = vweird.f32 %v1448
  %vm1455 = vmor %vm1453, %vm1454
  %v1456 = vsel %vm1455, %v1448, %v1452
  %v1457 = vand.u32 2147483647, %v1447
  %vm1458 = vcmp.eq.f32.partialorder %v1457, 8.507059e+37
  %v1459 = vand.u32 %v1447, 2147483648
  %v1460 = vor.u32 1.1754944e-38, %v1459
  %v1461 = vsel %vm1458, %v1460, %v1456
  %v1462 = vmul.f32 1.0, %v1461
  %v1463 = vtanh.pop %v1443
  %v1464 = vmul.f32 %v1462, %v1408
  %1466 = vrot.lane.b32.xlu0 %v1463, 64
  %v1467 = vpop.permute.xlu0 %1466
  %v1469 = vmul.f32 %v1462, %v1467
  %1471 = vrot.lane.b32.xlu0 %v1469, 32
  %v1472 = vpop.permute.xlu0 %1471
  %v1474 = vadd.f32 %v1464, %v1472
  %v1475 = vtanh.pop %v1474
  %1477 = vrot.lane.b32.xlu0 %v1475, 64
  %v1478 = vpop.permute.xlu0 %1477
  %v1480 = vmul.f32 %v1462, %v1478
  %1482 = vrot.lane.b32.xlu0 %v1480, 32
  %v1483 = vpop.permute.xlu0 %1482
  %s1485 = scalar_lea.vmem [#allocation3], 8
  %1486 = vst.msk [vmem:[%s1485] sm:$0xff] %vm66, %v1483
  %v1487 = vsel %vm66, %v1483, 0
  %1489 = vmatpush.msra.mxu0 0.0
  %1490 = vmatpush.msra.mxu0 0.0
  %1491 = vmatpush.msra.mxu0 0.0
  %1492 = vmatpush.msra.mxu0 0.0
  %1493 = vmatpush.msra.mxu0 0.0
  %1494 = vmatpush.msra.mxu0 0.0
  %1495 = vmatpush.msra.mxu0 0.0
  %1496 = vmatpush.msra.mxu0 0.0
  %1497 = vmatpush.msra.mxu0 0.0
  %1498 = vmatpush.msra.mxu0 0.0
  %1499 = vmatpush.msra.mxu0 0.0
  %1500 = vmatpush.msra.mxu0 0.0
  %1501 = vmatpush.msra.mxu0 %v1285
  %1502 = vmatpush.msra.mxu0 %v1284
  %1503 = vmatpush.msra.mxu0 %v1283
  %1504 = vmatpush.msra.mxu0 %v1282
  %1505 = vmatmul.f32.gmra.mxu0 %v1487
  %v1506 = vpop.f32.mrf.mxu0
  %v1507 = vadd.f32 0.0, %v1506
  %1508 = vdwg.mxu0
  %v1509 = vadd.f32 %v1335, %v1507
  %v1510 = vadd.f32 %v1509, %v1354
  %v1511 = vxor.u32 %v1510, 2147483648
  %v1512 = vmul.f32 %v1511, 1.442695
  %v1513 = vpow.pop %v1512
  %v1514 = vadd.f32 %v1513, 1.0
  %v1515 = vrcp.pop %v1514
  %v1516 = vmul.f32 %v1514, %v1515
  %v1517 = vsub.f32 1.0, %v1516
  %v1518 = vmul.f32 %v1515, %v1517
  %v1519 = vadd.f32 %v1515, %v1518
  %vm1520 = vweird.f32 %v1514
  %vm1521 = vweird.f32 %v1515
  %vm1522 = vmor %vm1520, %vm1521
  %v1523 = vsel %vm1522, %v1515, %v1519
  %v1524 = vand.u32 2147483647, %v1514
  %vm1525 = vcmp.eq.f32.partialorder %v1524, 8.507059e+37
  %v1526 = vand.u32 %v1514, 2147483648
  %v1527 = vor.u32 1.1754944e-38, %v1526
  %v1528 = vsel %vm1525, %v1527, %v1523
  %v1529 = vmul.f32 1.0, %v1528
  %v1530 = vtanh.pop %v1510
  %v1531 = vmul.f32 %v1529, %v1474
  %1533 = vrot.lane.b32.xlu0 %v1530, 64
  %v1534 = vpop.permute.xlu0 %1533
  %v1536 = vmul.f32 %v1529, %v1534
  %1538 = vrot.lane.b32.xlu0 %v1536, 32
  %v1539 = vpop.permute.xlu0 %1538
  %v1541 = vadd.f32 %v1531, %v1539
  %v1542 = vtanh.pop %v1541
  %1544 = vrot.lane.b32.xlu0 %v1542, 64
  %v1545 = vpop.permute.xlu0 %1544
  %v1547 = vmul.f32 %v1529, %v1545
  %1549 = vrot.lane.b32.xlu0 %v1547, 32
  %v1550 = vpop.permute.xlu0 %1549
  %s1552 = scalar_lea.vmem [#allocation3], 16
  %1553 = vst.msk [vmem:[%s1552] sm:$0xff] %vm66, %v1550
  %v1554 = vsel %vm66, %v1550, 0
  %1556 = vmatpush.msra.mxu0 0.0
  %1557 = vmatpush.msra.mxu0 0.0
  %1558 = vmatpush.msra.mxu0 0.0
  %1559 = vmatpush.msra.mxu0 0.0
  %1560 = vmatpush.msra.mxu0 0.0
  %1561 = vmatpush.msra.mxu0 0.0
  %1562 = vmatpush.msra.mxu0 0.0
  %1563 = vmatpush.msra.mxu0 0.0
  %1564 = vmatpush.msra.mxu0 0.0
  %1565 = vmatpush.msra.mxu0 0.0
  %1566 = vmatpush.msra.mxu0 0.0
  %1567 = vmatpush.msra.mxu0 0.0
  %1568 = vmatpush.msra.mxu0 %v1285
  %1569 = vmatpush.msra.mxu0 %v1284
  %1570 = vmatpush.msra.mxu0 %v1283
  %1571 = vmatpush.msra.mxu0 %v1282
  %1572 = vmatmul.f32.gmra.mxu0 %v1554
  %v1573 = vpop.f32.mrf.mxu0
  %v1574 = vadd.f32 0.0, %v1573
  %1575 = vdwg.mxu0
  %v1576 = vadd.f32 %v1338, %v1574
  %v1577 = vadd.f32 %v1576, %v1354
  %v1578 = vxor.u32 %v1577, 2147483648
  %v1579 = vmul.f32 %v1578, 1.442695
  %v1580 = vpow.pop %v1579
  %v1581 = vadd.f32 %v1580, 1.0
  %v1582 = vrcp.pop %v1581
  %v1583 = vmul.f32 %v1581, %v1582
  %v1584 = vsub.f32 1.0, %v1583
  %v1585 = vmul.f32 %v1582, %v1584
  %v1586 = vadd.f32 %v1582, %v1585
  %vm1587 = vweird.f32 %v1581
  %vm1588 = vweird.f32 %v1582
  %vm1589 = vmor %vm1587, %vm1588
  %v1590 = vsel %vm1589, %v1582, %v1586
  %v1591 = vand.u32 2147483647, %v1581
  %vm1592 = vcmp.eq.f32.partialorder %v1591, 8.507059e+37
  %v1593 = vand.u32 %v1581, 2147483648
  %v1594 = vor.u32 1.1754944e-38, %v1593
  %v1595 = vsel %vm1592, %v1594, %v1590
  %v1596 = vmul.f32 1.0, %v1595
  %v1597 = vtanh.pop %v1577
  %v1598 = vmul.f32 %v1596, %v1541
  %1600 = vrot.lane.b32.xlu0 %v1597, 64
  %v1601 = vpop.permute.xlu0 %1600
  %v1603 = vmul.f32 %v1596, %v1601
  %1605 = vrot.lane.b32.xlu0 %v1603, 32
  %v1606 = vpop.permute.xlu0 %1605
  %v1608 = vadd.f32 %v1598, %v1606
  %v1609 = vtanh.pop %v1608
  %1611 = vrot.lane.b32.xlu0 %v1609, 64
  %v1612 = vpop.permute.xlu0 %1611
  %v1614 = vmul.f32 %v1596, %v1612
  %1616 = vrot.lane.b32.xlu0 %v1614, 32
  %v1617 = vpop.permute.xlu0 %1616
  %s1619 = scalar_lea.vmem [#allocation3], 24
  %1620 = vst.msk [vmem:[%s1619] sm:$0xff] %vm66, %v1617
  %v1621 = vsel %vm66, %v1617, 0
  %1623 = vmatpush.msra.mxu0 0.0
  %1624 = vmatpush.msra.mxu0 0.0
  %1625 = vmatpush.msra.mxu0 0.0
  %1626 = vmatpush.msra.mxu0 0.0
  %1627 = vmatpush.msra.mxu0 0.0
  %1628 = vmatpush.msra.mxu0 0.0
  %1629 = vmatpush.msra.mxu0 0.0
  %1630 = vmatpush.msra.mxu0 0.0
  %1631 = vmatpush.msra.mxu0 0.0
  %1632 = vmatpush.msra.mxu0 0.0
  %1633 = vmatpush.msra.mxu0 0.0
  %1634 = vmatpush.msra.mxu0 0.0
  %1635 = vmatpush.msra.mxu0 %v1285
  %1636 = vmatpush.msra.mxu0 %v1284
  %1637 = vmatpush.msra.mxu0 %v1283
  %1638 = vmatpush.msra.mxu0 %v1282
  %1639 = vmatmul.f32.gmra.mxu0 %v1621
  %v1640 = vpop.f32.mrf.mxu0
  %v1641 = vadd.f32 0.0, %v1640
  %1642 = vdwg.mxu0
  %v1643 = vadd.f32 %v1341, %v1641
  %v1644 = vadd.f32 %v1643, %v1354
  %v1645 = vxor.u32 %v1644, 2147483648
  %v1646 = vmul.f32 %v1645, 1.442695
  %v1647 = vpow.pop %v1646
  %v1648 = vadd.f32 %v1647, 1.0
  %v1649 = vrcp.pop %v1648
  %v1650 = vmul.f32 %v1648, %v1649
  %v1651 = vsub.f32 1.0, %v1650
  %v1652 = vmul.f32 %v1649, %v1651
  %v1653 = vadd.f32 %v1649, %v1652
  %vm1654 = vweird.f32 %v1648
  %vm1655 = vweird.f32 %v1649
  %vm1656 = vmor %vm1654, %vm1655
  %v1657 = vsel %vm1656, %v1649, %v1653
  %v1658 = vand.u32 2147483647, %v1648
  %vm1659 = vcmp.eq.f32.partialorder %v1658, 8.507059e+37
  %v1660 = vand.u32 %v1648, 2147483648
  %v1661 = vor.u32 1.1754944e-38, %v1660
  %v1662 = vsel %vm1659, %v1661, %v1657
  %v1663 = vmul.f32 1.0, %v1662
  %v1664 = vtanh.pop %v1644
  %v1665 = vmul.f32 %v1663, %v1608
  %1667 = vrot.lane.b32.xlu0 %v1664, 64
  %v1668 = vpop.permute.xlu0 %1667
  %v1670 = vmul.f32 %v1663, %v1668
  %1672 = vrot.lane.b32.xlu0 %v1670, 32
  %v1673 = vpop.permute.xlu0 %1672
  %v1675 = vadd.f32 %v1665, %v1673
  %v1676 = vtanh.pop %v1675
  %1678 = vrot.lane.b32.xlu0 %v1676, 64
  %v1679 = vpop.permute.xlu0 %1678
  %v1681 = vmul.f32 %v1663, %v1679
  %1683 = vrot.lane.b32.xlu0 %v1681, 32
  %v1684 = vpop.permute.xlu0 %1683
  %s1686 = scalar_lea.vmem [#allocation3], 32
  %1687 = vst.msk [vmem:[%s1686] sm:$0xff] %vm66, %v1684
  %v1688 = vsel %vm66, %v1684, 0
  %1690 = vmatpush.msra.mxu0 0.0
  %1691 = vmatpush.msra.mxu0 0.0
  %1692 = vmatpush.msra.mxu0 0.0
  %1693 = vmatpush.msra.mxu0 0.0
  %1694 = vmatpush.msra.mxu0 0.0
  %1695 = vmatpush.msra.mxu0 0.0
  %1696 = vmatpush.msra.mxu0 0.0
  %1697 = vmatpush.msra.mxu0 0.0
  %1698 = vmatpush.msra.mxu0 0.0
  %1699 = vmatpush.msra.mxu0 0.0
  %1700 = vmatpush.msra.mxu0 0.0
  %1701 = vmatpush.msra.mxu0 0.0
  %1702 = vmatpush.msra.mxu0 %v1285
  %1703 = vmatpush.msra.mxu0 %v1284
  %1704 = vmatpush.msra.mxu0 %v1283
  %1705 = vmatpush.msra.mxu0 %v1282
  %1706 = vmatmul.f32.gmra.mxu0 %v1688
  %v1707 = vpop.f32.mrf.mxu0
  %v1708 = vadd.f32 0.0, %v1707
  %1709 = vdwg.mxu0
  %v1710 = vadd.f32 %v1344, %v1708
  %v1711 = vadd.f32 %v1710, %v1354
  %v1712 = vxor.u32 %v1711, 2147483648
  %v1713 = vmul.f32 %v1712, 1.442695
  %v1714 = vpow.pop %v1713
  %v1715 = vadd.f32 %v1714, 1.0
  %v1716 = vrcp.pop %v1715
  %v1717 = vmul.f32 %v1715, %v1716
  %v1718 = vsub.f32 1.0, %v1717
  %v1719 = vmul.f32 %v1716, %v1718
  %v1720 = vadd.f32 %v1716, %v1719
  %vm1721 = vweird.f32 %v1715
  %vm1722 = vweird.f32 %v1716
  %vm1723 = vmor %vm1721, %vm1722
  %v1724 = vsel %vm1723, %v1716, %v1720
  %v1725 = vand.u32 2147483647, %v1715
  %vm1726 = vcmp.eq.f32.partialorder %v1725, 8.507059e+37
  %v1727 = vand.u32 %v1715, 2147483648
  %v1728 = vor.u32 1.1754944e-38, %v1727
  %v1729 = vsel %vm1726, %v1728, %v1724
  %v1730 = vmul.f32 1.0, %v1729
  %v1731 = vtanh.pop %v1711
  %v1732 = vmul.f32 %v1730, %v1675
  %1734 = vrot.lane.b32.xlu0 %v1731, 64
  %v1735 = vpop.permute.xlu0 %1734
  %v1737 = vmul.f32 %v1730, %v1735
  %1739 = vrot.lane.b32.xlu0 %v1737, 32
  %v1740 = vpop.permute.xlu0 %1739
  %v1742 = vadd.f32 %v1732, %v1740
  %v1743 = vtanh.pop %v1742
  %1745 = vrot.lane.b32.xlu0 %v1743, 64
  %v1746 = vpop.permute.xlu0 %1745
  %v1748 = vmul.f32 %v1730, %v1746
  %1750 = vrot.lane.b32.xlu0 %v1748, 32
  %v1751 = vpop.permute.xlu0 %1750
  %s1753 = scalar_lea.vmem [#allocation3], 40
  %1754 = vst.msk [vmem:[%s1753] sm:$0xff] %vm66, %v1751
  %v1755 = vsel %vm66, %v1751, 0
  %1757 = vmatpush.msra.mxu0 0.0
  %1758 = vmatpush.msra.mxu0 0.0
  %1759 = vmatpush.msra.mxu0 0.0
  %1760 = vmatpush.msra.mxu0 0.0
  %1761 = vmatpush.msra.mxu0 0.0
  %1762 = vmatpush.msra.mxu0 0.0
  %1763 = vmatpush.msra.mxu0 0.0
  %1764 = vmatpush.msra.mxu0 0.0
  %1765 = vmatpush.msra.mxu0 0.0
  %1766 = vmatpush.msra.mxu0 0.0
  %1767 = vmatpush.msra.mxu0 0.0
  %1768 = vmatpush.msra.mxu0 0.0
  %1769 = vmatpush.msra.mxu0 %v1285
  %1770 = vmatpush.msra.mxu0 %v1284
  %1771 = vmatpush.msra.mxu0 %v1283
  %1772 = vmatpush.msra.mxu0 %v1282
  %1773 = vmatmul.f32.gmra.mxu0 %v1755
  %v1774 = vpop.f32.mrf.mxu0
  %v1775 = vadd.f32 0.0, %v1774
  %1776 = vdwg.mxu0
  %v1777 = vadd.f32 %v1347, %v1775
  %v1778 = vadd.f32 %v1777, %v1354
  %v1779 = vxor.u32 %v1778, 2147483648
  %v1780 = vmul.f32 %v1779, 1.442695
  %v1781 = vpow.pop %v1780
  %v1782 = vadd.f32 %v1781, 1.0
  %v1783 = vrcp.pop %v1782
  %v1784 = vmul.f32 %v1782, %v1783
  %v1785 = vsub.f32 1.0, %v1784
  %v1786 = vmul.f32 %v1783, %v1785
  %v1787 = vadd.f32 %v1783, %v1786
  %vm1788 = vweird.f32 %v1782
  %vm1789 = vweird.f32 %v1783
  %vm1790 = vmor %vm1788, %vm1789
  %v1791 = vsel %vm1790, %v1783, %v1787
  %v1792 = vand.u32 2147483647, %v1782
  %vm1793 = vcmp.eq.f32.partialorder %v1792, 8.507059e+37
  %v1794 = vand.u32 %v1782, 2147483648
  %v1795 = vor.u32 1.1754944e-38, %v1794
  %v1796 = vsel %vm1793, %v1795, %v1791
  %v1797 = vmul.f32 1.0, %v1796
  %v1798 = vtanh.pop %v1778
  %v1799 = vmul.f32 %v1797, %v1742
  %1801 = vrot.lane.b32.xlu0 %v1798, 64
  %v1802 = vpop.permute.xlu0 %1801
  %v1804 = vmul.f32 %v1797, %v1802
  %1806 = vrot.lane.b32.xlu0 %v1804, 32
  %v1807 = vpop.permute.xlu0 %1806
  %v1809 = vadd.f32 %v1799, %v1807
  %v1810 = vtanh.pop %v1809
  %1812 = vrot.lane.b32.xlu0 %v1810, 64
  %v1813 = vpop.permute.xlu0 %1812
  %v1815 = vmul.f32 %v1797, %v1813
  %1817 = vrot.lane.b32.xlu0 %v1815, 32
  %v1818 = vpop.permute.xlu0 %1817
  %s1820 = scalar_lea.vmem [#allocation3], 48
  %1821 = vst.msk [vmem:[%s1820] sm:$0xff] %vm66, %v1818
  %v1822 = vsel %vm66, %v1818, 0
  %1824 = vmatpush.msra.mxu0 0.0
  %1825 = vmatpush.msra.mxu0 0.0
  %1826 = vmatpush.msra.mxu0 0.0
  %1827 = vmatpush.msra.mxu0 0.0
  %1828 = vmatpush.msra.mxu0 0.0
  %1829 = vmatpush.msra.mxu0 0.0
  %1830 = vmatpush.msra.mxu0 0.0
  %1831 = vmatpush.msra.mxu0 0.0
  %1832 = vmatpush.msra.mxu0 0.0
  %1833 = vmatpush.msra.mxu0 0.0
  %1834 = vmatpush.msra.mxu0 0.0
  %1835 = vmatpush.msra.mxu0 0.0
  %1836 = vmatpush.msra.mxu0 %v1285
  %1837 = vmatpush.msra.mxu0 %v1284
  %1838 = vmatpush.msra.mxu0 %v1283
  %1839 = vmatpush.msra.mxu0 %v1282
  %1840 = vmatmul.f32.gmra.mxu0 %v1822
  %v1841 = vpop.f32.mrf.mxu0
  %v1842 = vadd.f32 0.0, %v1841
  %1843 = vdwg.mxu0
  %v1844 = vadd.f32 %v1350, %v1842
  %v1845 = vadd.f32 %v1844, %v1354
  %v1846 = vxor.u32 %v1845, 2147483648
  %v1847 = vmul.f32 %v1846, 1.442695
  %v1848 = vpow.pop %v1847
  %v1849 = vadd.f32 %v1848, 1.0
  %v1850 = vrcp.pop %v1849
  %v1851 = vmul.f32 %v1849, %v1850
  %v1852 = vsub.f32 1.0, %v1851
  %v1853 = vmul.f32 %v1850, %v1852
  %v1854 = vadd.f32 %v1850, %v1853
  %vm1855 = vweird.f32 %v1849
  %vm1856 = vweird.f32 %v1850
  %vm1857 = vmor %vm1855, %vm1856
  %v1858 = vsel %vm1857, %v1850, %v1854
  %v1859 = vand.u32 2147483647, %v1849
  %vm1860 = vcmp.eq.f32.partialorder %v1859, 8.507059e+37
  %v1861 = vand.u32 %v1849, 2147483648
  %v1862 = vor.u32 1.1754944e-38, %v1861
  %v1863 = vsel %vm1860, %v1862, %v1858
  %v1864 = vmul.f32 1.0, %v1863
  %v1865 = vtanh.pop %v1845
  %v1866 = vmul.f32 %v1864, %v1809
  %1868 = vrot.lane.b32.xlu0 %v1865, 64
  %v1869 = vpop.permute.xlu0 %1868
  %v1871 = vmul.f32 %v1864, %v1869
  %1873 = vrot.lane.b32.xlu0 %v1871, 32
  %v1874 = vpop.permute.xlu0 %1873
  %v1876 = vadd.f32 %v1866, %v1874
  %v1877 = vtanh.pop %v1876
  %1879 = vrot.lane.b32.xlu0 %v1877, 64
  %v1880 = vpop.permute.xlu0 %1879
  %v1882 = vmul.f32 %v1864, %v1880
  %1884 = vrot.lane.b32.xlu0 %v1882, 32
  %v1885 = vpop.permute.xlu0 %1884
  %s1887 = scalar_lea.vmem [#allocation3], 56
  %1888 = vst.msk [vmem:[%s1887] sm:$0xff] %vm66, %v1885
  %v1889 = vld [vmem:[%s10] sm:$0xff]
  %v1890 = vld [vmem:[%s10 + $0x8] sm:$0xff]
  %v1891 = vld [vmem:[%s10 + $0x10] sm:$0xff]
  %v1892 = vld [vmem:[%s10 + $0x18] sm:$0xff]
  %v1893 = vld [vmem:[%s10 + $0x20] sm:$0xff]
  %v1894 = vld [vmem:[%s10 + $0x28] sm:$0xff]
  %v1895 = vld [vmem:[%s10 + $0x30] sm:$0xff]
  %v1896 = vld [vmem:[%s10 + $0x38] sm:$0xff]
  %v1897 = vld [vmem:[%s11] sm:$0xff]
  %v1898 = vld [vmem:[%s11 + $0x8] sm:$0xff]
  %v1899 = vld [vmem:[%s11 + $0x10] sm:$0xff]
  %v1900 = vld [vmem:[%s11 + $0x18] sm:$0xff]
  %1901 = vmatpush.msra.mxu0 0.0
  %1902 = vmatpush.msra.mxu0 0.0
  %1903 = vmatpush.msra.mxu0 0.0
  %1904 = vmatpush.msra.mxu0 0.0
  %1905 = vmatpush.msra.mxu0 0.0
  %1906 = vmatpush.msra.mxu0 0.0
  %1907 = vmatpush.msra.mxu0 0.0
  %1908 = vmatpush.msra.mxu0 0.0
  %1909 = vmatpush.msra.mxu0 %v1896
  %1910 = vmatpush.msra.mxu0 %v1895
  %1911 = vmatpush.msra.mxu0 %v1894
  %1912 = vmatpush.msra.mxu0 %v1893
  %1913 = vmatpush.msra.mxu0 %v1892
  %1914 = vmatpush.msra.mxu0 %v1891
  %1915 = vmatpush.msra.mxu0 %v1890
  %1916 = vmatpush.msra.mxu0 %v1889
  %1917 = vmatmul.f32.gmra.mxu0 %v1288
  %v1918 = vpop.f32.mrf.mxu0
  %v1919 = vadd.f32 0.0, %v1918
  %1920 = vmatmul.f32.gmra.mxu0 %v1291
  %v1921 = vpop.f32.mrf.mxu0
  %v1922 = vadd.f32 0.0, %v1921
  %1923 = vmatmul.f32.gmra.mxu0 %v1294
  %v1924 = vpop.f32.mrf.mxu0
  %v1925 = vadd.f32 0.0, %v1924
  %1926 = vmatmul.f32.gmra.mxu0 %v1297
  %v1927 = vpop.f32.mrf.mxu0
  %v1928 = vadd.f32 0.0, %v1927
  %1929 = vmatmul.f32.gmra.mxu0 %v1300
  %v1930 = vpop.f32.mrf.mxu0
  %v1931 = vadd.f32 0.0, %v1930
  %1932 = vmatmul.f32.gmra.mxu0 %v1303
  %v1933 = vpop.f32.mrf.mxu0
  %v1934 = vadd.f32 0.0, %v1933
  %1935 = vmatmul.f32.gmra.mxu0 %v1306
  %v1936 = vpop.f32.mrf.mxu0
  %v1937 = vadd.f32 0.0, %v1936
  %1938 = vmatmul.f32.gmra.mxu0 %v1309
  %v1939 = vpop.f32.mrf.mxu0
  %v1940 = vadd.f32 0.0, %v1939
  %1941 = vdwg.mxu0
  %v1942 = vld [vmem:[%s12] sm:$0x1]
  %v1944 = vperm.slane %v1942, 0
  %1946 = vmatpush.msra.mxu0 0.0
  %1947 = vmatpush.msra.mxu0 0.0
  %1948 = vmatpush.msra.mxu0 0.0
  %1949 = vmatpush.msra.mxu0 0.0
  %1950 = vmatpush.msra.mxu0 0.0
  %1951 = vmatpush.msra.mxu0 0.0
  %1952 = vmatpush.msra.mxu0 0.0
  %1953 = vmatpush.msra.mxu0 0.0
  %1954 = vmatpush.msra.mxu0 0.0
  %1955 = vmatpush.msra.mxu0 0.0
  %1956 = vmatpush.msra.mxu0 0.0
  %1957 = vmatpush.msra.mxu0 0.0
  %1958 = vmatpush.msra.mxu0 %v1900
  %1959 = vmatpush.msra.mxu0 %v1899
  %1960 = vmatpush.msra.mxu0 %v1898
  %1961 = vmatpush.msra.mxu0 %v1897
  %1962 = vmatmul.f32.gmra.mxu0 %v137
  %v1963 = vpop.f32.mrf.mxu0
  %v1964 = vadd.f32 0.0, %v1963
  %1965 = vdwg.mxu0
  %v1966 = vadd.f32 %v1940, %v1964
  %v1967 = vadd.f32 %v1966, %v1944
  %v1968 = vxor.u32 %v1967, 2147483648
  %v1969 = vmul.f32 %v1968, 1.442695
  %v1970 = vpow.pop %v1969
  %v1971 = vadd.f32 %v1970, 1.0
  %v1972 = vrcp.pop %v1971
  %v1973 = vmul.f32 %v1971, %v1972
  %v1974 = vsub.f32 1.0, %v1973
  %v1975 = vmul.f32 %v1972, %v1974
  %v1976 = vadd.f32 %v1972, %v1975
  %vm1977 = vweird.f32 %v1971
  %vm1978 = vweird.f32 %v1972
  %vm1979 = vmor %vm1977, %vm1978
  %v1980 = vsel %vm1979, %v1972, %v1976
  %v1981 = vand.u32 2147483647, %v1971
  %vm1982 = vcmp.eq.f32.partialorder %v1981, 8.507059e+37
  %v1983 = vand.u32 %v1971, 2147483648
  %v1984 = vor.u32 1.1754944e-38, %v1983
  %v1985 = vsel %vm1982, %v1984, %v1980
  %v1986 = vmul.f32 1.0, %v1985
  %v1987 = vtanh.pop %v1967
  %v1988 = vmul.f32 %v1986, 0.0
  %1990 = vrot.lane.b32.xlu0 %v1987, 64
  %v1991 = vpop.permute.xlu0 %1990
  %v1993 = vmul.f32 %v1986, %v1991
  %1995 = vrot.lane.b32.xlu0 %v1993, 32
  %v1996 = vpop.permute.xlu0 %1995
  %v1998 = vadd.f32 %v1988, %v1996
  %v1999 = vtanh.pop %v1998
  %2001 = vrot.lane.b32.xlu0 %v1999, 64
  %v2002 = vpop.permute.xlu0 %2001
  %v2004 = vmul.f32 %v1986, %v2002
  %2006 = vrot.lane.b32.xlu0 %v2004, 64
  %v2007 = vpop.permute.xlu0 %2006
  %2009 = vst.msk [vmem:[%s1887] sm:$0xff] %vm788, %v2007
  %2010 = vrot.lane.b32.xlu0 %v2004, 32
  %v2011 = vpop.permute.xlu0 %2010
  %v2012 = vsel %vm66, %v2011, 0
  %2014 = vmatpush.msra.mxu0 0.0
  %2015 = vmatpush.msra.mxu0 0.0
  %2016 = vmatpush.msra.mxu0 0.0
  %2017 = vmatpush.msra.mxu0 0.0
  %2018 = vmatpush.msra.mxu0 0.0
  %2019 = vmatpush.msra.mxu0 0.0
  %2020 = vmatpush.msra.mxu0 0.0
  %2021 = vmatpush.msra.mxu0 0.0
  %2022 = vmatpush.msra.mxu0 0.0
  %2023 = vmatpush.msra.mxu0 0.0
  %2024 = vmatpush.msra.mxu0 0.0
  %2025 = vmatpush.msra.mxu0 0.0
  %2026 = vmatpush.msra.mxu0 %v1900
  %2027 = vmatpush.msra.mxu0 %v1899
  %2028 = vmatpush.msra.mxu0 %v1898
  %2029 = vmatpush.msra.mxu0 %v1897
  %2030 = vmatmul.f32.gmra.mxu0 %v2012
  %v2031 = vpop.f32.mrf.mxu0
  %v2032 = vadd.f32 0.0, %v2031
  %2033 = vdwg.mxu0
  %v2034 = vadd.f32 %v1937, %v2032
  %v2035 = vadd.f32 %v2034, %v1944
  %v2036 = vxor.u32 %v2035, 2147483648
  %v2037 = vmul.f32 %v2036, 1.442695
  %v2038 = vpow.pop %v2037
  %v2039 = vadd.f32 %v2038, 1.0
  %v2040 = vrcp.pop %v2039
  %v2041 = vmul.f32 %v2039, %v2040
  %v2042 = vsub.f32 1.0, %v2041
  %v2043 = vmul.f32 %v2040, %v2042
  %v2044 = vadd.f32 %v2040, %v2043
  %vm2045 = vweird.f32 %v2039
  %vm2046 = vweird.f32 %v2040
  %vm2047 = vmor %vm2045, %vm2046
  %v2048 = vsel %vm2047, %v2040, %v2044
  %v2049 = vand.u32 2147483647, %v2039
  %vm2050 = vcmp.eq.f32.partialorder %v2049, 8.507059e+37
  %v2051 = vand.u32 %v2039, 2147483648
  %v2052 = vor.u32 1.1754944e-38, %v2051
  %v2053 = vsel %vm2050, %v2052, %v2048
  %v2054 = vmul.f32 1.0, %v2053
  %v2055 = vtanh.pop %v2035
  %v2056 = vmul.f32 %v2054, %v1998
  %2058 = vrot.lane.b32.xlu0 %v2055, 64
  %v2059 = vpop.permute.xlu0 %2058
  %v2061 = vmul.f32 %v2054, %v2059
  %2063 = vrot.lane.b32.xlu0 %v2061, 32
  %v2064 = vpop.permute.xlu0 %2063
  %v2066 = vadd.f32 %v2056, %v2064
  %v2067 = vtanh.pop %v2066
  %2069 = vrot.lane.b32.xlu0 %v2067, 64
  %v2070 = vpop.permute.xlu0 %2069
  %v2072 = vmul.f32 %v2054, %v2070
  %2074 = vrot.lane.b32.xlu0 %v2072, 64
  %v2075 = vpop.permute.xlu0 %2074
  %2077 = vst.msk [vmem:[%s1820] sm:$0xff] %vm788, %v2075
  %2078 = vrot.lane.b32.xlu0 %v2072, 32
  %v2079 = vpop.permute.xlu0 %2078
  %v2080 = vsel %vm66, %v2079, 0
  %2082 = vmatpush.msra.mxu0 0.0
  %2083 = vmatpush.msra.mxu0 0.0
  %2084 = vmatpush.msra.mxu0 0.0
  %2085 = vmatpush.msra.mxu0 0.0
  %2086 = vmatpush.msra.mxu0 0.0
  %2087 = vmatpush.msra.mxu0 0.0
  %2088 = vmatpush.msra.mxu0 0.0
  %2089 = vmatpush.msra.mxu0 0.0
  %2090 = vmatpush.msra.mxu0 0.0
  %2091 = vmatpush.msra.mxu0 0.0
  %2092 = vmatpush.msra.mxu0 0.0
  %2093 = vmatpush.msra.mxu0 0.0
  %2094 = vmatpush.msra.mxu0 %v1900
  %2095 = vmatpush.msra.mxu0 %v1899
  %2096 = vmatpush.msra.mxu0 %v1898
  %2097 = vmatpush.msra.mxu0 %v1897
  %2098 = vmatmul.f32.gmra.mxu0 %v2080
  %v2099 = vpop.f32.mrf.mxu0
  %v2100 = vadd.f32 0.0, %v2099
  %2101 = vdwg.mxu0
  %v2102 = vadd.f32 %v1934, %v2100
  %v2103 = vadd.f32 %v2102, %v1944
  %v2104 = vxor.u32 %v2103, 2147483648
  %v2105 = vmul.f32 %v2104, 1.442695
  %v2106 = vpow.pop %v2105
  %v2107 = vadd.f32 %v2106, 1.0
  %v2108 = vrcp.pop %v2107
  %v2109 = vmul.f32 %v2107, %v2108
  %v2110 = vsub.f32 1.0, %v2109
  %v2111 = vmul.f32 %v2108, %v2110
  %v2112 = vadd.f32 %v2108, %v2111
  %vm2113 = vweird.f32 %v2107
  %vm2114 = vweird.f32 %v2108
  %vm2115 = vmor %vm2113, %vm2114
  %v2116 = vsel %vm2115, %v2108, %v2112
  %v2117 = vand.u32 2147483647, %v2107
  %vm2118 = vcmp.eq.f32.partialorder %v2117, 8.507059e+37
  %v2119 = vand.u32 %v2107, 2147483648
  %v2120 = vor.u32 1.1754944e-38, %v2119
  %v2121 = vsel %vm2118, %v2120, %v2116
  %v2122 = vmul.f32 1.0, %v2121
  %v2123 = vtanh.pop %v2103
  %v2124 = vmul.f32 %v2122, %v2066
  %2126 = vrot.lane.b32.xlu0 %v2123, 64
  %v2127 = vpop.permute.xlu0 %2126
  %v2129 = vmul.f32 %v2122, %v2127
  %2131 = vrot.lane.b32.xlu0 %v2129, 32
  %v2132 = vpop.permute.xlu0 %2131
  %v2134 = vadd.f32 %v2124, %v2132
  %v2135 = vtanh.pop %v2134
  %2137 = vrot.lane.b32.xlu0 %v2135, 64
  %v2138 = vpop.permute.xlu0 %2137
  %v2140 = vmul.f32 %v2122, %v2138
  %2142 = vrot.lane.b32.xlu0 %v2140, 64
  %v2143 = vpop.permute.xlu0 %2142
  %2145 = vst.msk [vmem:[%s1753] sm:$0xff] %vm788, %v2143
  %2146 = vrot.lane.b32.xlu0 %v2140, 32
  %v2147 = vpop.permute.xlu0 %2146
  %v2148 = vsel %vm66, %v2147, 0
  %2150 = vmatpush.msra.mxu0 0.0
  %2151 = vmatpush.msra.mxu0 0.0
  %2152 = vmatpush.msra.mxu0 0.0
  %2153 = vmatpush.msra.mxu0 0.0
  %2154 = vmatpush.msra.mxu0 0.0
  %2155 = vmatpush.msra.mxu0 0.0
  %2156 = vmatpush.msra.mxu0 0.0
  %2157 = vmatpush.msra.mxu0 0.0
  %2158 = vmatpush.msra.mxu0 0.0
  %2159 = vmatpush.msra.mxu0 0.0
  %2160 = vmatpush.msra.mxu0 0.0
  %2161 = vmatpush.msra.mxu0 0.0
  %2162 = vmatpush.msra.mxu0 %v1900
  %2163 = vmatpush.msra.mxu0 %v1899
  %2164 = vmatpush.msra.mxu0 %v1898
  %2165 = vmatpush.msra.mxu0 %v1897
  %2166 = vmatmul.f32.gmra.mxu0 %v2148
  %v2167 = vpop.f32.mrf.mxu0
  %v2168 = vadd.f32 0.0, %v2167
  %2169 = vdwg.mxu0
  %v2170 = vadd.f32 %v1931, %v2168
  %v2171 = vadd.f32 %v2170, %v1944
  %v2172 = vxor.u32 %v2171, 2147483648
  %v2173 = vmul.f32 %v2172, 1.442695
  %v2174 = vpow.pop %v2173
  %v2175 = vadd.f32 %v2174, 1.0
  %v2176 = vrcp.pop %v2175
  %v2177 = vmul.f32 %v2175, %v2176
  %v2178 = vsub.f32 1.0, %v2177
  %v2179 = vmul.f32 %v2176, %v2178
  %v2180 = vadd.f32 %v2176, %v2179
  %vm2181 = vweird.f32 %v2175
  %vm2182 = vweird.f32 %v2176
  %vm2183 = vmor %vm2181, %vm2182
  %v2184 = vsel %vm2183, %v2176, %v2180
  %v2185 = vand.u32 2147483647, %v2175
  %vm2186 = vcmp.eq.f32.partialorder %v2185, 8.507059e+37
  %v2187 = vand.u32 %v2175, 2147483648
  %v2188 = vor.u32 1.1754944e-38, %v2187
  %v2189 = vsel %vm2186, %v2188, %v2184
  %v2190 = vmul.f32 1.0, %v2189
  %v2191 = vtanh.pop %v2171
  %v2192 = vmul.f32 %v2190, %v2134
  %2194 = vrot.lane.b32.xlu0 %v2191, 64
  %v2195 = vpop.permute.xlu0 %2194
  %v2197 = vmul.f32 %v2190, %v2195
  %2199 = vrot.lane.b32.xlu0 %v2197, 32
  %v2200 = vpop.permute.xlu0 %2199
  %v2202 = vadd.f32 %v2192, %v2200
  %v2203 = vtanh.pop %v2202
  %2205 = vrot.lane.b32.xlu0 %v2203, 64
  %v2206 = vpop.permute.xlu0 %2205
  %v2208 = vmul.f32 %v2190, %v2206
  %2210 = vrot.lane.b32.xlu0 %v2208, 64
  %v2211 = vpop.permute.xlu0 %2210
  %2213 = vst.msk [vmem:[%s1686] sm:$0xff] %vm788, %v2211
  %2214 = vrot.lane.b32.xlu0 %v2208, 32
  %v2215 = vpop.permute.xlu0 %2214
  %v2216 = vsel %vm66, %v2215, 0
  %2218 = vmatpush.msra.mxu0 0.0
  %2219 = vmatpush.msra.mxu0 0.0
  %2220 = vmatpush.msra.mxu0 0.0
  %2221 = vmatpush.msra.mxu0 0.0
  %2222 = vmatpush.msra.mxu0 0.0
  %2223 = vmatpush.msra.mxu0 0.0
  %2224 = vmatpush.msra.mxu0 0.0
  %2225 = vmatpush.msra.mxu0 0.0
  %2226 = vmatpush.msra.mxu0 0.0
  %2227 = vmatpush.msra.mxu0 0.0
  %2228 = vmatpush.msra.mxu0 0.0
  %2229 = vmatpush.msra.mxu0 0.0
  %2230 = vmatpush.msra.mxu0 %v1900
  %2231 = vmatpush.msra.mxu0 %v1899
  %2232 = vmatpush.msra.mxu0 %v1898
  %2233 = vmatpush.msra.mxu0 %v1897
  %2234 = vmatmul.f32.gmra.mxu0 %v2216
  %v2235 = vpop.f32.mrf.mxu0
  %v2236 = vadd.f32 0.0, %v2235
  %2237 = vdwg.mxu0
  %v2238 = vadd.f32 %v1928, %v2236
  %v2239 = vadd.f32 %v2238, %v1944
  %v2240 = vxor.u32 %v2239, 2147483648
  %v2241 = vmul.f32 %v2240, 1.442695
  %v2242 = vpow.pop %v2241
  %v2243 = vadd.f32 %v2242, 1.0
  %v2244 = vrcp.pop %v2243
  %v2245 = vmul.f32 %v2243, %v2244
  %v2246 = vsub.f32 1.0, %v2245
  %v2247 = vmul.f32 %v2244, %v2246
  %v2248 = vadd.f32 %v2244, %v2247
  %vm2249 = vweird.f32 %v2243
  %vm2250 = vweird.f32 %v2244
  %vm2251 = vmor %vm2249, %vm2250
  %v2252 = vsel %vm2251, %v2244, %v2248
  %v2253 = vand.u32 2147483647, %v2243
  %vm2254 = vcmp.eq.f32.partialorder %v2253, 8.507059e+37
  %v2255 = vand.u32 %v2243, 2147483648
  %v2256 = vor.u32 1.1754944e-38, %v2255
  %v2257 = vsel %vm2254, %v2256, %v2252
  %v2258 = vmul.f32 1.0, %v2257
  %v2259 = vtanh.pop %v2239
  %v2260 = vmul.f32 %v2258, %v2202
  %2262 = vrot.lane.b32.xlu0 %v2259, 64
  %v2263 = vpop.permute.xlu0 %2262
  %v2265 = vmul.f32 %v2258, %v2263
  %2267 = vrot.lane.b32.xlu0 %v2265, 32
  %v2268 = vpop.permute.xlu0 %2267
  %v2270 = vadd.f32 %v2260, %v2268
  %v2271 = vtanh.pop %v2270
  %2273 = vrot.lane.b32.xlu0 %v2271, 64
  %v2274 = vpop.permute.xlu0 %2273
  %v2276 = vmul.f32 %v2258, %v2274
  %2278 = vrot.lane.b32.xlu0 %v2276, 64
  %v2279 = vpop.permute.xlu0 %2278
  %2281 = vst.msk [vmem:[%s1619] sm:$0xff] %vm788, %v2279
  %2282 = vrot.lane.b32.xlu0 %v2276, 32
  %v2283 = vpop.permute.xlu0 %2282
  %v2284 = vsel %vm66, %v2283, 0
  %2286 = vmatpush.msra.mxu0 0.0
  %2287 = vmatpush.msra.mxu0 0.0
  %2288 = vmatpush.msra.mxu0 0.0
  %2289 = vmatpush.msra.mxu0 0.0
  %2290 = vmatpush.msra.mxu0 0.0
  %2291 = vmatpush.msra.mxu0 0.0
  %2292 = vmatpush.msra.mxu0 0.0
  %2293 = vmatpush.msra.mxu0 0.0
  %2294 = vmatpush.msra.mxu0 0.0
  %2295 = vmatpush.msra.mxu0 0.0
  %2296 = vmatpush.msra.mxu0 0.0
  %2297 = vmatpush.msra.mxu0 0.0
  %2298 = vmatpush.msra.mxu0 %v1900
  %2299 = vmatpush.msra.mxu0 %v1899
  %2300 = vmatpush.msra.mxu0 %v1898
  %2301 = vmatpush.msra.mxu0 %v1897
  %2302 = vmatmul.f32.gmra.mxu0 %v2284
  %v2303 = vpop.f32.mrf.mxu0
  %v2304 = vadd.f32 0.0, %v2303
  %2305 = vdwg.mxu0
  %v2306 = vadd.f32 %v1925, %v2304
  %v2307 = vadd.f32 %v2306, %v1944
  %v2308 = vxor.u32 %v2307, 2147483648
  %v2309 = vmul.f32 %v2308, 1.442695
  %v2310 = vpow.pop %v2309
  %v2311 = vadd.f32 %v2310, 1.0
  %v2312 = vrcp.pop %v2311
  %v2313 = vmul.f32 %v2311, %v2312
  %v2314 = vsub.f32 1.0, %v2313
  %v2315 = vmul.f32 %v2312, %v2314
  %v2316 = vadd.f32 %v2312, %v2315
  %vm2317 = vweird.f32 %v2311
  %vm2318 = vweird.f32 %v2312
  %vm2319 = vmor %vm2317, %vm2318
  %v2320 = vsel %vm2319, %v2312, %v2316
  %v2321 = vand.u32 2147483647, %v2311
  %vm2322 = vcmp.eq.f32.partialorder %v2321, 8.507059e+37
  %v2323 = vand.u32 %v2311, 2147483648
  %v2324 = vor.u32 1.1754944e-38, %v2323
  %v2325 = vsel %vm2322, %v2324, %v2320
  %v2326 = vmul.f32 1.0, %v2325
  %v2327 = vtanh.pop %v2307
  %v2328 = vmul.f32 %v2326, %v2270
  %2330 = vrot.lane.b32.xlu0 %v2327, 64
  %v2331 = vpop.permute.xlu0 %2330
  %v2333 = vmul.f32 %v2326, %v2331
  %2335 = vrot.lane.b32.xlu0 %v2333, 32
  %v2336 = vpop.permute.xlu0 %2335
  %v2338 = vadd.f32 %v2328, %v2336
  %v2339 = vtanh.pop %v2338
  %2341 = vrot.lane.b32.xlu0 %v2339, 64
  %v2342 = vpop.permute.xlu0 %2341
  %v2344 = vmul.f32 %v2326, %v2342
  %2346 = vrot.lane.b32.xlu0 %v2344, 64
  %v2347 = vpop.permute.xlu0 %2346
  %2349 = vst.msk [vmem:[%s1552] sm:$0xff] %vm788, %v2347
  %2350 = vrot.lane.b32.xlu0 %v2344, 32
  %v2351 = vpop.permute.xlu0 %2350
  %v2352 = vsel %vm66, %v2351, 0
  %2354 = vmatpush.msra.mxu0 0.0
  %2355 = vmatpush.msra.mxu0 0.0
  %2356 = vmatpush.msra.mxu0 0.0
  %2357 = vmatpush.msra.mxu0 0.0
  %2358 = vmatpush.msra.mxu0 0.0
  %2359 = vmatpush.msra.mxu0 0.0
  %2360 = vmatpush.msra.mxu0 0.0
  %2361 = vmatpush.msra.mxu0 0.0
  %2362 = vmatpush.msra.mxu0 0.0
  %2363 = vmatpush.msra.mxu0 0.0
  %2364 = vmatpush.msra.mxu0 0.0
  %2365 = vmatpush.msra.mxu0 0.0
  %2366 = vmatpush.msra.mxu0 %v1900
  %2367 = vmatpush.msra.mxu0 %v1899
  %2368 = vmatpush.msra.mxu0 %v1898
  %2369 = vmatpush.msra.mxu0 %v1897
  %2370 = vmatmul.f32.gmra.mxu0 %v2352
  %v2371 = vpop.f32.mrf.mxu0
  %v2372 = vadd.f32 0.0, %v2371
  %2373 = vdwg.mxu0
  %v2374 = vadd.f32 %v1922, %v2372
  %v2375 = vadd.f32 %v2374, %v1944
  %v2376 = vxor.u32 %v2375, 2147483648
  %v2377 = vmul.f32 %v2376, 1.442695
  %v2378 = vpow.pop %v2377
  %v2379 = vadd.f32 %v2378, 1.0
  %v2380 = vrcp.pop %v2379
  %v2381 = vmul.f32 %v2379, %v2380
  %v2382 = vsub.f32 1.0, %v2381
  %v2383 = vmul.f32 %v2380, %v2382
  %v2384 = vadd.f32 %v2380, %v2383
  %vm2385 = vweird.f32 %v2379
  %vm2386 = vweird.f32 %v2380
  %vm2387 = vmor %vm2385, %vm2386
  %v2388 = vsel %vm2387, %v2380, %v2384
  %v2389 = vand.u32 2147483647, %v2379
  %vm2390 = vcmp.eq.f32.partialorder %v2389, 8.507059e+37
  %v2391 = vand.u32 %v2379, 2147483648
  %v2392 = vor.u32 1.1754944e-38, %v2391
  %v2393 = vsel %vm2390, %v2392, %v2388
  %v2394 = vmul.f32 1.0, %v2393
  %v2395 = vtanh.pop %v2375
  %v2396 = vmul.f32 %v2394, %v2338
  %2398 = vrot.lane.b32.xlu0 %v2395, 64
  %v2399 = vpop.permute.xlu0 %2398
  %v2401 = vmul.f32 %v2394, %v2399
  %2403 = vrot.lane.b32.xlu0 %v2401, 32
  %v2404 = vpop.permute.xlu0 %2403
  %v2406 = vadd.f32 %v2396, %v2404
  %v2407 = vtanh.pop %v2406
  %2409 = vrot.lane.b32.xlu0 %v2407, 64
  %v2410 = vpop.permute.xlu0 %2409
  %v2412 = vmul.f32 %v2394, %v2410
  %2414 = vrot.lane.b32.xlu0 %v2412, 64
  %v2415 = vpop.permute.xlu0 %2414
  %2417 = vst.msk [vmem:[%s1485] sm:$0xff] %vm788, %v2415
  %2418 = vrot.lane.b32.xlu0 %v2412, 32
  %v2419 = vpop.permute.xlu0 %2418
  %v2420 = vsel %vm66, %v2419, 0
  %2422 = vmatpush.msra.mxu0 0.0
  %2423 = vmatpush.msra.mxu0 0.0
  %2424 = vmatpush.msra.mxu0 0.0
  %2425 = vmatpush.msra.mxu0 0.0
  %2426 = vmatpush.msra.mxu0 0.0
  %2427 = vmatpush.msra.mxu0 0.0
  %2428 = vmatpush.msra.mxu0 0.0
  %2429 = vmatpush.msra.mxu0 0.0
  %2430 = vmatpush.msra.mxu0 0.0
  %2431 = vmatpush.msra.mxu0 0.0
  %2432 = vmatpush.msra.mxu0 0.0
  %2433 = vmatpush.msra.mxu0 0.0
  %2434 = vmatpush.msra.mxu0 %v1900
  %2435 = vmatpush.msra.mxu0 %v1899
  %2436 = vmatpush.msra.mxu0 %v1898
  %2437 = vmatpush.msra.mxu0 %v1897
  %2438 = vmatmul.f32.gmra.mxu0 %v2420
  %v2439 = vpop.f32.mrf.mxu0
  %v2440 = vadd.f32 0.0, %v2439
  %2441 = vdwg.mxu0
  %v2442 = vadd.f32 %v1919, %v2440
  %v2443 = vadd.f32 %v2442, %v1944
  %v2444 = vxor.u32 %v2443, 2147483648
  %v2445 = vmul.f32 %v2444, 1.442695
  %v2446 = vpow.pop %v2445
  %v2447 = vadd.f32 %v2446, 1.0
  %v2448 = vrcp.pop %v2447
  %v2449 = vmul.f32 %v2447, %v2448
  %v2450 = vsub.f32 1.0, %v2449
  %v2451 = vmul.f32 %v2448, %v2450
  %v2452 = vadd.f32 %v2448, %v2451
  %vm2453 = vweird.f32 %v2447
  %vm2454 = vweird.f32 %v2448
  %vm2455 = vmor %vm2453, %vm2454
  %v2456 = vsel %vm2455, %v2448, %v2452
  %v2457 = vand.u32 2147483647, %v2447
  %vm2458 = vcmp.eq.f32.partialorder %v2457, 8.507059e+37
  %v2459 = vand.u32 %v2447, 2147483648
  %v2460 = vor.u32 1.1754944e-38, %v2459
  %v2461 = vsel %vm2458, %v2460, %v2456
  %v2462 = vmul.f32 1.0, %v2461
  %v2463 = vtanh.pop %v2443
  %v2464 = vmul.f32 %v2462, %v2406
  %2466 = vrot.lane.b32.xlu0 %v2463, 64
  %v2467 = vpop.permute.xlu0 %2466
  %v2469 = vmul.f32 %v2462, %v2467
  %2471 = vrot.lane.b32.xlu0 %v2469, 32
  %v2472 = vpop.permute.xlu0 %2471
  %v2474 = vadd.f32 %v2464, %v2472
  %v2475 = vtanh.pop %v2474
  %2477 = vrot.lane.b32.xlu0 %v2475, 64
  %v2478 = vpop.permute.xlu0 %2477
  %v2480 = vmul.f32 %v2462, %v2478
  %2482 = vrot.lane.b32.xlu0 %v2480, 64
  %v2483 = vpop.permute.xlu0 %2482
  %2485 = vst.msk [vmem:[#allocation3] sm:$0xff] %vm788, %v2483
  %v2486 = vld [vmem:[#allocation3] sm:$0xff]
  %v2487 = vld [vmem:[#allocation3 + $0x8] sm:$0xff]
  %v2488 = vld [vmem:[#allocation3 + $0x10] sm:$0xff]
  %v2489 = vld [vmem:[#allocation3 + $0x18] sm:$0xff]
  %v2490 = vld [vmem:[#allocation3 + $0x20] sm:$0xff]
  %v2491 = vld [vmem:[#allocation3 + $0x28] sm:$0xff]
  %v2492 = vld [vmem:[#allocation3 + $0x30] sm:$0xff]
  %v2493 = vld [vmem:[#allocation3 + $0x38] sm:$0xff]
  %v2494 = vld [vmem:[%s13] sm:$0xff]
  %v2495 = vld [vmem:[%s13 + $0x8] sm:$0xff]
  %v2496 = vld [vmem:[%s13 + $0x10] sm:$0xff]
  %v2497 = vld [vmem:[%s13 + $0x18] sm:$0xff]
  %v2498 = vld [vmem:[%s13 + $0x20] sm:$0xff]
  %v2499 = vld [vmem:[%s13 + $0x28] sm:$0xff]
  %v2500 = vld [vmem:[%s13 + $0x30] sm:$0xff]
  %v2501 = vld [vmem:[%s13 + $0x38] sm:$0xff]
  %v2503 = vsel %vm1286, %v2486, 0
  %v2506 = vsel %vm1286, %v2487, 0
  %v2509 = vsel %vm1286, %v2488, 0
  %v2512 = vsel %vm1286, %v2489, 0
  %v2515 = vsel %vm1286, %v2490, 0
  %v2518 = vsel %vm1286, %v2491, 0
  %v2521 = vsel %vm1286, %v2492, 0
  %v2524 = vsel %vm1286, %v2493, 0
  %2526 = vmatpush.msra.mxu0 0.0
  %2527 = vmatpush.msra.mxu0 0.0
  %2528 = vmatpush.msra.mxu0 0.0
  %2529 = vmatpush.msra.mxu0 0.0
  %2530 = vmatpush.msra.mxu0 0.0
  %2531 = vmatpush.msra.mxu0 0.0
  %2532 = vmatpush.msra.mxu0 0.0
  %2533 = vmatpush.msra.mxu0 0.0
  %2534 = vmatpush.msra.mxu0 %v2501
  %2535 = vmatpush.msra.mxu0 %v2500
  %2536 = vmatpush.msra.mxu0 %v2499
  %2537 = vmatpush.msra.mxu0 %v2498
  %2538 = vmatpush.msra.mxu0 %v2497
  %2539 = vmatpush.msra.mxu0 %v2496
  %2540 = vmatpush.msra.mxu0 %v2495
  %2541 = vmatpush.msra.mxu0 %v2494
  %2542 = vmatmul.f32.gmra.mxu0 %v2503
  %v2543 = vpop.f32.mrf.mxu0
  %v2544 = vadd.f32 0.0, %v2543
  %2545 = vmatmul.f32.gmra.mxu0 %v2506
  %v2546 = vpop.f32.mrf.mxu0
  %v2547 = vadd.f32 0.0, %v2546
  %2548 = vmatmul.f32.gmra.mxu0 %v2509
  %v2549 = vpop.f32.mrf.mxu0
  %v2550 = vadd.f32 0.0, %v2549
  %2551 = vmatmul.f32.gmra.mxu0 %v2512
  %v2552 = vpop.f32.mrf.mxu0
  %v2553 = vadd.f32 0.0, %v2552
  %2554 = vmatmul.f32.gmra.mxu0 %v2515
  %v2555 = vpop.f32.mrf.mxu0
  %v2556 = vadd.f32 0.0, %v2555
  %2557 = vmatmul.f32.gmra.mxu0 %v2518
  %v2558 = vpop.f32.mrf.mxu0
  %v2559 = vadd.f32 0.0, %v2558
  %2560 = vmatmul.f32.gmra.mxu0 %v2521
  %v2561 = vpop.f32.mrf.mxu0
  %v2562 = vadd.f32 0.0, %v2561
  %2563 = vmatmul.f32.gmra.mxu0 %v2524
  %v2564 = vpop.f32.mrf.mxu0
  %v2565 = vadd.f32 0.0, %v2564
  %2566 = vdwg.mxu0
  %v2567 = vtanh.pop %v2544
  %v2568 = vtanh.pop %v2547
  %v2569 = vtanh.pop %v2550
  %v2570 = vtanh.pop %v2553
  %v2571 = vtanh.pop %v2556
  %v2572 = vtanh.pop %v2559
  %v2573 = vtanh.pop %v2562
  %v2574 = vtanh.pop %v2565
  %v2575 = vld [vmem:[%s14] sm:$0x1]
  %v2577 = vperm.slane %v2575, 0
  %v2579 = vmul.f32 %v2567, %v2577
  %v2580 = vmul.f32 %v2568, %v2577
  %v2581 = vmul.f32 %v2569, %v2577
  %v2582 = vmul.f32 %v2570, %v2577
  %v2583 = vmul.f32 %v2571, %v2577
  %v2584 = vmul.f32 %v2572, %v2577
  %v2585 = vmul.f32 %v2573, %v2577
  %v2586 = vmul.f32 %v2574, %v2577
  %v2587 = vsel %vm1286, %v2579, 0.0
  %2588 = vadd.xlane.f32.xlu0 %v2587
  %v2589 = vpop.xlane.xlu0 %2588
  %v2590 = vsel %vm1286, %v2580, 0.0
  %2591 = vadd.xlane.f32.xlu0 %v2590
  %v2592 = vpop.xlane.xlu0 %2591
  %v2593 = vsel %vm1286, %v2581, 0.0
  %2594 = vadd.xlane.f32.xlu0 %v2593
  %v2595 = vpop.xlane.xlu0 %2594
  %v2596 = vsel %vm1286, %v2582, 0.0
  %2597 = vadd.xlane.f32.xlu0 %v2596
  %v2598 = vpop.xlane.xlu0 %2597
  %v2599 = vsel %vm1286, %v2583, 0.0
  %2600 = vadd.xlane.f32.xlu0 %v2599
  %v2601 = vpop.xlane.xlu0 %2600
  %v2602 = vsel %vm1286, %v2584, 0.0
  %2603 = vadd.xlane.f32.xlu0 %v2602
  %v2604 = vpop.xlane.xlu0 %2603
  %v2605 = vsel %vm1286, %v2585, 0.0
  %2606 = vadd.xlane.f32.xlu0 %v2605
  %v2607 = vpop.xlane.xlu0 %2606
  %v2608 = vsel %vm1286, %v2586, 0.0
  %2609 = vadd.xlane.f32.xlu0 %v2608
  %v2610 = vpop.xlane.xlu0 %2609
  %v2611 = vrot.slane %v2589, 4
  %v2612 = vmax.f32 %v2589, %v2611
  %v2613 = vrot.slane %v2612, 2
  %v2614 = vmax.f32 %v2612, %v2613
  %v2615 = vrot.slane %v2614, 1
  %v2616 = vmax.f32 %v2614, %v2615
  %v2617 = vrot.slane %v2592, 4
  %v2618 = vmax.f32 %v2592, %v2617
  %v2619 = vrot.slane %v2618, 2
  %v2620 = vmax.f32 %v2618, %v2619
  %v2621 = vrot.slane %v2620, 1
  %v2622 = vmax.f32 %v2620, %v2621
  %v2623 = vrot.slane %v2595, 4
  %v2624 = vmax.f32 %v2595, %v2623
  %v2625 = vrot.slane %v2624, 2
  %v2626 = vmax.f32 %v2624, %v2625
  %v2627 = vrot.slane %v2626, 1
  %v2628 = vmax.f32 %v2626, %v2627
  %v2629 = vrot.slane %v2598, 4
  %v2630 = vmax.f32 %v2598, %v2629
  %v2631 = vrot.slane %v2630, 2
  %v2632 = vmax.f32 %v2630, %v2631
  %v2633 = vrot.slane %v2632, 1
  %v2634 = vmax.f32 %v2632, %v2633
  %v2635 = vrot.slane %v2601, 4
  %v2636 = vmax.f32 %v2601, %v2635
  %v2637 = vrot.slane %v2636, 2
  %v2638 = vmax.f32 %v2636, %v2637
  %v2639 = vrot.slane %v2638, 1
  %v2640 = vmax.f32 %v2638, %v2639
  %v2641 = vrot.slane %v2604, 4
  %v2642 = vmax.f32 %v2604, %v2641
  %v2643 = vrot.slane %v2642, 2
  %v2644 = vmax.f32 %v2642, %v2643
  %v2645 = vrot.slane %v2644, 1
  %v2646 = vmax.f32 %v2644, %v2645
  %v2647 = vrot.slane %v2607, 4
  %v2648 = vmax.f32 %v2607, %v2647
  %v2649 = vrot.slane %v2648, 2
  %v2650 = vmax.f32 %v2648, %v2649
  %v2651 = vrot.slane %v2650, 1
  %v2652 = vmax.f32 %v2650, %v2651
  %v2653 = vrot.slane %v2610, 4
  %v2654 = vmax.f32 %v2610, %v2653
  %v2655 = vrot.slane %v2654, 2
  %v2656 = vmax.f32 %v2654, %v2655
  %v2657 = vrot.slane %v2656, 1
  %v2658 = vmax.f32 %v2656, %v2657
  %v2659 = vsub.f32 %v2589, %v2616
  %v2660 = vsub.f32 %v2592, %v2622
  %v2661 = vsub.f32 %v2595, %v2628
  %v2662 = vsub.f32 %v2598, %v2634
  %v2663 = vsub.f32 %v2601, %v2640
  %v2664 = vsub.f32 %v2604, %v2646
  %v2665 = vsub.f32 %v2607, %v2652
  %v2666 = vsub.f32 %v2610, %v2658
  %v2667 = vmul.f32 %v2659, 1.442695
  %v2668 = vpow.pop %v2667
  %v2669 = vmul.f32 %v2660, 1.442695
  %v2670 = vpow.pop %v2669
  %v2671 = vmul.f32 %v2661, 1.442695
  %v2672 = vpow.pop %v2671
  %v2673 = vmul.f32 %v2662, 1.442695
  %v2674 = vpow.pop %v2673
  %v2675 = vmul.f32 %v2663, 1.442695
  %v2676 = vpow.pop %v2675
  %v2677 = vmul.f32 %v2664, 1.442695
  %v2678 = vpow.pop %v2677
  %v2679 = vmul.f32 %v2665, 1.442695
  %v2680 = vpow.pop %v2679
  %v2681 = vmul.f32 %v2666, 1.442695
  %v2682 = vpow.pop %v2681
  %v2683 = vrot.slane %v2668, 4
  %v2684 = vadd.f32 %v2668, %v2683
  %v2685 = vrot.slane %v2684, 2
  %v2686 = vadd.f32 %v2684, %v2685
  %v2687 = vrot.slane %v2686, 1
  %v2688 = vadd.f32 %v2686, %v2687
  %v2689 = vrot.slane %v2670, 4
  %v2690 = vadd.f32 %v2670, %v2689
  %v2691 = vrot.slane %v2690, 2
  %v2692 = vadd.f32 %v2690, %v2691
  %v2693 = vrot.slane %v2692, 1
  %v2694 = vadd.f32 %v2692, %v2693
  %v2695 = vrot.slane %v2672, 4
  %v2696 = vadd.f32 %v2672, %v2695
  %v2697 = vrot.slane %v2696, 2
  %v2698 = vadd.f32 %v2696, %v2697
  %v2699 = vrot.slane %v2698, 1
  %v2700 = vadd.f32 %v2698, %v2699
  %v2701 = vrot.slane %v2674, 4
  %v2702 = vadd.f32 %v2674, %v2701
  %v2703 = vrot.slane %v2702, 2
  %v2704 = vadd.f32 %v2702, %v2703
  %v2705 = vrot.slane %v2704, 1
  %v2706 = vadd.f32 %v2704, %v2705
  %v2707 = vrot.slane %v2676, 4
  %v2708 = vadd.f32 %v2676, %v2707
  %v2709 = vrot.slane %v2708, 2
  %v2710 = vadd.f32 %v2708, %v2709
  %v2711 = vrot.slane %v2710, 1
  %v2712 = vadd.f32 %v2710, %v2711
  %v2713 = vrot.slane %v2678, 4
  %v2714 = vadd.f32 %v2678, %v2713
  %v2715 = vrot.slane %v2714, 2
  %v2716 = vadd.f32 %v2714, %v2715
  %v2717 = vrot.slane %v2716, 1
  %v2718 = vadd.f32 %v2716, %v2717
  %v2719 = vrot.slane %v2680, 4
  %v2720 = vadd.f32 %v2680, %v2719
  %v2721 = vrot.slane %v2720, 2
  %v2722 = vadd.f32 %v2720, %v2721
  %v2723 = vrot.slane %v2722, 1
  %v2724 = vadd.f32 %v2722, %v2723
  %v2725 = vrot.slane %v2682, 4
  %v2726 = vadd.f32 %v2682, %v2725
  %v2727 = vrot.slane %v2726, 2
  %v2728 = vadd.f32 %v2726, %v2727
  %v2729 = vrot.slane %v2728, 1
  %v2730 = vadd.f32 %v2728, %v2729
  %v2731 = vrcp.pop %v2688
  %v2732 = vmul.f32 %v2688, %v2731
  %v2733 = vsub.f32 1.0, %v2732
  %v2734 = vmul.f32 %v2731, %v2733
  %v2735 = vadd.f32 %v2731, %v2734
  %vm2736 = vweird.f32 %v2688
  %vm2737 = vweird.f32 %v2731
  %vm2738 = vmor %vm2736, %vm2737
  %v2739 = vsel %vm2738, %v2731, %v2735
  %v2740 = vand.u32 2147483647, %v2688
  %vm2741 = vcmp.eq.f32.partialorder %v2740, 8.507059e+37
  %v2742 = vand.u32 %v2688, 2147483648
  %v2743 = vor.u32 1.1754944e-38, %v2742
  %v2744 = vsel %vm2741, %v2743, %v2739
  %v2745 = vmul.f32 %v2668, %v2744
  %v2746 = vrcp.pop %v2694
  %v2747 = vmul.f32 %v2694, %v2746
  %v2748 = vsub.f32 1.0, %v2747
  %v2749 = vmul.f32 %v2746, %v2748
  %v2750 = vadd.f32 %v2746, %v2749
  %vm2751 = vweird.f32 %v2694
  %vm2752 = vweird.f32 %v2746
  %vm2753 = vmor %vm2751, %vm2752
  %v2754 = vsel %vm2753, %v2746, %v2750
  %v2755 = vand.u32 2147483647, %v2694
  %vm2756 = vcmp.eq.f32.partialorder %v2755, 8.507059e+37
  %v2757 = vand.u32 %v2694, 2147483648
  %v2758 = vor.u32 1.1754944e-38, %v2757
  %v2759 = vsel %vm2756, %v2758, %v2754
  %v2760 = vmul.f32 %v2670, %v2759
  %v2761 = vrcp.pop %v2700
  %v2762 = vmul.f32 %v2700, %v2761
  %v2763 = vsub.f32 1.0, %v2762
  %v2764 = vmul.f32 %v2761, %v2763
  %v2765 = vadd.f32 %v2761, %v2764
  %vm2766 = vweird.f32 %v2700
  %vm2767 = vweird.f32 %v2761
  %vm2768 = vmor %vm2766, %vm2767
  %v2769 = vsel %vm2768, %v2761, %v2765
  %v2770 = vand.u32 2147483647, %v2700
  %vm2771 = vcmp.eq.f32.partialorder %v2770, 8.507059e+37
  %v2772 = vand.u32 %v2700, 2147483648
  %v2773 = vor.u32 1.1754944e-38, %v2772
  %v2774 = vsel %vm2771, %v2773, %v2769
  %v2775 = vmul.f32 %v2672, %v2774
  %v2776 = vrcp.pop %v2706
  %v2777 = vmul.f32 %v2706, %v2776
  %v2778 = vsub.f32 1.0, %v2777
  %v2779 = vmul.f32 %v2776, %v2778
  %v2780 = vadd.f32 %v2776, %v2779
  %vm2781 = vweird.f32 %v2706
  %vm2782 = vweird.f32 %v2776
  %vm2783 = vmor %vm2781, %vm2782
  %v2784 = vsel %vm2783, %v2776, %v2780
  %v2785 = vand.u32 2147483647, %v2706
  %vm2786 = vcmp.eq.f32.partialorder %v2785, 8.507059e+37
  %v2787 = vand.u32 %v2706, 2147483648
  %v2788 = vor.u32 1.1754944e-38, %v2787
  %v2789 = vsel %vm2786, %v2788, %v2784
  %v2790 = vmul.f32 %v2674, %v2789
  %v2791 = vrcp.pop %v2712
  %v2792 = vmul.f32 %v2712, %v2791
  %v2793 = vsub.f32 1.0, %v2792
  %v2794 = vmul.f32 %v2791, %v2793
  %v2795 = vadd.f32 %v2791, %v2794
  %vm2796 = vweird.f32 %v2712
  %vm2797 = vweird.f32 %v2791
  %vm2798 = vmor %vm2796, %vm2797
  %v2799 = vsel %vm2798, %v2791, %v2795
  %v2800 = vand.u32 2147483647, %v2712
  %vm2801 = vcmp.eq.f32.partialorder %v2800, 8.507059e+37
  %v2802 = vand.u32 %v2712, 2147483648
  %v2803 = vor.u32 1.1754944e-38, %v2802
  %v2804 = vsel %vm2801, %v2803, %v2799
  %v2805 = vmul.f32 %v2676, %v2804
  %v2806 = vrcp.pop %v2718
  %v2807 = vmul.f32 %v2718, %v2806
  %v2808 = vsub.f32 1.0, %v2807
  %v2809 = vmul.f32 %v2806, %v2808
  %v2810 = vadd.f32 %v2806, %v2809
  %vm2811 = vweird.f32 %v2718
  %vm2812 = vweird.f32 %v2806
  %vm2813 = vmor %vm2811, %vm2812
  %v2814 = vsel %vm2813, %v2806, %v2810
  %v2815 = vand.u32 2147483647, %v2718
  %vm2816 = vcmp.eq.f32.partialorder %v2815, 8.507059e+37
  %v2817 = vand.u32 %v2718, 2147483648
  %v2818 = vor.u32 1.1754944e-38, %v2817
  %v2819 = vsel %vm2816, %v2818, %v2814
  %v2820 = vmul.f32 %v2678, %v2819
  %v2821 = vrcp.pop %v2724
  %v2822 = vmul.f32 %v2724, %v2821
  %v2823 = vsub.f32 1.0, %v2822
  %v2824 = vmul.f32 %v2821, %v2823
  %v2825 = vadd.f32 %v2821, %v2824
  %vm2826 = vweird.f32 %v2724
  %vm2827 = vweird.f32 %v2821
  %vm2828 = vmor %vm2826, %vm2827
  %v2829 = vsel %vm2828, %v2821, %v2825
  %v2830 = vand.u32 2147483647, %v2724
  %vm2831 = vcmp.eq.f32.partialorder %v2830, 8.507059e+37
  %v2832 = vand.u32 %v2724, 2147483648
  %v2833 = vor.u32 1.1754944e-38, %v2832
  %v2834 = vsel %vm2831, %v2833, %v2829
  %v2835 = vmul.f32 %v2680, %v2834
  %v2836 = vrcp.pop %v2730
  %v2837 = vmul.f32 %v2730, %v2836
  %v2838 = vsub.f32 1.0, %v2837
  %v2839 = vmul.f32 %v2836, %v2838
  %v2840 = vadd.f32 %v2836, %v2839
  %vm2841 = vweird.f32 %v2730
  %vm2842 = vweird.f32 %v2836
  %vm2843 = vmor %vm2841, %vm2842
  %v2844 = vsel %vm2843, %v2836, %v2840
  %v2845 = vand.u32 2147483647, %v2730
  %vm2846 = vcmp.eq.f32.partialorder %v2845, 8.507059e+37
  %v2847 = vand.u32 %v2730, 2147483648
  %v2848 = vor.u32 1.1754944e-38, %v2847
  %v2849 = vsel %vm2846, %v2848, %v2844
  %v2850 = vmul.f32 %v2682, %v2849
  %v2851 = vmul.f32 %v2486, %v2745
  %v2852 = vmul.f32 %v2487, %v2760
  %v2853 = vmul.f32 %v2488, %v2775
  %v2854 = vmul.f32 %v2489, %v2790
  %v2855 = vmul.f32 %v2490, %v2805
  %v2856 = vmul.f32 %v2491, %v2820
  %v2857 = vmul.f32 %v2492, %v2835
  %v2858 = vmul.f32 %v2493, %v2850
  %v2859 = vsel %vm1286, %v2851, 0.0
  %v2860 = vrot.slane %v2859, 4
  %v2861 = vadd.f32 %v2859, %v2860
  %v2862 = vrot.slane %v2861, 2
  %v2863 = vadd.f32 %v2861, %v2862
  %v2864 = vrot.slane %v2863, 1
  %v2865 = vadd.f32 %v2863, %v2864
  %v2866 = vsel %vm1286, %v2852, 0.0
  %v2867 = vrot.slane %v2866, 4
  %v2868 = vadd.f32 %v2866, %v2867
  %v2869 = vrot.slane %v2868, 2
  %v2870 = vadd.f32 %v2868, %v2869
  %v2871 = vrot.slane %v2870, 1
  %v2872 = vadd.f32 %v2870, %v2871
  %v2873 = vsel %vm1286, %v2853, 0.0
  %v2874 = vrot.slane %v2873, 4
  %v2875 = vadd.f32 %v2873, %v2874
  %v2876 = vrot.slane %v2875, 2
  %v2877 = vadd.f32 %v2875, %v2876
  %v2878 = vrot.slane %v2877, 1
  %v2879 = vadd.f32 %v2877, %v2878
  %v2880 = vsel %vm1286, %v2854, 0.0
  %v2881 = vrot.slane %v2880, 4
  %v2882 = vadd.f32 %v2880, %v2881
  %v2883 = vrot.slane %v2882, 2
  %v2884 = vadd.f32 %v2882, %v2883
  %v2885 = vrot.slane %v2884, 1
  %v2886 = vadd.f32 %v2884, %v2885
  %v2887 = vsel %vm1286, %v2855, 0.0
  %v2888 = vrot.slane %v2887, 4
  %v2889 = vadd.f32 %v2887, %v2888
  %v2890 = vrot.slane %v2889, 2
  %v2891 = vadd.f32 %v2889, %v2890
  %v2892 = vrot.slane %v2891, 1
  %v2893 = vadd.f32 %v2891, %v2892
  %v2894 = vsel %vm1286, %v2856, 0.0
  %v2895 = vrot.slane %v2894, 4
  %v2896 = vadd.f32 %v2894, %v2895
  %v2897 = vrot.slane %v2896, 2
  %v2898 = vadd.f32 %v2896, %v2897
  %v2899 = vrot.slane %v2898, 1
  %v2900 = vadd.f32 %v2898, %v2899
  %v2901 = vsel %vm1286, %v2857, 0.0
  %v2902 = vrot.slane %v2901, 4
  %v2903 = vadd.f32 %v2901, %v2902
  %v2904 = vrot.slane %v2903, 2
  %v2905 = vadd.f32 %v2903, %v2904
  %v2906 = vrot.slane %v2905, 1
  %v2907 = vadd.f32 %v2905, %v2906
  %v2908 = vsel %vm1286, %v2858, 0.0
  %v2909 = vrot.slane %v2908, 4
  %v2910 = vadd.f32 %v2908, %v2909
  %v2911 = vrot.slane %v2910, 2
  %v2912 = vadd.f32 %v2910, %v2911
  %v2913 = vrot.slane %v2912, 1
  %v2914 = vadd.f32 %v2912, %v2913
  %vm2923 = vcmask 1041409
  %v2924 = vsel %vm2923, %v2872, %v2865
  %vm2925 = vcmask 1042434
  %v2926 = vsel %vm2925, %v2879, %v2924
  %vm2927 = vcmask 1043459
  %v2928 = vsel %vm2927, %v2886, %v2926
  %vm2929 = vcmask 1044484
  %v2930 = vsel %vm2929, %v2893, %v2928
  %vm2931 = vcmask 1045509
  %v2932 = vsel %vm2931, %v2900, %v2930
  %vm2933 = vcmask 1046534
  %v2934 = vsel %vm2933, %v2907, %v2932
  %vm2935 = vcmask 1047559
  %v2936 = vsel %vm2935, %v2914, %v2934
  %2938 = vst.msk [vmem:[%s15] sm:$0xff] %vm1286, %v2936
  // Predicated region
  $region62: #{bilstm_attention_forward.1} parent=0 // pred_check
    _
  $region63: #{bilstm_attention_forward.1} parent=0 // pred_check_branch
    %2940 = sbr.rel (0) target = $region65
  $region64: #{bilstm_attention_forward.1} parent=0 // pred_region
    _
  $region65: #{bilstm_attention_forward.1} parent=0 // pred_fallthru
    _
  // Predicated region
  $region66: #{bilstm_attention_forward.1} parent=0 // pred_check
    _
  $region67: #{bilstm_attention_forward.1} parent=0 // pred_check_branch
    %2942 = sbr.rel (0) target = $region69
  $region68: #{bilstm_attention_forward.1} parent=0 // pred_region
    _
  $region69: #{bilstm_attention_forward.1} parent=0 // pred_fallthru
    _

</llo_original>
